<compile_context>
chip_gen: v6e
topology: v6e:2x2x1
jax: 0.10.0
libtpu: 0.0.40
codegen_flags: <defaults>
</compile_context>

<pallas_src>
import numpy as np

import jax
import jax.numpy as jnp
from jax.experimental import pallas as pl
from jax.experimental.pallas import tpu as pltpu

_NEG = -1e30  # max-pool pad value (pool input is post-ReLU >= 0, so this is exact)


# ------------------------------ in-kernel helpers ----------------------------

def _conv3x3_vpu(src, w, bias, cin, l_out, cw, relu):
    """Valid 3x3 conv on a flat row-canvas via VPU broadcast-FMAs (low Cin).

    src : (cin, >= l_out + 2*cw + 2) f32; pixel (i, j) lives at flat i*cw + j.
    w   : (cout, 9*cin) f32, column k = (di*3 + dj)*cin + c.
    bias: (cout, 1) f32.
    Returns (cout, l_out) f32 in the same canvas layout.
    """
    cout = w.shape[0]
    acc = jnp.zeros((cout, l_out), jnp.float32)
    for di in range(3):
        for dj in range(3):
            off = di * cw + dj
            for c in range(cin):
                k = (di * 3 + dj) * cin + c
                acc = acc + w[:, k:k + 1] * src[c:c + 1, off:off + l_out]
    acc = acc + bias
    return jnp.maximum(acc, 0.0) if relu else acc


def _conv3x3_mxu(src, w, bias, l_out, cw, relu):
    """Valid 3x3 conv as ONE MXU matmul over a stacked (9*cin, l_out) im2col value.

    src : (cin, >= l_out + 2*cw + 2) f32
    w   : (cout, 9*cin) already in the MXU dtype (bf16 by default, packed host-side)
    bias: (cout, 1) f32
    """
    src_m = src.astype(w.dtype)                      # single cast per layer (hoisted)
    taps = []
    for di in range(3):
        for dj in range(3):
            off = di * cw + dj
            taps.append(src_m[:, off:off + l_out])   # lane-shifted views
    col = jnp.concatenate(taps, axis=0)              # (9*cin, l_out), aligned rows
    acc = jnp.dot(w, col, preferred_element_type=jnp.float32) + bias
    return jnp.maximum(acc, 0.0) if relu else acc


def _lane_pad(x, target):
    """Zero-pad the lane (last) dim up to `target` so the store is lane-dense."""
    pad = target - x.shape[-1]
    if pad == 0:
        return x
    return jnp.concatenate([x, jnp.zeros((x.shape[0], pad), x.dtype)], axis=-1)


def _build_kernel(H, W, CW, enc_pad, dec_pad):
    h1, w1 = H - 2, W - 2          # after e1 / before d3
    h2, w2 = H - 4, W - 4          # after e2 / before d2
    h3, w3 = H - 6, W - 6          # after e3 (= encoded) / before d1
    L1 = (h1 - 1) * CW + w1
    L2 = (h2 - 1) * CW + w2
    L3 = (h3 - 1) * CW + w3
    Ldec = (H - 1) * CW + W
    pool_pad = CW + 1              # 1 row + 1 col  (MaxPool2d padding=1)
    conv_pad = 2 * CW + 2          # 2 rows + 2 cols (ConvTranspose zero-pad)

    def kernel(x_ref,
               we1, be1, we2, be2, we3, be3,
               wd1, bd1, wd2, bd2, wd3, bd3,
               m3_ref, ma1_ref, ma2_ref,
               enc_ref, dec_ref):
        # --------------------- encoder: conv3x3 + ReLU ------------------------
        a1 = _conv3x3_vpu(x_ref[...], we1[...], be1[...], 1, L1, CW, relu=True)
        a2 = _conv3x3_mxu(a1, we2[...], be2[...], L2, CW, relu=True)
        a3 = _conv3x3_mxu(a2, we3[...], be3[...], L3, CW, relu=True)

        # --------------- MaxPool2d(3, stride=1, padding=1) --------------------
        m3 = m3_ref[...] > 0.5                               # valid-column mask
        negs = jnp.full((a3.shape[0], pool_pad), _NEG, jnp.float32)
        pp = jnp.concatenate([negs, jnp.where(m3, a3, _NEG), negs], axis=-1)
        pooled = pp[:, 0:L3]
        for di in range(3):
            for dj in range(3):
                if di == 0 and dj == 0:
                    continue
                off = di * CW + dj
                pooled = jnp.maximum(pooled, pp[:, off:off + L3])
        enc_ref[...] = _lane_pad(pooled, enc_pad)            # lane-dense store

        # -------- decoder: ConvTranspose2d == zero-pad(2) + flipped conv ------
        zc = jnp.zeros((pooled.shape[0], conv_pad), jnp.float32)
        dp1 = jnp.concatenate([zc, jnp.where(m3, pooled, 0.0), zc], axis=-1)
        d1 = _conv3x3_vpu(dp1, wd1[...], bd1[...], 3, L2, CW, relu=True)

        ma1 = ma1_ref[...] > 0.5
        z1 = jnp.zeros((d1.shape[0], conv_pad), jnp.float32)
        dp2 = jnp.concatenate([z1, jnp.where(ma1, d1, 0.0), z1], axis=-1)
        d2 = _conv3x3_mxu(dp2, wd2[...], bd2[...], L1, CW, relu=True)

        ma2 = ma2_ref[...] > 0.5
        z2 = jnp.zeros((d2.shape[0], conv_pad), jnp.float32)
        dp3 = jnp.concatenate([z2, jnp.where(ma2, d2, 0.0), z2], axis=-1)
        dec = _conv3x3_mxu(dp3, wd3[...], bd3[...], Ldec, CW, relu=False)
        dec_ref[...] = _lane_pad(dec, dec_pad)               # lane-dense store

    dims = dict(L1=L1, L2=L2, L3=L3, Ldec=Ldec, h3=h3, w3=w3)
    return kernel, dims


# ------------------------------ host-side glue --------------------------------

def _pack_conv_w(w, dtype):
    # PyTorch Conv2d weight (Cout, Cin, 3, 3) -> (Cout, 9*Cin), k = (di*3+dj)*Cin + c
    cout, cin = w.shape[0], w.shape[1]
    return jnp.transpose(w, (0, 2, 3, 1)).reshape(cout, 9 * cin).astype(dtype)


def _pack_convT_w(w, dtype):
    # ConvTranspose2d weight (Cin, Cout, 3, 3); stride 1 / pad 0 equals a valid
    # conv of the 2-zero-padded input with the flipped, channel-swapped kernel.
    w_eq = jnp.flip(w, axis=(2, 3)).transpose(1, 0, 2, 3)     # (Cout, Cin, 3, 3)
    return _pack_conv_w(w_eq, dtype)


def _col_mask(length, valid_w, cw):
    col = np.arange(length) % cw
    return jnp.asarray((col < valid_w).astype(np.float32))[None, :]


def _round_up(x, m):
    return ((x + m - 1) // m) * m


def autoencoder_forward(x, params, mxu_dtype=jnp.bfloat16):
    N, cin, H, W = x.shape
    assert cin == 1
    CW = W + 2                                      # fixed row-canvas width

    h3, w3 = H - 6, W - 6
    enc_pad = _round_up(h3 * CW, 128)               # lane-dense output slabs
    dec_pad = _round_up(H * CW, 128)

    kernel, dm = _build_kernel(H, W, CW, enc_pad, dec_pad)
    L1, L2, L3 = dm['L1'], dm['L2'], dm['L3']

    # Canvas-embed the input; pack weights (bf16 for MXU layers, f32 for VPU layers).
    x_can = jnp.pad(x, ((0, 0), (0, 0), (0, 0), (0, CW - W))).reshape(N, 1, H * CW)
    we1 = _pack_conv_w(params['e1_w'], jnp.float32);  be1 = params['e1_b'].reshape(-1, 1)
    we2 = _pack_conv_w(params['e2_w'], mxu_dtype);    be2 = params['e2_b'].reshape(-1, 1)
    we3 = _pack_conv_w(params['e3_w'], mxu_dtype);    be3 = params['e3_b'].reshape(-1, 1)
    wd1 = _pack_convT_w(params['d1_w'], jnp.float32); bd1 = params['d1_b'].reshape(-1, 1)
    wd2 = _pack_convT_w(params['d2_w'], mxu_dtype);   bd2 = params['d2_b'].reshape(-1, 1)
    wd3 = _pack_convT_w(params['d3_w'], mxu_dtype);   bd3 = params['d3_b'].reshape(-1, 1)
    m3 = _col_mask(L3, W - 6, CW)                  # valid-column masks per canvas
    ma1 = _col_mask(L2, W - 4, CW)
    ma2 = _col_mask(L1, W - 2, CW)

    consts = (we1, be1, we2, be2, we3, be3, wd1, bd1, wd2, bd2, wd3, bd3,
              m3, ma1, ma2)
    ins = (x_can,) + consts

    def _full(a):
        return pl.BlockSpec(a.shape, lambda n: (0,) * a.ndim)

    in_specs = [pl.BlockSpec((None, 1, H * CW), lambda n: (n, 0, 0))]
    in_specs += [_full(a) for a in consts]
    out_specs = (pl.BlockSpec((None, 3, enc_pad), lambda n: (n, 0, 0)),
                 pl.BlockSpec((None, 1, dec_pad), lambda n: (n, 0, 0)))
    out_shape = (jax.ShapeDtypeStruct((N, 3, enc_pad), jnp.float32),
                 jax.ShapeDtypeStruct((N, 1, dec_pad), jnp.float32))

    layer_dims = [(1, 16, H - 2, W - 2), (16, 32, H - 4, W - 4),
                  (32, 3, H - 6, W - 6), (3, 32, H - 4, W - 4),
                  (32, 16, H - 2, W - 2), (16, 1, H, W)]
    flops = N * sum(2 * 9 * ci * co * ho * wo for ci, co, ho, wo in layer_dims)
    bytes_in = sum(int(np.prod(a.shape)) * a.dtype.itemsize for a in ins)
    bytes_out = N * (3 * enc_pad + dec_pad) * 4

    enc_can, dec_can = pl.pallas_call(
        kernel,
        grid=(N,),
        in_specs=in_specs,
        out_specs=out_specs,
        out_shape=out_shape,
        compiler_params=pltpu.CompilerParams(
            dimension_semantics=("parallel",),      # one grid step per TC on v7x
            vmem_limit_bytes=8 * 1024 * 1024),      # modest: live footprint << 1 MiB
        cost_estimate=pl.CostEstimate(flops=flops, transcendentals=0,
                                      bytes_accessed=bytes_in + bytes_out),
    )(*ins)

    # Unpack lane-padded canvases back to NCHW (tiny XLA slices/reshapes).
    enc = enc_can[:, :, :h3 * CW].reshape(N, 3, h3, CW)[:, :, :, :w3]
    dec = dec_can[:, :, :H * CW].reshape(N, 1, H, CW)[:, :, :, :W]
    return enc, dec


# ------------------------------ parameter init --------------------------------

def _init_conv(key, cout, cin, k):
    fan_in = cin * k * k
    bound = 1.0 / (fan_in ** 0.5)
    kw_, kb_ = jax.random.split(key)
    w = jax.random.uniform(kw_, (cout, cin, k, k), jnp.float32, -bound, bound)
    b = jax.random.uniform(kb_, (cout,), jnp.float32, -bound, bound)
    return w, b


def _init_convT(key, cin, cout, k):
    fan_in = cout * k * k   # PyTorch uses weight.size(1)*k*k for ConvTranspose2d
    bound = 1.0 / (fan_in ** 0.5)
    kw_, kb_ = jax.random.split(key)
    w = jax.random.uniform(kw_, (cin, cout, k, k), jnp.float32, -bound, bound)
    b = jax.random.uniform(kb_, (cout,), jnp.float32, -bound, bound)
    return w, b


def init_params(key):
    keys = jax.random.split(key, 6)
    p = {}
    p['e1_w'], p['e1_b'] = _init_conv(keys[0], 16, 1, 3)
    p['e2_w'], p['e2_b'] = _init_conv(keys[1], 32, 16, 3)
    p['e3_w'], p['e3_b'] = _init_conv(keys[2], 3, 32, 3)
    p['d1_w'], p['d1_b'] = _init_convT(keys[3], 3, 32, 3)
    p['d2_w'], p['d2_b'] = _init_convT(keys[4], 32, 16, 3)
    p['d3_w'], p['d3_b'] = _init_convT(keys[5], 16, 1, 3)
    return p


# ---------------------------------- main ---------------------------------------

if __name__ == "__main__":
    key = jax.random.PRNGKey(0)
    k_x, k_p = jax.random.split(key)
    x = jax.random.normal(k_x, (2, 1, 16, 16), dtype=jnp.float32)  # NCHW, 1 channel
    params = init_params(k_p)

    encoded, decoded = jax.jit(autoencoder_forward)(x, params)
    jax.block_until_ready((encoded, decoded))

    assert encoded.shape == (2, 3, 10, 10), encoded.shape
    assert decoded.shape == (2, 1, 16, 16), decoded.shape
    print("KERNEL_OK")
</pallas_src>

<mosaic_0001>
module attributes {stable_mosaic.version = 11 : i64} {
  func.func @kernel(%arg0: i32, %arg1: memref<1x1x288xf32, #tpu.memory_space<vmem>>, %arg2: memref<16x9xf32, #tpu.memory_space<vmem>>, %arg3: memref<16x1xf32, #tpu.memory_space<vmem>>, %arg4: memref<32x144xbf16, #tpu.memory_space<vmem>>, %arg5: memref<32x1xf32, #tpu.memory_space<vmem>>, %arg6: memref<3x288xbf16, #tpu.memory_space<vmem>>, %arg7: memref<3x1xf32, #tpu.memory_space<vmem>>, %arg8: memref<32x27xf32, #tpu.memory_space<vmem>>, %arg9: memref<32x1xf32, #tpu.memory_space<vmem>>, %arg10: memref<16x288xbf16, #tpu.memory_space<vmem>>, %arg11: memref<16x1xf32, #tpu.memory_space<vmem>>, %arg12: memref<1x144xbf16, #tpu.memory_space<vmem>>, %arg13: memref<1x1xf32, #tpu.memory_space<vmem>>, %arg14: memref<1x172xf32, #tpu.memory_space<vmem>>, %arg15: memref<1x210xf32, #tpu.memory_space<vmem>>, %arg16: memref<1x248xf32, #tpu.memory_space<vmem>>, %arg17: memref<1x3x256xf32, #tpu.memory_space<vmem>>, %arg18: memref<1x1x384xf32, #tpu.memory_space<vmem>>) attributes {dimension_semantics = [#tpu.dimension_semantics<parallel>], iteration_bounds = array<i64: 2>, scalar_prefetch = 0 : i64, scratch_operands = 0 : i64, tpu.core_type = #tpu.core_type<tc>, window_params = [{transform_indices = @transform_0, window_bounds = array<i64: 1, 1, 288>}, {pipeline_mode = #tpu.pipeline_mode<synchronous>, transform_indices = @transform_1, window_bounds = array<i64: 16, 9>}, {pipeline_mode = #tpu.pipeline_mode<synchronous>, transform_indices = @transform_2, window_bounds = array<i64: 16, 1>}, {pipeline_mode = #tpu.pipeline_mode<synchronous>, transform_indices = @transform_3, window_bounds = array<i64: 32, 144>}, {pipeline_mode = #tpu.pipeline_mode<synchronous>, transform_indices = @transform_4, window_bounds = array<i64: 32, 1>}, {pipeline_mode = #tpu.pipeline_mode<synchronous>, transform_indices = @transform_5, window_bounds = array<i64: 3, 288>}, {pipeline_mode = #tpu.pipeline_mode<synchronous>, transform_indices = @transform_6, window_bounds = array<i64: 3, 1>}, {pipeline_mode = #tpu.pipeline_mode<synchronous>, transform_indices = @transform_7, window_bounds = array<i64: 32, 27>}, {pipeline_mode = #tpu.pipeline_mode<synchronous>, transform_indices = @transform_8, window_bounds = array<i64: 32, 1>}, {pipeline_mode = #tpu.pipeline_mode<synchronous>, transform_indices = @transform_9, window_bounds = array<i64: 16, 288>}, {pipeline_mode = #tpu.pipeline_mode<synchronous>, transform_indices = @transform_10, window_bounds = array<i64: 16, 1>}, {pipeline_mode = #tpu.pipeline_mode<synchronous>, transform_indices = @transform_11, window_bounds = array<i64: 1, 144>}, {pipeline_mode = #tpu.pipeline_mode<synchronous>, transform_indices = @transform_12, window_bounds = array<i64: 1, 1>}, {pipeline_mode = #tpu.pipeline_mode<synchronous>, transform_indices = @transform_13, window_bounds = array<i64: 1, 172>}, {pipeline_mode = #tpu.pipeline_mode<synchronous>, transform_indices = @transform_14, window_bounds = array<i64: 1, 210>}, {pipeline_mode = #tpu.pipeline_mode<synchronous>, transform_indices = @transform_15, window_bounds = array<i64: 1, 248>}, {transform_indices = @transform_16, window_bounds = array<i64: 1, 3, 256>}, {transform_indices = @transform_17, window_bounds = array<i64: 1, 1, 384>}]} {
    %c0 = arith.constant 0 : index
    %c0_0 = arith.constant 0 : index
    %c0_1 = arith.constant 0 : index
    %0 = vector.load %arg1[%c0, %c0_0, %c0_1] : memref<1x1x288xf32, #tpu.memory_space<vmem>>, vector<1x1x288xf32>
    %1 = vector.shape_cast %0 : vector<1x1x288xf32> to vector<1x288xf32>
    %c0_2 = arith.constant 0 : index
    %c0_3 = arith.constant 0 : index
    %2 = vector.load %arg2[%c0_2, %c0_3] : memref<16x9xf32, #tpu.memory_space<vmem>>, vector<16x9xf32>
    %c0_4 = arith.constant 0 : index
    %c0_5 = arith.constant 0 : index
    %3 = vector.load %arg3[%c0_4, %c0_5] : memref<16x1xf32, #tpu.memory_space<vmem>>, vector<16x1xf32>
    %cst = arith.constant 0.000000e+00 : f32
    %4 = vector.broadcast %cst : f32 to vector<16x248xf32>
    %5 = vector.extract_strided_slice %2 {offsets = [0, 0], sizes = [16, 1], strides = [1, 1]} : vector<16x9xf32> to vector<16x1xf32>
    %6 = vector.extract_strided_slice %1 {offsets = [0, 0], sizes = [1, 248], strides = [1, 1]} : vector<1x288xf32> to vector<1x248xf32>
    %7 = vector.broadcast %5 : vector<16x1xf32> to vector<16x248xf32>
    %8 = vector.broadcast %6 : vector<1x248xf32> to vector<16x248xf32>
    %9 = arith.mulf %7, %8 : vector<16x248xf32>
    %10 = arith.addf %4, %9 : vector<16x248xf32>
    %11 = vector.extract_strided_slice %2 {offsets = [0, 1], sizes = [16, 1], strides = [1, 1]} : vector<16x9xf32> to vector<16x1xf32>
    %12 = vector.extract_strided_slice %1 {offsets = [0, 1], sizes = [1, 248], strides = [1, 1]} : vector<1x288xf32> to vector<1x248xf32>
    %13 = vector.broadcast %11 : vector<16x1xf32> to vector<16x248xf32>
    %14 = vector.broadcast %12 : vector<1x248xf32> to vector<16x248xf32>
    %15 = arith.mulf %13, %14 : vector<16x248xf32>
    %16 = arith.addf %10, %15 : vector<16x248xf32>
    %17 = vector.extract_strided_slice %2 {offsets = [0, 2], sizes = [16, 1], strides = [1, 1]} : vector<16x9xf32> to vector<16x1xf32>
    %18 = vector.extract_strided_slice %1 {offsets = [0, 2], sizes = [1, 248], strides = [1, 1]} : vector<1x288xf32> to vector<1x248xf32>
    %19 = vector.broadcast %17 : vector<16x1xf32> to vector<16x248xf32>
    %20 = vector.broadcast %18 : vector<1x248xf32> to vector<16x248xf32>
    %21 = arith.mulf %19, %20 : vector<16x248xf32>
    %22 = arith.addf %16, %21 : vector<16x248xf32>
    %23 = vector.extract_strided_slice %2 {offsets = [0, 3], sizes = [16, 1], strides = [1, 1]} : vector<16x9xf32> to vector<16x1xf32>
    %24 = vector.extract_strided_slice %1 {offsets = [0, 18], sizes = [1, 248], strides = [1, 1]} : vector<1x288xf32> to vector<1x248xf32>
    %25 = vector.broadcast %23 : vector<16x1xf32> to vector<16x248xf32>
    %26 = vector.broadcast %24 : vector<1x248xf32> to vector<16x248xf32>
    %27 = arith.mulf %25, %26 : vector<16x248xf32>
    %28 = arith.addf %22, %27 : vector<16x248xf32>
    %29 = vector.extract_strided_slice %2 {offsets = [0, 4], sizes = [16, 1], strides = [1, 1]} : vector<16x9xf32> to vector<16x1xf32>
    %30 = vector.extract_strided_slice %1 {offsets = [0, 19], sizes = [1, 248], strides = [1, 1]} : vector<1x288xf32> to vector<1x248xf32>
    %31 = vector.broadcast %29 : vector<16x1xf32> to vector<16x248xf32>
    %32 = vector.broadcast %30 : vector<1x248xf32> to vector<16x248xf32>
    %33 = arith.mulf %31, %32 : vector<16x248xf32>
    %34 = arith.addf %28, %33 : vector<16x248xf32>
    %35 = vector.extract_strided_slice %2 {offsets = [0, 5], sizes = [16, 1], strides = [1, 1]} : vector<16x9xf32> to vector<16x1xf32>
    %36 = vector.extract_strided_slice %1 {offsets = [0, 20], sizes = [1, 248], strides = [1, 1]} : vector<1x288xf32> to vector<1x248xf32>
    %37 = vector.broadcast %35 : vector<16x1xf32> to vector<16x248xf32>
    %38 = vector.broadcast %36 : vector<1x248xf32> to vector<16x248xf32>
    %39 = arith.mulf %37, %38 : vector<16x248xf32>
    %40 = arith.addf %34, %39 : vector<16x248xf32>
    %41 = vector.extract_strided_slice %2 {offsets = [0, 6], sizes = [16, 1], strides = [1, 1]} : vector<16x9xf32> to vector<16x1xf32>
    %42 = vector.extract_strided_slice %1 {offsets = [0, 36], sizes = [1, 248], strides = [1, 1]} : vector<1x288xf32> to vector<1x248xf32>
    %43 = vector.broadcast %41 : vector<16x1xf32> to vector<16x248xf32>
    %44 = vector.broadcast %42 : vector<1x248xf32> to vector<16x248xf32>
    %45 = arith.mulf %43, %44 : vector<16x248xf32>
    %46 = arith.addf %40, %45 : vector<16x248xf32>
    %47 = vector.extract_strided_slice %2 {offsets = [0, 7], sizes = [16, 1], strides = [1, 1]} : vector<16x9xf32> to vector<16x1xf32>
    %48 = vector.extract_strided_slice %1 {offsets = [0, 37], sizes = [1, 248], strides = [1, 1]} : vector<1x288xf32> to vector<1x248xf32>
    %49 = vector.broadcast %47 : vector<16x1xf32> to vector<16x248xf32>
    %50 = vector.broadcast %48 : vector<1x248xf32> to vector<16x248xf32>
    %51 = arith.mulf %49, %50 : vector<16x248xf32>
    %52 = arith.addf %46, %51 : vector<16x248xf32>
    %53 = vector.extract_strided_slice %2 {offsets = [0, 8], sizes = [16, 1], strides = [1, 1]} : vector<16x9xf32> to vector<16x1xf32>
    %54 = vector.extract_strided_slice %1 {offsets = [0, 38], sizes = [1, 248], strides = [1, 1]} : vector<1x288xf32> to vector<1x248xf32>
    %55 = vector.broadcast %53 : vector<16x1xf32> to vector<16x248xf32>
    %56 = vector.broadcast %54 : vector<1x248xf32> to vector<16x248xf32>
    %57 = arith.mulf %55, %56 : vector<16x248xf32>
    %58 = arith.addf %52, %57 : vector<16x248xf32>
    %59 = vector.broadcast %3 : vector<16x1xf32> to vector<16x248xf32>
    %60 = arith.addf %58, %59 : vector<16x248xf32>
    %cst_6 = arith.constant 0.000000e+00 : f32
    %61 = vector.broadcast %cst_6 : f32 to vector<16x248xf32>
    %62 = arith.maximumf %60, %61 : vector<16x248xf32>
    %c0_7 = arith.constant 0 : index
    %c0_8 = arith.constant 0 : index
    %63 = vector.load %arg4[%c0_7, %c0_8] : memref<32x144xbf16, #tpu.memory_space<vmem>>, vector<32x144xbf16>
    %c0_9 = arith.constant 0 : index
    %c0_10 = arith.constant 0 : index
    %64 = vector.load %arg5[%c0_9, %c0_10] : memref<32x1xf32, #tpu.memory_space<vmem>>, vector<32x1xf32>
    %65 = arith.truncf %62 : vector<16x248xf32> to vector<16x248xbf16>
    %66 = vector.extract_strided_slice %65 {offsets = [0, 0], sizes = [16, 210], strides = [1, 1]} : vector<16x248xbf16> to vector<16x210xbf16>
    %67 = vector.extract_strided_slice %65 {offsets = [0, 1], sizes = [16, 210], strides = [1, 1]} : vector<16x248xbf16> to vector<16x210xbf16>
    %68 = vector.extract_strided_slice %65 {offsets = [0, 2], sizes = [16, 210], strides = [1, 1]} : vector<16x248xbf16> to vector<16x210xbf16>
    %69 = vector.extract_strided_slice %65 {offsets = [0, 18], sizes = [16, 210], strides = [1, 1]} : vector<16x248xbf16> to vector<16x210xbf16>
    %70 = vector.extract_strided_slice %65 {offsets = [0, 19], sizes = [16, 210], strides = [1, 1]} : vector<16x248xbf16> to vector<16x210xbf16>
    %71 = vector.extract_strided_slice %65 {offsets = [0, 20], sizes = [16, 210], strides = [1, 1]} : vector<16x248xbf16> to vector<16x210xbf16>
    %72 = vector.extract_strided_slice %65 {offsets = [0, 36], sizes = [16, 210], strides = [1, 1]} : vector<16x248xbf16> to vector<16x210xbf16>
    %73 = vector.extract_strided_slice %65 {offsets = [0, 37], sizes = [16, 210], strides = [1, 1]} : vector<16x248xbf16> to vector<16x210xbf16>
    %74 = vector.extract_strided_slice %65 {offsets = [0, 38], sizes = [16, 210], strides = [1, 1]} : vector<16x248xbf16> to vector<16x210xbf16>
    %75 = tpu.concatenate %66, %67, %68, %69, %70, %71, %72, %73, %74 in 0 : vector<16x210xbf16>, vector<16x210xbf16>, vector<16x210xbf16>, vector<16x210xbf16>, vector<16x210xbf16>, vector<16x210xbf16>, vector<16x210xbf16>, vector<16x210xbf16>, vector<16x210xbf16> -> vector<144x210xbf16>
    %cst_11 = arith.constant dense<0.000000e+00> : vector<32x210xf32>
    %76 = tpu.matmul %63, %75, %cst_11 {dimension_numbers = #tpu.dot_dimension_numbers<[1], [0], [0], [1], [0, 0, 1, 1], [], []>} : vector<32x144xbf16>, vector<144x210xbf16>, vector<32x210xf32> -> vector<32x210xf32>
    %77 = vector.broadcast %64 : vector<32x1xf32> to vector<32x210xf32>
    %78 = arith.addf %76, %77 : vector<32x210xf32>
    %cst_12 = arith.constant 0.000000e+00 : f32
    %79 = vector.broadcast %cst_12 : f32 to vector<32x210xf32>
    %80 = arith.maximumf %78, %79 : vector<32x210xf32>
    %c0_13 = arith.constant 0 : index
    %c0_14 = arith.constant 0 : index
    %81 = vector.load %arg6[%c0_13, %c0_14] : memref<3x288xbf16, #tpu.memory_space<vmem>>, vector<3x288xbf16>
    %c0_15 = arith.constant 0 : index
    %c0_16 = arith.constant 0 : index
    %82 = vector.load %arg7[%c0_15, %c0_16] : memref<3x1xf32, #tpu.memory_space<vmem>>, vector<3x1xf32>
    %83 = arith.truncf %80 : vector<32x210xf32> to vector<32x210xbf16>
    %84 = vector.extract_strided_slice %83 {offsets = [0, 0], sizes = [32, 172], strides = [1, 1]} : vector<32x210xbf16> to vector<32x172xbf16>
    %85 = vector.extract_strided_slice %83 {offsets = [0, 1], sizes = [32, 172], strides = [1, 1]} : vector<32x210xbf16> to vector<32x172xbf16>
    %86 = vector.extract_strided_slice %83 {offsets = [0, 2], sizes = [32, 172], strides = [1, 1]} : vector<32x210xbf16> to vector<32x172xbf16>
    %87 = vector.extract_strided_slice %83 {offsets = [0, 18], sizes = [32, 172], strides = [1, 1]} : vector<32x210xbf16> to vector<32x172xbf16>
    %88 = vector.extract_strided_slice %83 {offsets = [0, 19], sizes = [32, 172], strides = [1, 1]} : vector<32x210xbf16> to vector<32x172xbf16>
    %89 = vector.extract_strided_slice %83 {offsets = [0, 20], sizes = [32, 172], strides = [1, 1]} : vector<32x210xbf16> to vector<32x172xbf16>
    %90 = vector.extract_strided_slice %83 {offsets = [0, 36], sizes = [32, 172], strides = [1, 1]} : vector<32x210xbf16> to vector<32x172xbf16>
    %91 = vector.extract_strided_slice %83 {offsets = [0, 37], sizes = [32, 172], strides = [1, 1]} : vector<32x210xbf16> to vector<32x172xbf16>
    %92 = vector.extract_strided_slice %83 {offsets = [0, 38], sizes = [32, 172], strides = [1, 1]} : vector<32x210xbf16> to vector<32x172xbf16>
    %93 = tpu.concatenate %84, %85, %86, %87, %88, %89, %90, %91, %92 in 0 : vector<32x172xbf16>, vector<32x172xbf16>, vector<32x172xbf16>, vector<32x172xbf16>, vector<32x172xbf16>, vector<32x172xbf16>, vector<32x172xbf16>, vector<32x172xbf16>, vector<32x172xbf16> -> vector<288x172xbf16>
    %cst_17 = arith.constant dense<0.000000e+00> : vector<3x172xf32>
    %94 = tpu.matmul %81, %93, %cst_17 {dimension_numbers = #tpu.dot_dimension_numbers<[1], [0], [0], [1], [0, 0, 1, 1], [], []>} : vector<3x288xbf16>, vector<288x172xbf16>, vector<3x172xf32> -> vector<3x172xf32>
    %95 = vector.broadcast %82 : vector<3x1xf32> to vector<3x172xf32>
    %96 = arith.addf %94, %95 : vector<3x172xf32>
    %cst_18 = arith.constant 0.000000e+00 : f32
    %97 = vector.broadcast %cst_18 : f32 to vector<3x172xf32>
    %98 = arith.maximumf %96, %97 : vector<3x172xf32>
    %c0_19 = arith.constant 0 : index
    %c0_20 = arith.constant 0 : index
    %99 = vector.load %arg14[%c0_19, %c0_20] : memref<1x172xf32, #tpu.memory_space<vmem>>, vector<1x172xf32>
    %cst_21 = arith.constant 5.000000e-01 : f32
    %100 = vector.broadcast %cst_21 : f32 to vector<1x172xf32>
    %101 = arith.cmpf ogt, %99, %100 : vector<1x172xf32>
    %cst_22 = arith.constant -1.000000e+30 : f32
    %102 = vector.broadcast %cst_22 : f32 to vector<3x19xf32>
    %cst_23 = arith.constant -1.000000e+30 : f32
    %103 = vector.shape_cast %101 : vector<1x172xi1> to vector<1x172xi1>
    %104 = vector.broadcast %103 : vector<1x172xi1> to vector<3x172xi1>
    %105 = vector.broadcast %cst_23 : f32 to vector<3x172xf32>
    %106 = arith.select %104, %98, %105 : vector<3x172xi1>, vector<3x172xf32>
    %107 = tpu.concatenate %102, %106, %102 in 1 : vector<3x19xf32>, vector<3x172xf32>, vector<3x19xf32> -> vector<3x210xf32>
    %108 = vector.extract_strided_slice %107 {offsets = [0, 0], sizes = [3, 172], strides = [1, 1]} : vector<3x210xf32> to vector<3x172xf32>
    %109 = vector.extract_strided_slice %107 {offsets = [0, 1], sizes = [3, 172], strides = [1, 1]} : vector<3x210xf32> to vector<3x172xf32>
    %110 = arith.maximumf %108, %109 : vector<3x172xf32>
    %111 = vector.extract_strided_slice %107 {offsets = [0, 2], sizes = [3, 172], strides = [1, 1]} : vector<3x210xf32> to vector<3x172xf32>
    %112 = arith.maximumf %110, %111 : vector<3x172xf32>
    %113 = vector.extract_strided_slice %107 {offsets = [0, 18], sizes = [3, 172], strides = [1, 1]} : vector<3x210xf32> to vector<3x172xf32>
    %114 = arith.maximumf %112, %113 : vector<3x172xf32>
    %115 = vector.extract_strided_slice %107 {offsets = [0, 19], sizes = [3, 172], strides = [1, 1]} : vector<3x210xf32> to vector<3x172xf32>
    %116 = arith.maximumf %114, %115 : vector<3x172xf32>
    %117 = vector.extract_strided_slice %107 {offsets = [0, 20], sizes = [3, 172], strides = [1, 1]} : vector<3x210xf32> to vector<3x172xf32>
    %118 = arith.maximumf %116, %117 : vector<3x172xf32>
    %119 = vector.extract_strided_slice %107 {offsets = [0, 36], sizes = [3, 172], strides = [1, 1]} : vector<3x210xf32> to vector<3x172xf32>
    %120 = arith.maximumf %118, %119 : vector<3x172xf32>
    %121 = vector.extract_strided_slice %107 {offsets = [0, 37], sizes = [3, 172], strides = [1, 1]} : vector<3x210xf32> to vector<3x172xf32>
    %122 = arith.maximumf %120, %121 : vector<3x172xf32>
    %123 = vector.extract_strided_slice %107 {offsets = [0, 38], sizes = [3, 172], strides = [1, 1]} : vector<3x210xf32> to vector<3x172xf32>
    %124 = arith.maximumf %122, %123 : vector<3x172xf32>
    %cst_24 = arith.constant 0.000000e+00 : f32
    %125 = vector.broadcast %cst_24 : f32 to vector<3x84xf32>
    %126 = tpu.concatenate %124, %125 in 1 : vector<3x172xf32>, vector<3x84xf32> -> vector<3x256xf32>
    %c0_25 = arith.constant 0 : index
    %c0_26 = arith.constant 0 : index
    %c0_27 = arith.constant 0 : index
    %127 = vector.load %arg17[%c0_25, %c0_26, %c0_27] : memref<1x3x256xf32, #tpu.memory_space<vmem>>, vector<1x3x256xf32>
    %128 = vector.shape_cast %127 : vector<1x3x256xf32> to vector<3x256xf32>
    %129 = vector.shape_cast %126 : vector<3x256xf32> to vector<1x3x256xf32>
    tpu.vector_store %arg17[%c0_25, %c0_26, %c0_27], %129 {strides = array<i32>} : memref<1x3x256xf32, #tpu.memory_space<vmem>>, vector<1x3x256xf32>,
    %cst_28 = arith.constant 0.000000e+00 : f32
    %130 = vector.broadcast %cst_28 : f32 to vector<3x38xf32>
    %cst_29 = arith.constant 0.000000e+00 : f32
    %131 = vector.shape_cast %101 : vector<1x172xi1> to vector<1x172xi1>
    %132 = vector.broadcast %131 : vector<1x172xi1> to vector<3x172xi1>
    %133 = vector.broadcast %cst_29 : f32 to vector<3x172xf32>
    %134 = arith.select %132, %124, %133 : vector<3x172xi1>, vector<3x172xf32>
    %135 = tpu.concatenate %130, %134, %130 in 1 : vector<3x38xf32>, vector<3x172xf32>, vector<3x38xf32> -> vector<3x248xf32>
    %c0_30 = arith.constant 0 : index
    %c0_31 = arith.constant 0 : index
    %136 = vector.load %arg8[%c0_30, %c0_31] : memref<32x27xf32, #tpu.memory_space<vmem>>, vector<32x27xf32>
    %c0_32 = arith.constant 0 : index
    %c0_33 = arith.constant 0 : index
    %137 = vector.load %arg9[%c0_32, %c0_33] : memref<32x1xf32, #tpu.memory_space<vmem>>, vector<32x1xf32>
    %cst_34 = arith.constant 0.000000e+00 : f32
    %138 = vector.broadcast %cst_34 : f32 to vector<32x210xf32>
    %139 = vector.extract_strided_slice %136 {offsets = [0, 0], sizes = [32, 1], strides = [1, 1]} : vector<32x27xf32> to vector<32x1xf32>
    %140 = vector.extract_strided_slice %135 {offsets = [0, 0], sizes = [1, 210], strides = [1, 1]} : vector<3x248xf32> to vector<1x210xf32>
    %141 = vector.broadcast %139 : vector<32x1xf32> to vector<32x210xf32>
    %142 = vector.broadcast %140 : vector<1x210xf32> to vector<32x210xf32>
    %143 = arith.mulf %141, %142 : vector<32x210xf32>
    %144 = arith.addf %138, %143 : vector<32x210xf32>
    %145 = vector.extract_strided_slice %136 {offsets = [0, 1], sizes = [32, 1], strides = [1, 1]} : vector<32x27xf32> to vector<32x1xf32>
    %146 = vector.extract_strided_slice %135 {offsets = [1, 0], sizes = [1, 210], strides = [1, 1]} : vector<3x248xf32> to vector<1x210xf32>
    %147 = vector.broadcast %145 : vector<32x1xf32> to vector<32x210xf32>
    %148 = vector.broadcast %146 : vector<1x210xf32> to vector<32x210xf32>
    %149 = arith.mulf %147, %148 : vector<32x210xf32>
    %150 = arith.addf %144, %149 : vector<32x210xf32>
    %151 = vector.extract_strided_slice %136 {offsets = [0, 2], sizes = [32, 1], strides = [1, 1]} : vector<32x27xf32> to vector<32x1xf32>
    %152 = vector.extract_strided_slice %135 {offsets = [2, 0], sizes = [1, 210], strides = [1, 1]} : vector<3x248xf32> to vector<1x210xf32>
    %153 = vector.broadcast %151 : vector<32x1xf32> to vector<32x210xf32>
    %154 = vector.broadcast %152 : vector<1x210xf32> to vector<32x210xf32>
    %155 = arith.mulf %153, %154 : vector<32x210xf32>
    %156 = arith.addf %150, %155 : vector<32x210xf32>
    %157 = vector.extract_strided_slice %136 {offsets = [0, 3], sizes = [32, 1], strides = [1, 1]} : vector<32x27xf32> to vector<32x1xf32>
    %158 = vector.extract_strided_slice %135 {offsets = [0, 1], sizes = [1, 210], strides = [1, 1]} : vector<3x248xf32> to vector<1x210xf32>
    %159 = vector.broadcast %157 : vector<32x1xf32> to vector<32x210xf32>
    %160 = vector.broadcast %158 : vector<1x210xf32> to vector<32x210xf32>
    %161 = arith.mulf %159, %160 : vector<32x210xf32>
    %162 = arith.addf %156, %161 : vector<32x210xf32>
    %163 = vector.extract_strided_slice %136 {offsets = [0, 4], sizes = [32, 1], strides = [1, 1]} : vector<32x27xf32> to vector<32x1xf32>
    %164 = vector.extract_strided_slice %135 {offsets = [1, 1], sizes = [1, 210], strides = [1, 1]} : vector<3x248xf32> to vector<1x210xf32>
    %165 = vector.broadcast %163 : vector<32x1xf32> to vector<32x210xf32>
    %166 = vector.broadcast %164 : vector<1x210xf32> to vector<32x210xf32>
    %167 = arith.mulf %165, %166 : vector<32x210xf32>
    %168 = arith.addf %162, %167 : vector<32x210xf32>
    %169 = vector.extract_strided_slice %136 {offsets = [0, 5], sizes = [32, 1], strides = [1, 1]} : vector<32x27xf32> to vector<32x1xf32>
    %170 = vector.extract_strided_slice %135 {offsets = [2, 1], sizes = [1, 210], strides = [1, 1]} : vector<3x248xf32> to vector<1x210xf32>
    %171 = vector.broadcast %169 : vector<32x1xf32> to vector<32x210xf32>
    %172 = vector.broadcast %170 : vector<1x210xf32> to vector<32x210xf32>
    %173 = arith.mulf %171, %172 : vector<32x210xf32>
    %174 = arith.addf %168, %173 : vector<32x210xf32>
    %175 = vector.extract_strided_slice %136 {offsets = [0, 6], sizes = [32, 1], strides = [1, 1]} : vector<32x27xf32> to vector<32x1xf32>
    %176 = vector.extract_strided_slice %135 {offsets = [0, 2], sizes = [1, 210], strides = [1, 1]} : vector<3x248xf32> to vector<1x210xf32>
    %177 = vector.broadcast %175 : vector<32x1xf32> to vector<32x210xf32>
    %178 = vector.broadcast %176 : vector<1x210xf32> to vector<32x210xf32>
    %179 = arith.mulf %177, %178 : vector<32x210xf32>
    %180 = arith.addf %174, %179 : vector<32x210xf32>
    %181 = vector.extract_strided_slice %136 {offsets = [0, 7], sizes = [32, 1], strides = [1, 1]} : vector<32x27xf32> to vector<32x1xf32>
    %182 = vector.extract_strided_slice %135 {offsets = [1, 2], sizes = [1, 210], strides = [1, 1]} : vector<3x248xf32> to vector<1x210xf32>
    %183 = vector.broadcast %181 : vector<32x1xf32> to vector<32x210xf32>
    %184 = vector.broadcast %182 : vector<1x210xf32> to vector<32x210xf32>
    %185 = arith.mulf %183, %184 : vector<32x210xf32>
    %186 = arith.addf %180, %185 : vector<32x210xf32>
    %187 = vector.extract_strided_slice %136 {offsets = [0, 8], sizes = [32, 1], strides = [1, 1]} : vector<32x27xf32> to vector<32x1xf32>
    %188 = vector.extract_strided_slice %135 {offsets = [2, 2], sizes = [1, 210], strides = [1, 1]} : vector<3x248xf32> to vector<1x210xf32>
    %189 = vector.broadcast %187 : vector<32x1xf32> to vector<32x210xf32>
    %190 = vector.broadcast %188 : vector<1x210xf32> to vector<32x210xf32>
    %191 = arith.mulf %189, %190 : vector<32x210xf32>
    %192 = arith.addf %186, %191 : vector<32x210xf32>
    %193 = vector.extract_strided_slice %136 {offsets = [0, 9], sizes = [32, 1], strides = [1, 1]} : vector<32x27xf32> to vector<32x1xf32>
    %194 = vector.extract_strided_slice %135 {offsets = [0, 18], sizes = [1, 210], strides = [1, 1]} : vector<3x248xf32> to vector<1x210xf32>
    %195 = vector.broadcast %193 : vector<32x1xf32> to vector<32x210xf32>
    %196 = vector.broadcast %194 : vector<1x210xf32> to vector<32x210xf32>
    %197 = arith.mulf %195, %196 : vector<32x210xf32>
    %198 = arith.addf %192, %197 : vector<32x210xf32>
    %199 = vector.extract_strided_slice %136 {offsets = [0, 10], sizes = [32, 1], strides = [1, 1]} : vector<32x27xf32> to vector<32x1xf32>
    %200 = vector.extract_strided_slice %135 {offsets = [1, 18], sizes = [1, 210], strides = [1, 1]} : vector<3x248xf32> to vector<1x210xf32>
    %201 = vector.broadcast %199 : vector<32x1xf32> to vector<32x210xf32>
    %202 = vector.broadcast %200 : vector<1x210xf32> to vector<32x210xf32>
    %203 = arith.mulf %201, %202 : vector<32x210xf32>
    %204 = arith.addf %198, %203 : vector<32x210xf32>
    %205 = vector.extract_strided_slice %136 {offsets = [0, 11], sizes = [32, 1], strides = [1, 1]} : vector<32x27xf32> to vector<32x1xf32>
    %206 = vector.extract_strided_slice %135 {offsets = [2, 18], sizes = [1, 210], strides = [1, 1]} : vector<3x248xf32> to vector<1x210xf32>
    %207 = vector.broadcast %205 : vector<32x1xf32> to vector<32x210xf32>
    %208 = vector.broadcast %206 : vector<1x210xf32> to vector<32x210xf32>
    %209 = arith.mulf %207, %208 : vector<32x210xf32>
    %210 = arith.addf %204, %209 : vector<32x210xf32>
    %211 = vector.extract_strided_slice %136 {offsets = [0, 12], sizes = [32, 1], strides = [1, 1]} : vector<32x27xf32> to vector<32x1xf32>
    %212 = vector.extract_strided_slice %135 {offsets = [0, 19], sizes = [1, 210], strides = [1, 1]} : vector<3x248xf32> to vector<1x210xf32>
    %213 = vector.broadcast %211 : vector<32x1xf32> to vector<32x210xf32>
    %214 = vector.broadcast %212 : vector<1x210xf32> to vector<32x210xf32>
    %215 = arith.mulf %213, %214 : vector<32x210xf32>
    %216 = arith.addf %210, %215 : vector<32x210xf32>
    %217 = vector.extract_strided_slice %136 {offsets = [0, 13], sizes = [32, 1], strides = [1, 1]} : vector<32x27xf32> to vector<32x1xf32>
    %218 = vector.extract_strided_slice %135 {offsets = [1, 19], sizes = [1, 210], strides = [1, 1]} : vector<3x248xf32> to vector<1x210xf32>
    %219 = vector.broadcast %217 : vector<32x1xf32> to vector<32x210xf32>
    %220 = vector.broadcast %218 : vector<1x210xf32> to vector<32x210xf32>
    %221 = arith.mulf %219, %220 : vector<32x210xf32>
    %222 = arith.addf %216, %221 : vector<32x210xf32>
    %223 = vector.extract_strided_slice %136 {offsets = [0, 14], sizes = [32, 1], strides = [1, 1]} : vector<32x27xf32> to vector<32x1xf32>
    %224 = vector.extract_strided_slice %135 {offsets = [2, 19], sizes = [1, 210], strides = [1, 1]} : vector<3x248xf32> to vector<1x210xf32>
    %225 = vector.broadcast %223 : vector<32x1xf32> to vector<32x210xf32>
    %226 = vector.broadcast %224 : vector<1x210xf32> to vector<32x210xf32>
    %227 = arith.mulf %225, %226 : vector<32x210xf32>
    %228 = arith.addf %222, %227 : vector<32x210xf32>
    %229 = vector.extract_strided_slice %136 {offsets = [0, 15], sizes = [32, 1], strides = [1, 1]} : vector<32x27xf32> to vector<32x1xf32>
    %230 = vector.extract_strided_slice %135 {offsets = [0, 20], sizes = [1, 210], strides = [1, 1]} : vector<3x248xf32> to vector<1x210xf32>
    %231 = vector.broadcast %229 : vector<32x1xf32> to vector<32x210xf32>
    %232 = vector.broadcast %230 : vector<1x210xf32> to vector<32x210xf32>
    %233 = arith.mulf %231, %232 : vector<32x210xf32>
    %234 = arith.addf %228, %233 : vector<32x210xf32>
    %235 = vector.extract_strided_slice %136 {offsets = [0, 16], sizes = [32, 1], strides = [1, 1]} : vector<32x27xf32> to vector<32x1xf32>
    %236 = vector.extract_strided_slice %135 {offsets = [1, 20], sizes = [1, 210], strides = [1, 1]} : vector<3x248xf32> to vector<1x210xf32>
    %237 = vector.broadcast %235 : vector<32x1xf32> to vector<32x210xf32>
    %238 = vector.broadcast %236 : vector<1x210xf32> to vector<32x210xf32>
    %239 = arith.mulf %237, %238 : vector<32x210xf32>
    %240 = arith.addf %234, %239 : vector<32x210xf32>
    %241 = vector.extract_strided_slice %136 {offsets = [0, 17], sizes = [32, 1], strides = [1, 1]} : vector<32x27xf32> to vector<32x1xf32>
    %242 = vector.extract_strided_slice %135 {offsets = [2, 20], sizes = [1, 210], strides = [1, 1]} : vector<3x248xf32> to vector<1x210xf32>
    %243 = vector.broadcast %241 : vector<32x1xf32> to vector<32x210xf32>
    %244 = vector.broadcast %242 : vector<1x210xf32> to vector<32x210xf32>
    %245 = arith.mulf %243, %244 : vector<32x210xf32>
    %246 = arith.addf %240, %245 : vector<32x210xf32>
    %247 = vector.extract_strided_slice %136 {offsets = [0, 18], sizes = [32, 1], strides = [1, 1]} : vector<32x27xf32> to vector<32x1xf32>
    %248 = vector.extract_strided_slice %135 {offsets = [0, 36], sizes = [1, 210], strides = [1, 1]} : vector<3x248xf32> to vector<1x210xf32>
    %249 = vector.broadcast %247 : vector<32x1xf32> to vector<32x210xf32>
    %250 = vector.broadcast %248 : vector<1x210xf32> to vector<32x210xf32>
    %251 = arith.mulf %249, %250 : vector<32x210xf32>
    %252 = arith.addf %246, %251 : vector<32x210xf32>
    %253 = vector.extract_strided_slice %136 {offsets = [0, 19], sizes = [32, 1], strides = [1, 1]} : vector<32x27xf32> to vector<32x1xf32>
    %254 = vector.extract_strided_slice %135 {offsets = [1, 36], sizes = [1, 210], strides = [1, 1]} : vector<3x248xf32> to vector<1x210xf32>
    %255 = vector.broadcast %253 : vector<32x1xf32> to vector<32x210xf32>
    %256 = vector.broadcast %254 : vector<1x210xf32> to vector<32x210xf32>
    %257 = arith.mulf %255, %256 : vector<32x210xf32>
    %258 = arith.addf %252, %257 : vector<32x210xf32>
    %259 = vector.extract_strided_slice %136 {offsets = [0, 20], sizes = [32, 1], strides = [1, 1]} : vector<32x27xf32> to vector<32x1xf32>
    %260 = vector.extract_strided_slice %135 {offsets = [2, 36], sizes = [1, 210], strides = [1, 1]} : vector<3x248xf32> to vector<1x210xf32>
    %261 = vector.broadcast %259 : vector<32x1xf32> to vector<32x210xf32>
    %262 = vector.broadcast %260 : vector<1x210xf32> to vector<32x210xf32>
    %263 = arith.mulf %261, %262 : vector<32x210xf32>
    %264 = arith.addf %258, %263 : vector<32x210xf32>
    %265 = vector.extract_strided_slice %136 {offsets = [0, 21], sizes = [32, 1], strides = [1, 1]} : vector<32x27xf32> to vector<32x1xf32>
    %266 = vector.extract_strided_slice %135 {offsets = [0, 37], sizes = [1, 210], strides = [1, 1]} : vector<3x248xf32> to vector<1x210xf32>
    %267 = vector.broadcast %265 : vector<32x1xf32> to vector<32x210xf32>
    %268 = vector.broadcast %266 : vector<1x210xf32> to vector<32x210xf32>
    %269 = arith.mulf %267, %268 : vector<32x210xf32>
    %270 = arith.addf %264, %269 : vector<32x210xf32>
    %271 = vector.extract_strided_slice %136 {offsets = [0, 22], sizes = [32, 1], strides = [1, 1]} : vector<32x27xf32> to vector<32x1xf32>
    %272 = vector.extract_strided_slice %135 {offsets = [1, 37], sizes = [1, 210], strides = [1, 1]} : vector<3x248xf32> to vector<1x210xf32>
    %273 = vector.broadcast %271 : vector<32x1xf32> to vector<32x210xf32>
    %274 = vector.broadcast %272 : vector<1x210xf32> to vector<32x210xf32>
    %275 = arith.mulf %273, %274 : vector<32x210xf32>
    %276 = arith.addf %270, %275 : vector<32x210xf32>
    %277 = vector.extract_strided_slice %136 {offsets = [0, 23], sizes = [32, 1], strides = [1, 1]} : vector<32x27xf32> to vector<32x1xf32>
    %278 = vector.extract_strided_slice %135 {offsets = [2, 37], sizes = [1, 210], strides = [1, 1]} : vector<3x248xf32> to vector<1x210xf32>
    %279 = vector.broadcast %277 : vector<32x1xf32> to vector<32x210xf32>
    %280 = vector.broadcast %278 : vector<1x210xf32> to vector<32x210xf32>
    %281 = arith.mulf %279, %280 : vector<32x210xf32>
    %282 = arith.addf %276, %281 : vector<32x210xf32>
    %283 = vector.extract_strided_slice %136 {offsets = [0, 24], sizes = [32, 1], strides = [1, 1]} : vector<32x27xf32> to vector<32x1xf32>
    %284 = vector.extract_strided_slice %135 {offsets = [0, 38], sizes = [1, 210], strides = [1, 1]} : vector<3x248xf32> to vector<1x210xf32>
    %285 = vector.broadcast %283 : vector<32x1xf32> to vector<32x210xf32>
    %286 = vector.broadcast %284 : vector<1x210xf32> to vector<32x210xf32>
    %287 = arith.mulf %285, %286 : vector<32x210xf32>
    %288 = arith.addf %282, %287 : vector<32x210xf32>
    %289 = vector.extract_strided_slice %136 {offsets = [0, 25], sizes = [32, 1], strides = [1, 1]} : vector<32x27xf32> to vector<32x1xf32>
    %290 = vector.extract_strided_slice %135 {offsets = [1, 38], sizes = [1, 210], strides = [1, 1]} : vector<3x248xf32> to vector<1x210xf32>
    %291 = vector.broadcast %289 : vector<32x1xf32> to vector<32x210xf32>
    %292 = vector.broadcast %290 : vector<1x210xf32> to vector<32x210xf32>
    %293 = arith.mulf %291, %292 : vector<32x210xf32>
    %294 = arith.addf %288, %293 : vector<32x210xf32>
    %295 = vector.extract_strided_slice %136 {offsets = [0, 26], sizes = [32, 1], strides = [1, 1]} : vector<32x27xf32> to vector<32x1xf32>
    %296 = vector.extract_strided_slice %135 {offsets = [2, 38], sizes = [1, 210], strides = [1, 1]} : vector<3x248xf32> to vector<1x210xf32>
    %297 = vector.broadcast %295 : vector<32x1xf32> to vector<32x210xf32>
    %298 = vector.broadcast %296 : vector<1x210xf32> to vector<32x210xf32>
    %299 = arith.mulf %297, %298 : vector<32x210xf32>
    %300 = arith.addf %294, %299 : vector<32x210xf32>
    %301 = vector.broadcast %137 : vector<32x1xf32> to vector<32x210xf32>
    %302 = arith.addf %300, %301 : vector<32x210xf32>
    %cst_35 = arith.constant 0.000000e+00 : f32
    %303 = vector.broadcast %cst_35 : f32 to vector<32x210xf32>
    %304 = arith.maximumf %302, %303 : vector<32x210xf32>
    %c0_36 = arith.constant 0 : index
    %c0_37 = arith.constant 0 : index
    %305 = vector.load %arg15[%c0_36, %c0_37] : memref<1x210xf32, #tpu.memory_space<vmem>>, vector<1x210xf32>
    %cst_38 = arith.constant 5.000000e-01 : f32
    %306 = vector.broadcast %cst_38 : f32 to vector<1x210xf32>
    %307 = arith.cmpf ogt, %305, %306 : vector<1x210xf32>
    %cst_39 = arith.constant 0.000000e+00 : f32
    %308 = vector.broadcast %cst_39 : f32 to vector<32x38xf32>
    %cst_40 = arith.constant 0.000000e+00 : f32
    %309 = vector.shape_cast %307 : vector<1x210xi1> to vector<1x210xi1>
    %310 = vector.broadcast %309 : vector<1x210xi1> to vector<32x210xi1>
    %311 = vector.broadcast %cst_40 : f32 to vector<32x210xf32>
    %312 = arith.select %310, %304, %311 : vector<32x210xi1>, vector<32x210xf32>
    %313 = tpu.concatenate %308, %312, %308 in 1 : vector<32x38xf32>, vector<32x210xf32>, vector<32x38xf32> -> vector<32x286xf32>
    %c0_41 = arith.constant 0 : index
    %c0_42 = arith.constant 0 : index
    %314 = vector.load %arg10[%c0_41, %c0_42] : memref<16x288xbf16, #tpu.memory_space<vmem>>, vector<16x288xbf16>
    %c0_43 = arith.constant 0 : index
    %c0_44 = arith.constant 0 : index
    %315 = vector.load %arg11[%c0_43, %c0_44] : memref<16x1xf32, #tpu.memory_space<vmem>>, vector<16x1xf32>
    %316 = arith.truncf %313 : vector<32x286xf32> to vector<32x286xbf16>
    %317 = vector.extract_strided_slice %316 {offsets = [0, 0], sizes = [32, 248], strides = [1, 1]} : vector<32x286xbf16> to vector<32x248xbf16>
    %318 = vector.extract_strided_slice %316 {offsets = [0, 1], sizes = [32, 248], strides = [1, 1]} : vector<32x286xbf16> to vector<32x248xbf16>
    %319 = vector.extract_strided_slice %316 {offsets = [0, 2], sizes = [32, 248], strides = [1, 1]} : vector<32x286xbf16> to vector<32x248xbf16>
    %320 = vector.extract_strided_slice %316 {offsets = [0, 18], sizes = [32, 248], strides = [1, 1]} : vector<32x286xbf16> to vector<32x248xbf16>
    %321 = vector.extract_strided_slice %316 {offsets = [0, 19], sizes = [32, 248], strides = [1, 1]} : vector<32x286xbf16> to vector<32x248xbf16>
    %322 = vector.extract_strided_slice %316 {offsets = [0, 20], sizes = [32, 248], strides = [1, 1]} : vector<32x286xbf16> to vector<32x248xbf16>
    %323 = vector.extract_strided_slice %316 {offsets = [0, 36], sizes = [32, 248], strides = [1, 1]} : vector<32x286xbf16> to vector<32x248xbf16>
    %324 = vector.extract_strided_slice %316 {offsets = [0, 37], sizes = [32, 248], strides = [1, 1]} : vector<32x286xbf16> to vector<32x248xbf16>
    %325 = vector.extract_strided_slice %316 {offsets = [0, 38], sizes = [32, 248], strides = [1, 1]} : vector<32x286xbf16> to vector<32x248xbf16>
    %326 = tpu.concatenate %317, %318, %319, %320, %321, %322, %323, %324, %325 in 0 : vector<32x248xbf16>, vector<32x248xbf16>, vector<32x248xbf16>, vector<32x248xbf16>, vector<32x248xbf16>, vector<32x248xbf16>, vector<32x248xbf16>, vector<32x248xbf16>, vector<32x248xbf16> -> vector<288x248xbf16>
    %cst_45 = arith.constant dense<0.000000e+00> : vector<16x248xf32>
    %327 = tpu.matmul %314, %326, %cst_45 {dimension_numbers = #tpu.dot_dimension_numbers<[1], [0], [0], [1], [0, 0, 1, 1], [], []>} : vector<16x288xbf16>, vector<288x248xbf16>, vector<16x248xf32> -> vector<16x248xf32>
    %328 = vector.broadcast %315 : vector<16x1xf32> to vector<16x248xf32>
    %329 = arith.addf %327, %328 : vector<16x248xf32>
    %cst_46 = arith.constant 0.000000e+00 : f32
    %330 = vector.broadcast %cst_46 : f32 to vector<16x248xf32>
    %331 = arith.maximumf %329, %330 : vector<16x248xf32>
    %c0_47 = arith.constant 0 : index
    %c0_48 = arith.constant 0 : index
    %332 = vector.load %arg16[%c0_47, %c0_48] : memref<1x248xf32, #tpu.memory_space<vmem>>, vector<1x248xf32>
    %cst_49 = arith.constant 5.000000e-01 : f32
    %333 = vector.broadcast %cst_49 : f32 to vector<1x248xf32>
    %334 = arith.cmpf ogt, %332, %333 : vector<1x248xf32>
    %cst_50 = arith.constant 0.000000e+00 : f32
    %335 = vector.broadcast %cst_50 : f32 to vector<16x38xf32>
    %cst_51 = arith.constant 0.000000e+00 : f32
    %336 = vector.shape_cast %334 : vector<1x248xi1> to vector<1x248xi1>
    %337 = vector.broadcast %336 : vector<1x248xi1> to vector<16x248xi1>
    %338 = vector.broadcast %cst_51 : f32 to vector<16x248xf32>
    %339 = arith.select %337, %331, %338 : vector<16x248xi1>, vector<16x248xf32>
    %340 = tpu.concatenate %335, %339, %335 in 1 : vector<16x38xf32>, vector<16x248xf32>, vector<16x38xf32> -> vector<16x324xf32>
    %c0_52 = arith.constant 0 : index
    %c0_53 = arith.constant 0 : index
    %341 = vector.load %arg12[%c0_52, %c0_53] : memref<1x144xbf16, #tpu.memory_space<vmem>>, vector<1x144xbf16>
    %c0_54 = arith.constant 0 : index
    %c0_55 = arith.constant 0 : index
    %342 = vector.load %arg13[%c0_54, %c0_55] : memref<1x1xf32, #tpu.memory_space<vmem>>, vector<1x1xf32>
    %343 = arith.truncf %340 : vector<16x324xf32> to vector<16x324xbf16>
    %344 = vector.extract_strided_slice %343 {offsets = [0, 0], sizes = [16, 286], strides = [1, 1]} : vector<16x324xbf16> to vector<16x286xbf16>
    %345 = vector.extract_strided_slice %343 {offsets = [0, 1], sizes = [16, 286], strides = [1, 1]} : vector<16x324xbf16> to vector<16x286xbf16>
    %346 = vector.extract_strided_slice %343 {offsets = [0, 2], sizes = [16, 286], strides = [1, 1]} : vector<16x324xbf16> to vector<16x286xbf16>
    %347 = vector.extract_strided_slice %343 {offsets = [0, 18], sizes = [16, 286], strides = [1, 1]} : vector<16x324xbf16> to vector<16x286xbf16>
    %348 = vector.extract_strided_slice %343 {offsets = [0, 19], sizes = [16, 286], strides = [1, 1]} : vector<16x324xbf16> to vector<16x286xbf16>
    %349 = vector.extract_strided_slice %343 {offsets = [0, 20], sizes = [16, 286], strides = [1, 1]} : vector<16x324xbf16> to vector<16x286xbf16>
    %350 = vector.extract_strided_slice %343 {offsets = [0, 36], sizes = [16, 286], strides = [1, 1]} : vector<16x324xbf16> to vector<16x286xbf16>
    %351 = vector.extract_strided_slice %343 {offsets = [0, 37], sizes = [16, 286], strides = [1, 1]} : vector<16x324xbf16> to vector<16x286xbf16>
    %352 = vector.extract_strided_slice %343 {offsets = [0, 38], sizes = [16, 286], strides = [1, 1]} : vector<16x324xbf16> to vector<16x286xbf16>
    %353 = tpu.concatenate %344, %345, %346, %347, %348, %349, %350, %351, %352 in 0 : vector<16x286xbf16>, vector<16x286xbf16>, vector<16x286xbf16>, vector<16x286xbf16>, vector<16x286xbf16>, vector<16x286xbf16>, vector<16x286xbf16>, vector<16x286xbf16>, vector<16x286xbf16> -> vector<144x286xbf16>
    %cst_56 = arith.constant dense<0.000000e+00> : vector<1x286xf32>
    %354 = tpu.matmul %341, %353, %cst_56 {dimension_numbers = #tpu.dot_dimension_numbers<[1], [0], [0], [1], [0, 0, 1, 1], [], []>} : vector<1x144xbf16>, vector<144x286xbf16>, vector<1x286xf32> -> vector<1x286xf32>
    %355 = vector.broadcast %342 : vector<1x1xf32> to vector<1x286xf32>
    %356 = arith.addf %354, %355 : vector<1x286xf32>
    %cst_57 = arith.constant 0.000000e+00 : f32
    %357 = vector.broadcast %cst_57 : f32 to vector<1x98xf32>
    %358 = tpu.concatenate %356, %357 in 1 : vector<1x286xf32>, vector<1x98xf32> -> vector<1x384xf32>
    %c0_58 = arith.constant 0 : index
    %c0_59 = arith.constant 0 : index
    %c0_60 = arith.constant 0 : index
    %359 = vector.load %arg18[%c0_58, %c0_59, %c0_60] : memref<1x1x384xf32, #tpu.memory_space<vmem>>, vector<1x1x384xf32>
    %360 = vector.shape_cast %359 : vector<1x1x384xf32> to vector<1x384xf32>
    %361 = vector.shape_cast %358 : vector<1x384xf32> to vector<1x1x384xf32>
    tpu.vector_store %arg18[%c0_58, %c0_59, %c0_60], %361 {strides = array<i32>} : memref<1x1x384xf32, #tpu.memory_space<vmem>>, vector<1x1x384xf32>,
    return
  }
  func.func @transform_0(%arg0: i32) -> (i32, i32, i32) {
    %c0_i32 = arith.constant 0 : i32
    %c0_i32_0 = arith.constant 0 : i32
    %c0_i32_1 = arith.constant 0 : i32
    return %arg0, %c0_i32, %c0_i32_0 : i32, i32, i32
  }
  func.func @transform_1(%arg0: i32) -> (i32, i32) {
    %c0_i32 = arith.constant 0 : i32
    %c0_i32_0 = arith.constant 0 : i32
    %c0_i32_1 = arith.constant 0 : i32
    return %c0_i32, %c0_i32_0 : i32, i32
  }
  func.func @transform_2(%arg0: i32) -> (i32, i32) {
    %c0_i32 = arith.constant 0 : i32
    %c0_i32_0 = arith.constant 0 : i32
    %c0_i32_1 = arith.constant 0 : i32
    return %c0_i32, %c0_i32_0 : i32, i32
  }
  func.func @transform_3(%arg0: i32) -> (i32, i32) {
    %c0_i32 = arith.constant 0 : i32
    %c0_i32_0 = arith.constant 0 : i32
    %c0_i32_1 = arith.constant 0 : i32
    return %c0_i32, %c0_i32_0 : i32, i32
  }
  func.func @transform_4(%arg0: i32) -> (i32, i32) {
    %c0_i32 = arith.constant 0 : i32
    %c0_i32_0 = arith.constant 0 : i32
    %c0_i32_1 = arith.constant 0 : i32
    return %c0_i32, %c0_i32_0 : i32, i32
  }
  func.func @transform_5(%arg0: i32) -> (i32, i32) {
    %c0_i32 = arith.constant 0 : i32
    %c0_i32_0 = arith.constant 0 : i32
    %c0_i32_1 = arith.constant 0 : i32
    return %c0_i32, %c0_i32_0 : i32, i32
  }
  func.func @transform_6(%arg0: i32) -> (i32, i32) {
    %c0_i32 = arith.constant 0 : i32
    %c0_i32_0 = arith.constant 0 : i32
    %c0_i32_1 = arith.constant 0 : i32
    return %c0_i32, %c0_i32_0 : i32, i32
  }
  func.func @transform_7(%arg0: i32) -> (i32, i32) {
    %c0_i32 = arith.constant 0 : i32
    %c0_i32_0 = arith.constant 0 : i32
    %c0_i32_1 = arith.constant 0 : i32
    return %c0_i32, %c0_i32_0 : i32, i32
  }
  func.func @transform_8(%arg0: i32) -> (i32, i32) {
    %c0_i32 = arith.constant 0 : i32
    %c0_i32_0 = arith.constant 0 : i32
    %c0_i32_1 = arith.constant 0 : i32
    return %c0_i32, %c0_i32_0 : i32, i32
  }
  func.func @transform_9(%arg0: i32) -> (i32, i32) {
    %c0_i32 = arith.constant 0 : i32
    %c0_i32_0 = arith.constant 0 : i32
    %c0_i32_1 = arith.constant 0 : i32
    return %c0_i32, %c0_i32_0 : i32, i32
  }
  func.func @transform_10(%arg0: i32) -> (i32, i32) {
    %c0_i32 = arith.constant 0 : i32
    %c0_i32_0 = arith.constant 0 : i32
    %c0_i32_1 = arith.constant 0 : i32
    return %c0_i32, %c0_i32_0 : i32, i32
  }
  func.func @transform_11(%arg0: i32) -> (i32, i32) {
    %c0_i32 = arith.constant 0 : i32
    %c0_i32_0 = arith.constant 0 : i32
    %c0_i32_1 = arith.constant 0 : i32
    return %c0_i32, %c0_i32_0 : i32, i32
  }
  func.func @transform_12(%arg0: i32) -> (i32, i32) {
    %c0_i32 = arith.constant 0 : i32
    %c0_i32_0 = arith.constant 0 : i32
    %c0_i32_1 = arith.constant 0 : i32
    return %c0_i32, %c0_i32_0 : i32, i32
  }
  func.func @transform_13(%arg0: i32) -> (i32, i32) {
    %c0_i32 = arith.constant 0 : i32
    %c0_i32_0 = arith.constant 0 : i32
    %c0_i32_1 = arith.constant 0 : i32
    return %c0_i32, %c0_i32_0 : i32, i32
  }
  func.func @transform_14(%arg0: i32) -> (i32, i32) {
    %c0_i32 = arith.constant 0 : i32
    %c0_i32_0 = arith.constant 0 : i32
    %c0_i32_1 = arith.constant 0 : i32
    return %c0_i32, %c0_i32_0 : i32, i32
  }
  func.func @transform_15(%arg0: i32) -> (i32, i32) {
    %c0_i32 = arith.constant 0 : i32
    %c0_i32_0 = arith.constant 0 : i32
    %c0_i32_1 = arith.constant 0 : i32
    return %c0_i32, %c0_i32_0 : i32, i32
  }
  func.func @transform_16(%arg0: i32) -> (i32, i32, i32) {
    %c0_i32 = arith.constant 0 : i32
    %c0_i32_0 = arith.constant 0 : i32
    %c0_i32_1 = arith.constant 0 : i32
    return %arg0, %c0_i32, %c0_i32_0 : i32, i32, i32
  }
  func.func @transform_17(%arg0: i32) -> (i32, i32, i32) {
    %c0_i32 = arith.constant 0 : i32
    %c0_i32_0 = arith.constant 0 : i32
    %c0_i32_1 = arith.constant 0 : i32
    return %arg0, %c0_i32, %c0_i32_0 : i32, i32, i32
  }
}

</mosaic_0001>

<llo_original>
// kernel: autoencoder_forward.1
$region0: #{autoencoder_forward.1}
  #allocation0 [shape = 'u32[]', space=smem, size = 0x4, offset = 0x4, fixed_abs, tag = 'smem constant byte address 0x4 - core index']
  #allocation1 [shape = 'u32[144,128]{1,0:T(1,128)}', space=vmem, size = 0x12000, scoped, tag = 'internal scratch']
  #allocation2 [shape = 'f32[1,1]{1,0:T(1,128)S(1)}', space=vmem, size = 0x200, scoped, tag = 'scoped memory for autoencoder_forward.1']
  %s0 = inlined_call_operand.vmem [shape: f32[2,1,288], index: 0, kind: input, shape index: {}]
  %s1 = inlined_call_operand.vmem [shape: f32[16,9], index: 1, kind: input, shape index: {}]
  %s2 = inlined_call_operand.vmem [shape: f32[16,1], index: 2, kind: input, shape index: {}]
  %s3 = inlined_call_operand.vmem [shape: bf16[32,144], index: 3, kind: input, shape index: {}]
  %s4 = inlined_call_operand.vmem [shape: f32[32,1], index: 4, kind: input, shape index: {}]
  %s5 = inlined_call_operand.vmem [shape: bf16[3,288], index: 5, kind: input, shape index: {}]
  %s6 = inlined_call_operand.vmem [shape: f32[3,1], index: 6, kind: input, shape index: {}]
  %s7 = inlined_call_operand.vmem [shape: f32[32,27], index: 7, kind: input, shape index: {}]
  %s8 = inlined_call_operand.vmem [shape: f32[32,1], index: 8, kind: input, shape index: {}]
  %s9 = inlined_call_operand.vmem [shape: bf16[16,288], index: 9, kind: input, shape index: {}]
  %s10 = inlined_call_operand.vmem [shape: f32[16,1], index: 10, kind: input, shape index: {}]
  %s11 = inlined_call_operand.vmem [shape: bf16[1,144], index: 11, kind: input, shape index: {}]
  %s12 = inlined_call_operand.<no memory space> [shape: f32[1,1], index: 12, kind: input, shape index: {}]
  %s13 = inlined_call_operand.vmem [shape: f32[1,172], index: 13, kind: input, shape index: {}]
  %s14 = inlined_call_operand.vmem [shape: f32[1,210], index: 14, kind: input, shape index: {}]
  %s15 = inlined_call_operand.vmem [shape: f32[1,248], index: 15, kind: input, shape index: {}]
  %s16 = inlined_call_operand.vmem [shape: f32[2,3,256], index: 16, kind: output, shape index: {0}]
  %s17 = inlined_call_operand.vmem [shape: f32[2,1,384], index: 17, kind: output, shape index: {1}]
  %18 = xla_tuple %s16, %s17
  %s19 = sld [smem:[#allocation0]]
  $region105: #{autoencoder_forward.1} parent=0
    _
  %s21 = ssub.s32 1, %s19
  %s22 = scalar_select 0, %s21, %s19
  %v23 = vstv %s12
  %24 = vst [vmem:[#allocation2] sm:$0x1] %v23
  loop: start=0, step=1, limit=4
  $region2: #{autoencoder_forward.1} parent=0 // loop_pre_header
    _
  $region3: #{autoencoder_forward.1} parent=0 // loop_header
    %s26 = sphi 0, %s30
    %p27 = scmp.ge.s32.totalorder %s26, 4
    %s36 = sphi 0, %s38
    %s39 = sphi 0, %s36
    %s40 = sphi 0, %s39
    %s56 = sphi 0, %s40
    %s60 = sphi 0, %s60
    %s62 = sphi 0, %s60
    %s63 = sphi 0, %s62
    %s77 = sphi 0, %s63
    %s81 = sphi 0, %s81
    %s83 = sphi 0, %s81
    %s84 = sphi 0, %s83
    %s98 = sphi 0, %s84
    %s102 = sphi 0, %s102
    %s104 = sphi 0, %s102
    %s105 = sphi 0, %s104
    %s119 = sphi 0, %s105
    %s123 = sphi 0, %s123
    %s125 = sphi 0, %s123
    %s126 = sphi 0, %s125
    %s140 = sphi 0, %s126
    %s144 = sphi 0, %s144
    %s146 = sphi 0, %s144
    %s147 = sphi 0, %s146
    %s161 = sphi 0, %s147
    %s165 = sphi 0, %s165
    %s167 = sphi 0, %s165
    %s168 = sphi 0, %s167
    %s182 = sphi 0, %s168
    %s186 = sphi 0, %s186
    %s188 = sphi 0, %s186
    %s189 = sphi 0, %s188
    %s203 = sphi 0, %s189
    %s207 = sphi 0, %s207
    %s209 = sphi 0, %s207
    %s210 = sphi 0, %s209
    %s224 = sphi 0, %s210
    %s228 = sphi 0, %s228
    %s230 = sphi 0, %s228
    %s231 = sphi 0, %s230
    %s245 = sphi 0, %s231
    %s249 = sphi 0, %s249
    %s251 = sphi 0, %s249
    %s252 = sphi 0, %s251
    %s266 = sphi 0, %s252
    %s270 = sphi 0, %s270
    %s272 = sphi 0, %s270
    %s273 = sphi 0, %s272
    %s287 = sphi 0, %s273
    %s291 = sphi 0, %s291
    %s293 = sphi 0, %s291
    %s294 = sphi 0, %s293
    %s308 = sphi 0, %s294
    %s312 = sphi 0, %s312
    %s314 = sphi 0, %s312
    %s315 = sphi 0, %s314
    %s329 = sphi 0, %s315
    %s333 = sphi 0, %s333
    %s335 = sphi 0, %s333
    %s336 = sphi 0, %s335
    %s350 = sphi 0, %s336
    %s354 = sphi 0, %s354
    %s356 = sphi 0, %s354
    %s357 = sphi 0, %s356
    %s371 = sphi 0, %s357
    %s377 = sphi 0, %s379
    %s380 = sphi 0, %s377
    %s381 = sphi 0, %s380
    %s397 = sphi 0, %s381
    %s403 = sphi 0, %s405
    %s406 = sphi 0, %s403
    %s407 = sphi 0, %s406
    %s423 = sphi 0, %s407
  $region4: #{autoencoder_forward.1} parent=0 // loop_header_branch
    %29 = sbr.rel (%p27) target = $region8
  $region5: #{autoencoder_forward.1} parent=0 // loop_body
    %s31 = ssub.s32 %s26, 1
    %s32 = ssub.s32 %s26, 2
    %s33 = sadd.s32 %s26, 1
    %s34 = ssub.s32 %s26, %s33
    %p35 = scmp.eq.s32.totalorder %s34, 0
    %s37 = sadd.s32 %s36, 1
    %s38 = scalar_select %p35, %s36, %s37
    %p41 = pneg %p35
    %p42 = scmp.eq.s32.totalorder %s26, 1
    %p43 = por %p41, %p42
    %p44 = scmp.ne.s32.totalorder %s36, %s39
    %p45 = scmp.eq.s32.totalorder %s26, 0
    %p46 = por %p44, %p45
    %p47 = scmp.ne.s32.totalorder %s36, %s39
    %p48 = scmp.eq.s32.totalorder %s31, 1
    %p49 = por %p47, %p48
    %p50 = scmp.ne.s32.totalorder %s39, %s40
    %p51 = scmp.eq.s32.totalorder %s31, 0
    %p52 = por %p50, %p51
    %p53 = scmp.ne.s32.totalorder %s39, %s40
    %p54 = scmp.eq.s32.totalorder %s32, 1
    %p55 = por %p53, %p54
    %p57 = scmp.ne.s32.totalorder %s40, %s56
    %p58 = scmp.eq.s32.totalorder %s32, 0
    %p59 = por %p57, %p58
    %s61 = sadd.s32 %s60, 1
    %p64 = scmp.eq.s32.totalorder %s26, 1
    %p65 = scmp.ne.s32.totalorder %s60, %s62
    %p66 = scmp.eq.s32.totalorder %s26, 0
    %p67 = por %p65, %p66
    %p68 = scmp.ne.s32.totalorder %s60, %s62
    %p69 = scmp.eq.s32.totalorder %s31, 1
    %p70 = por %p68, %p69
    %p71 = scmp.ne.s32.totalorder %s62, %s63
    %p72 = scmp.eq.s32.totalorder %s31, 0
    %p73 = por %p71, %p72
    %p74 = scmp.ne.s32.totalorder %s62, %s63
    %p75 = scmp.eq.s32.totalorder %s32, 1
    %p76 = por %p74, %p75
    %p78 = scmp.ne.s32.totalorder %s63, %s77
    %p79 = scmp.eq.s32.totalorder %s32, 0
    %p80 = por %p78, %p79
    %s82 = sadd.s32 %s81, 1
    %p85 = scmp.eq.s32.totalorder %s26, 1
    %p86 = scmp.ne.s32.totalorder %s81, %s83
    %p87 = scmp.eq.s32.totalorder %s26, 0
    %p88 = por %p86, %p87
    %p89 = scmp.ne.s32.totalorder %s81, %s83
    %p90 = scmp.eq.s32.totalorder %s31, 1
    %p91 = por %p89, %p90
    %p92 = scmp.ne.s32.totalorder %s83, %s84
    %p93 = scmp.eq.s32.totalorder %s31, 0
    %p94 = por %p92, %p93
    %p95 = scmp.ne.s32.totalorder %s83, %s84
    %p96 = scmp.eq.s32.totalorder %s32, 1
    %p97 = por %p95, %p96
    %p99 = scmp.ne.s32.totalorder %s84, %s98
    %p100 = scmp.eq.s32.totalorder %s32, 0
    %p101 = por %p99, %p100
    %s103 = sadd.s32 %s102, 1
    %p106 = scmp.eq.s32.totalorder %s26, 1
    %p107 = scmp.ne.s32.totalorder %s102, %s104
    %p108 = scmp.eq.s32.totalorder %s26, 0
    %p109 = por %p107, %p108
    %p110 = scmp.ne.s32.totalorder %s102, %s104
    %p111 = scmp.eq.s32.totalorder %s31, 1
    %p112 = por %p110, %p111
    %p113 = scmp.ne.s32.totalorder %s104, %s105
    %p114 = scmp.eq.s32.totalorder %s31, 0
    %p115 = por %p113, %p114
    %p116 = scmp.ne.s32.totalorder %s104, %s105
    %p117 = scmp.eq.s32.totalorder %s32, 1
    %p118 = por %p116, %p117
    %p120 = scmp.ne.s32.totalorder %s105, %s119
    %p121 = scmp.eq.s32.totalorder %s32, 0
    %p122 = por %p120, %p121
    %s124 = sadd.s32 %s123, 1
    %p127 = scmp.eq.s32.totalorder %s26, 1
    %p128 = scmp.ne.s32.totalorder %s123, %s125
    %p129 = scmp.eq.s32.totalorder %s26, 0
    %p130 = por %p128, %p129
    %p131 = scmp.ne.s32.totalorder %s123, %s125
    %p132 = scmp.eq.s32.totalorder %s31, 1
    %p133 = por %p131, %p132
    %p134 = scmp.ne.s32.totalorder %s125, %s126
    %p135 = scmp.eq.s32.totalorder %s31, 0
    %p136 = por %p134, %p135
    %p137 = scmp.ne.s32.totalorder %s125, %s126
    %p138 = scmp.eq.s32.totalorder %s32, 1
    %p139 = por %p137, %p138
    %p141 = scmp.ne.s32.totalorder %s126, %s140
    %p142 = scmp.eq.s32.totalorder %s32, 0
    %p143 = por %p141, %p142
    %s145 = sadd.s32 %s144, 1
    %p148 = scmp.eq.s32.totalorder %s26, 1
    %p149 = scmp.ne.s32.totalorder %s144, %s146
    %p150 = scmp.eq.s32.totalorder %s26, 0
    %p151 = por %p149, %p150
    %p152 = scmp.ne.s32.totalorder %s144, %s146
    %p153 = scmp.eq.s32.totalorder %s31, 1
    %p154 = por %p152, %p153
    %p155 = scmp.ne.s32.totalorder %s146, %s147
    %p156 = scmp.eq.s32.totalorder %s31, 0
    %p157 = por %p155, %p156
    %p158 = scmp.ne.s32.totalorder %s146, %s147
    %p159 = scmp.eq.s32.totalorder %s32, 1
    %p160 = por %p158, %p159
    %p162 = scmp.ne.s32.totalorder %s147, %s161
    %p163 = scmp.eq.s32.totalorder %s32, 0
    %p164 = por %p162, %p163
    %s166 = sadd.s32 %s165, 1
    %p169 = scmp.eq.s32.totalorder %s26, 1
    %p170 = scmp.ne.s32.totalorder %s165, %s167
    %p171 = scmp.eq.s32.totalorder %s26, 0
    %p172 = por %p170, %p171
    %p173 = scmp.ne.s32.totalorder %s165, %s167
    %p174 = scmp.eq.s32.totalorder %s31, 1
    %p175 = por %p173, %p174
    %p176 = scmp.ne.s32.totalorder %s167, %s168
    %p177 = scmp.eq.s32.totalorder %s31, 0
    %p178 = por %p176, %p177
    %p179 = scmp.ne.s32.totalorder %s167, %s168
    %p180 = scmp.eq.s32.totalorder %s32, 1
    %p181 = por %p179, %p180
    %p183 = scmp.ne.s32.totalorder %s168, %s182
    %p184 = scmp.eq.s32.totalorder %s32, 0
    %p185 = por %p183, %p184
    %s187 = sadd.s32 %s186, 1
    %p190 = scmp.eq.s32.totalorder %s26, 1
    %p191 = scmp.ne.s32.totalorder %s186, %s188
    %p192 = scmp.eq.s32.totalorder %s26, 0
    %p193 = por %p191, %p192
    %p194 = scmp.ne.s32.totalorder %s186, %s188
    %p195 = scmp.eq.s32.totalorder %s31, 1
    %p196 = por %p194, %p195
    %p197 = scmp.ne.s32.totalorder %s188, %s189
    %p198 = scmp.eq.s32.totalorder %s31, 0
    %p199 = por %p197, %p198
    %p200 = scmp.ne.s32.totalorder %s188, %s189
    %p201 = scmp.eq.s32.totalorder %s32, 1
    %p202 = por %p200, %p201
    %p204 = scmp.ne.s32.totalorder %s189, %s203
    %p205 = scmp.eq.s32.totalorder %s32, 0
    %p206 = por %p204, %p205
    %s208 = sadd.s32 %s207, 1
    %p211 = scmp.eq.s32.totalorder %s26, 1
    %p212 = scmp.ne.s32.totalorder %s207, %s209
    %p213 = scmp.eq.s32.totalorder %s26, 0
    %p214 = por %p212, %p213
    %p215 = scmp.ne.s32.totalorder %s207, %s209
    %p216 = scmp.eq.s32.totalorder %s31, 1
    %p217 = por %p215, %p216
    %p218 = scmp.ne.s32.totalorder %s209, %s210
    %p219 = scmp.eq.s32.totalorder %s31, 0
    %p220 = por %p218, %p219
    %p221 = scmp.ne.s32.totalorder %s209, %s210
    %p222 = scmp.eq.s32.totalorder %s32, 1
    %p223 = por %p221, %p222
    %p225 = scmp.ne.s32.totalorder %s210, %s224
    %p226 = scmp.eq.s32.totalorder %s32, 0
    %p227 = por %p225, %p226
    %s229 = sadd.s32 %s228, 1
    %p232 = scmp.eq.s32.totalorder %s26, 1
    %p233 = scmp.ne.s32.totalorder %s228, %s230
    %p234 = scmp.eq.s32.totalorder %s26, 0
    %p235 = por %p233, %p234
    %p236 = scmp.ne.s32.totalorder %s228, %s230
    %p237 = scmp.eq.s32.totalorder %s31, 1
    %p238 = por %p236, %p237
    %p239 = scmp.ne.s32.totalorder %s230, %s231
    %p240 = scmp.eq.s32.totalorder %s31, 0
    %p241 = por %p239, %p240
    %p242 = scmp.ne.s32.totalorder %s230, %s231
    %p243 = scmp.eq.s32.totalorder %s32, 1
    %p244 = por %p242, %p243
    %p246 = scmp.ne.s32.totalorder %s231, %s245
    %p247 = scmp.eq.s32.totalorder %s32, 0
    %p248 = por %p246, %p247
    %s250 = sadd.s32 %s249, 1
    %p253 = scmp.eq.s32.totalorder %s26, 1
    %p254 = scmp.ne.s32.totalorder %s249, %s251
    %p255 = scmp.eq.s32.totalorder %s26, 0
    %p256 = por %p254, %p255
    %p257 = scmp.ne.s32.totalorder %s249, %s251
    %p258 = scmp.eq.s32.totalorder %s31, 1
    %p259 = por %p257, %p258
    %p260 = scmp.ne.s32.totalorder %s251, %s252
    %p261 = scmp.eq.s32.totalorder %s31, 0
    %p262 = por %p260, %p261
    %p263 = scmp.ne.s32.totalorder %s251, %s252
    %p264 = scmp.eq.s32.totalorder %s32, 1
    %p265 = por %p263, %p264
    %p267 = scmp.ne.s32.totalorder %s252, %s266
    %p268 = scmp.eq.s32.totalorder %s32, 0
    %p269 = por %p267, %p268
    %s271 = sadd.s32 %s270, 1
    %p274 = scmp.eq.s32.totalorder %s26, 1
    %p275 = scmp.ne.s32.totalorder %s270, %s272
    %p276 = scmp.eq.s32.totalorder %s26, 0
    %p277 = por %p275, %p276
    %p278 = scmp.ne.s32.totalorder %s270, %s272
    %p279 = scmp.eq.s32.totalorder %s31, 1
    %p280 = por %p278, %p279
    %p281 = scmp.ne.s32.totalorder %s272, %s273
    %p282 = scmp.eq.s32.totalorder %s31, 0
    %p283 = por %p281, %p282
    %p284 = scmp.ne.s32.totalorder %s272, %s273
    %p285 = scmp.eq.s32.totalorder %s32, 1
    %p286 = por %p284, %p285
    %p288 = scmp.ne.s32.totalorder %s273, %s287
    %p289 = scmp.eq.s32.totalorder %s32, 0
    %p290 = por %p288, %p289
    %s292 = sadd.s32 %s291, 1
    %p295 = scmp.eq.s32.totalorder %s26, 1
    %p296 = scmp.ne.s32.totalorder %s291, %s293
    %p297 = scmp.eq.s32.totalorder %s26, 0
    %p298 = por %p296, %p297
    %p299 = scmp.ne.s32.totalorder %s291, %s293
    %p300 = scmp.eq.s32.totalorder %s31, 1
    %p301 = por %p299, %p300
    %p302 = scmp.ne.s32.totalorder %s293, %s294
    %p303 = scmp.eq.s32.totalorder %s31, 0
    %p304 = por %p302, %p303
    %p305 = scmp.ne.s32.totalorder %s293, %s294
    %p306 = scmp.eq.s32.totalorder %s32, 1
    %p307 = por %p305, %p306
    %p309 = scmp.ne.s32.totalorder %s294, %s308
    %p310 = scmp.eq.s32.totalorder %s32, 0
    %p311 = por %p309, %p310
    %s313 = sadd.s32 %s312, 1
    %p316 = scmp.eq.s32.totalorder %s26, 1
    %p317 = scmp.ne.s32.totalorder %s312, %s314
    %p318 = scmp.eq.s32.totalorder %s26, 0
    %p319 = por %p317, %p318
    %p320 = scmp.ne.s32.totalorder %s312, %s314
    %p321 = scmp.eq.s32.totalorder %s31, 1
    %p322 = por %p320, %p321
    %p323 = scmp.ne.s32.totalorder %s314, %s315
    %p324 = scmp.eq.s32.totalorder %s31, 0
    %p325 = por %p323, %p324
    %p326 = scmp.ne.s32.totalorder %s314, %s315
    %p327 = scmp.eq.s32.totalorder %s32, 1
    %p328 = por %p326, %p327
    %p330 = scmp.ne.s32.totalorder %s315, %s329
    %p331 = scmp.eq.s32.totalorder %s32, 0
    %p332 = por %p330, %p331
    %s334 = sadd.s32 %s333, 1
    %p337 = scmp.eq.s32.totalorder %s26, 1
    %p338 = scmp.ne.s32.totalorder %s333, %s335
    %p339 = scmp.eq.s32.totalorder %s26, 0
    %p340 = por %p338, %p339
    %p341 = scmp.ne.s32.totalorder %s333, %s335
    %p342 = scmp.eq.s32.totalorder %s31, 1
    %p343 = por %p341, %p342
    %p344 = scmp.ne.s32.totalorder %s335, %s336
    %p345 = scmp.eq.s32.totalorder %s31, 0
    %p346 = por %p344, %p345
    %p347 = scmp.ne.s32.totalorder %s335, %s336
    %p348 = scmp.eq.s32.totalorder %s32, 1
    %p349 = por %p347, %p348
    %p351 = scmp.ne.s32.totalorder %s336, %s350
    %p352 = scmp.eq.s32.totalorder %s32, 0
    %p353 = por %p351, %p352
    %s355 = sadd.s32 %s354, 1
    %p358 = scmp.eq.s32.totalorder %s26, 1
    %p359 = scmp.ne.s32.totalorder %s354, %s356
    %p360 = scmp.eq.s32.totalorder %s26, 0
    %p361 = por %p359, %p360
    %p362 = scmp.ne.s32.totalorder %s354, %s356
    %p363 = scmp.eq.s32.totalorder %s31, 1
    %p364 = por %p362, %p363
    %p365 = scmp.ne.s32.totalorder %s356, %s357
    %p366 = scmp.eq.s32.totalorder %s31, 0
    %p367 = por %p365, %p366
    %p368 = scmp.ne.s32.totalorder %s356, %s357
    %p369 = scmp.eq.s32.totalorder %s32, 1
    %p370 = por %p368, %p369
    %p372 = scmp.ne.s32.totalorder %s357, %s371
    %p373 = scmp.eq.s32.totalorder %s32, 0
    %p374 = por %p372, %p373
    %s375 = ssub.s32 %s26, %s33
    %p376 = scmp.eq.s32.totalorder %s375, 0
    %s378 = sadd.s32 %s377, 1
    %s379 = scalar_select %p376, %s377, %s378
    %p382 = pneg %p376
    %p383 = scmp.eq.s32.totalorder %s26, 1
    %p384 = por %p382, %p383
    %p385 = scmp.ne.s32.totalorder %s377, %s380
    %p386 = scmp.eq.s32.totalorder %s26, 0
    %p387 = por %p385, %p386
    %p388 = scmp.ne.s32.totalorder %s377, %s380
    %p389 = scmp.eq.s32.totalorder %s31, 1
    %p390 = por %p388, %p389
    %p391 = scmp.ne.s32.totalorder %s380, %s381
    %p392 = scmp.eq.s32.totalorder %s31, 0
    %p393 = por %p391, %p392
    %p394 = scmp.ne.s32.totalorder %s380, %s381
    %p395 = scmp.eq.s32.totalorder %s32, 1
    %p396 = por %p394, %p395
    %p398 = scmp.ne.s32.totalorder %s381, %s397
    %p399 = scmp.eq.s32.totalorder %s32, 0
    %p400 = por %p398, %p399
    %s401 = ssub.s32 %s26, %s33
    %p402 = scmp.eq.s32.totalorder %s401, 0
    %s404 = sadd.s32 %s403, 1
    %s405 = scalar_select %p402, %s403, %s404
    %p408 = pneg %p402
    %p409 = scmp.eq.s32.totalorder %s26, 1
    %p410 = por %p408, %p409
    %p411 = scmp.ne.s32.totalorder %s403, %s406
    %p412 = scmp.eq.s32.totalorder %s26, 0
    %p413 = por %p411, %p412
    %p414 = scmp.ne.s32.totalorder %s403, %s406
    %p415 = scmp.eq.s32.totalorder %s31, 1
    %p416 = por %p414, %p415
    %p417 = scmp.ne.s32.totalorder %s406, %s407
    %p418 = scmp.eq.s32.totalorder %s31, 0
    %p419 = por %p417, %p418
    %p420 = scmp.ne.s32.totalorder %s406, %s407
    %p421 = scmp.eq.s32.totalorder %s32, 1
    %p422 = por %p420, %p421
    %p424 = scmp.ne.s32.totalorder %s407, %s423
    %p425 = scmp.eq.s32.totalorder %s32, 0
    %p426 = por %p424, %p425
    %p427 = scmp.le.s32.totalorder 1, %s26
    %p428 = scmp.lt.s32.totalorder %s26, 3
    %p429 = pnand %p427, %p428
    %p430 = pneg %p429
    // Predicated region
    $region9: #{autoencoder_forward.1} parent=5 // pred_check
      _
    $region10: #{autoencoder_forward.1} parent=5 // pred_check_branch
      %432 = sbr.rel (%p429) target = $region12
    $region11: #{autoencoder_forward.1} parent=5 // pred_region
      %s433 = ssub.s32 %s26, 1
      // Predicated region
      $region13: #{autoencoder_forward.1} parent=11 // pred_check
        %p434 = pneg %p73
      $region14: #{autoencoder_forward.1} parent=11 // pred_check_branch
        %436 = sbr.rel (%p434) target = $region16
      $region15: #{autoencoder_forward.1} parent=11 // pred_region
        _
      $region16: #{autoencoder_forward.1} parent=11 // pred_fallthru
        _
      // Predicated region
      $region17: #{autoencoder_forward.1} parent=11 // pred_check
        %p437 = pneg %p94
      $region18: #{autoencoder_forward.1} parent=11 // pred_check_branch
        %439 = sbr.rel (%p437) target = $region20
      $region19: #{autoencoder_forward.1} parent=11 // pred_region
        _
      $region20: #{autoencoder_forward.1} parent=11 // pred_fallthru
        _
      // Predicated region
      $region21: #{autoencoder_forward.1} parent=11 // pred_check
        %p440 = pneg %p115
      $region22: #{autoencoder_forward.1} parent=11 // pred_check_branch
        %442 = sbr.rel (%p440) target = $region24
      $region23: #{autoencoder_forward.1} parent=11 // pred_region
        _
      $region24: #{autoencoder_forward.1} parent=11 // pred_fallthru
        _
      // Predicated region
      $region25: #{autoencoder_forward.1} parent=11 // pred_check
        %p443 = pneg %p136
      $region26: #{autoencoder_forward.1} parent=11 // pred_check_branch
        %445 = sbr.rel (%p443) target = $region28
      $region27: #{autoencoder_forward.1} parent=11 // pred_region
        _
      $region28: #{autoencoder_forward.1} parent=11 // pred_fallthru
        _
      // Predicated region
      $region29: #{autoencoder_forward.1} parent=11 // pred_check
        %p446 = pneg %p157
      $region30: #{autoencoder_forward.1} parent=11 // pred_check_branch
        %448 = sbr.rel (%p446) target = $region32
      $region31: #{autoencoder_forward.1} parent=11 // pred_region
        _
      $region32: #{autoencoder_forward.1} parent=11 // pred_fallthru
        _
      // Predicated region
      $region33: #{autoencoder_forward.1} parent=11 // pred_check
        %p449 = pneg %p178
      $region34: #{autoencoder_forward.1} parent=11 // pred_check_branch
        %451 = sbr.rel (%p449) target = $region36
      $region35: #{autoencoder_forward.1} parent=11 // pred_region
        _
      $region36: #{autoencoder_forward.1} parent=11 // pred_fallthru
        _
      // Predicated region
      $region37: #{autoencoder_forward.1} parent=11 // pred_check
        %p452 = pneg %p199
      $region38: #{autoencoder_forward.1} parent=11 // pred_check_branch
        %454 = sbr.rel (%p452) target = $region40
      $region39: #{autoencoder_forward.1} parent=11 // pred_region
        _
      $region40: #{autoencoder_forward.1} parent=11 // pred_fallthru
        _
      // Predicated region
      $region41: #{autoencoder_forward.1} parent=11 // pred_check
        %p455 = pneg %p220
      $region42: #{autoencoder_forward.1} parent=11 // pred_check_branch
        %457 = sbr.rel (%p455) target = $region44
      $region43: #{autoencoder_forward.1} parent=11 // pred_region
        _
      $region44: #{autoencoder_forward.1} parent=11 // pred_fallthru
        _
      // Predicated region
      $region45: #{autoencoder_forward.1} parent=11 // pred_check
        %p458 = pneg %p241
      $region46: #{autoencoder_forward.1} parent=11 // pred_check_branch
        %460 = sbr.rel (%p458) target = $region48
      $region47: #{autoencoder_forward.1} parent=11 // pred_region
        _
      $region48: #{autoencoder_forward.1} parent=11 // pred_fallthru
        _
      // Predicated region
      $region49: #{autoencoder_forward.1} parent=11 // pred_check
        %p461 = pneg %p262
      $region50: #{autoencoder_forward.1} parent=11 // pred_check_branch
        %463 = sbr.rel (%p461) target = $region52
      $region51: #{autoencoder_forward.1} parent=11 // pred_region
        _
      $region52: #{autoencoder_forward.1} parent=11 // pred_fallthru
        _
      // Predicated region
      $region53: #{autoencoder_forward.1} parent=11 // pred_check
        %p464 = pneg %p283
      $region54: #{autoencoder_forward.1} parent=11 // pred_check_branch
        %466 = sbr.rel (%p464) target = $region56
      $region55: #{autoencoder_forward.1} parent=11 // pred_region
        _
      $region56: #{autoencoder_forward.1} parent=11 // pred_fallthru
        _
      // Predicated region
      $region57: #{autoencoder_forward.1} parent=11 // pred_check
        %p467 = pneg %p304
      $region58: #{autoencoder_forward.1} parent=11 // pred_check_branch
        %469 = sbr.rel (%p467) target = $region60
      $region59: #{autoencoder_forward.1} parent=11 // pred_region
        _
      $region60: #{autoencoder_forward.1} parent=11 // pred_fallthru
        _
      // Predicated region
      $region61: #{autoencoder_forward.1} parent=11 // pred_check
        %p470 = pneg %p325
      $region62: #{autoencoder_forward.1} parent=11 // pred_check_branch
        %472 = sbr.rel (%p470) target = $region64
      $region63: #{autoencoder_forward.1} parent=11 // pred_region
        _
      $region64: #{autoencoder_forward.1} parent=11 // pred_fallthru
        _
      // Predicated region
      $region65: #{autoencoder_forward.1} parent=11 // pred_check
        %p473 = pneg %p346
      $region66: #{autoencoder_forward.1} parent=11 // pred_check_branch
        %475 = sbr.rel (%p473) target = $region68
      $region67: #{autoencoder_forward.1} parent=11 // pred_region
        _
      $region68: #{autoencoder_forward.1} parent=11 // pred_fallthru
        _
      // Predicated region
      $region69: #{autoencoder_forward.1} parent=11 // pred_check
        %p476 = pneg %p367
      $region70: #{autoencoder_forward.1} parent=11 // pred_check_branch
        %478 = sbr.rel (%p476) target = $region72
      $region71: #{autoencoder_forward.1} parent=11 // pred_region
        _
      $region72: #{autoencoder_forward.1} parent=11 // pred_fallthru
        _
    $region12: #{autoencoder_forward.1} parent=5 // pred_fallthru
      _
    %p479 = scmp.lt.s32.totalorder %s26, 2
    // Predicated region
    $region73: #{autoencoder_forward.1} parent=5 // pred_check
      %p480 = pneg %p479
    $region74: #{autoencoder_forward.1} parent=5 // pred_check_branch
      %482 = sbr.rel (%p480) target = $region76
    $region75: #{autoencoder_forward.1} parent=5 // pred_region
      // Predicated region
      $region77: #{autoencoder_forward.1} parent=75 // pred_check
        %p483 = pneg %p46
      $region78: #{autoencoder_forward.1} parent=75 // pred_check_branch
        %485 = sbr.rel (%p483) target = $region80
      $region79: #{autoencoder_forward.1} parent=75 // pred_region
        %p486 = scmp.lt.s32.totalorder %s26, 1
        %s487 = scalar_select %p486, %s26, 1
        %s488 = smul.addr %s487, 3
        %s489 = scalar_lea.vmem %s0, %s488
      $region80: #{autoencoder_forward.1} parent=75 // pred_fallthru
        _
    $region76: #{autoencoder_forward.1} parent=5 // pred_fallthru
      _
    %p490 = scmp.le.s32.totalorder 1, %s26
    %p491 = scmp.lt.s32.totalorder %s26, 3
    %p492 = pnand %p490, %p491
    %p493 = pneg %p492
    // Predicated region
    $region81: #{autoencoder_forward.1} parent=5 // pred_check
      _
    $region82: #{autoencoder_forward.1} parent=5 // pred_check_branch
      %495 = sbr.rel (%p492) target = $region84
    $region83: #{autoencoder_forward.1} parent=5 // pred_region
      %s496 = ssub.s32 %s26, 1
      %p497 = scmp.lt.s32.totalorder %s31, 1
      %s498 = scalar_select %p497, %s31, 1
      %s499 = smul.addr %s498, 3
      %s500 = scalar_lea.vmem %s0, %s499
      %p501 = pneg %p52
      %p502 = pneg %p49
      %p503 = pneg %p73
      %p504 = pneg %p70
      %p505 = pneg %p94
      %p506 = pneg %p91
      %p507 = pneg %p115
      %p508 = pneg %p112
      %p509 = pneg %p136
      %p510 = pneg %p133
      %p511 = pneg %p157
      %p512 = pneg %p154
      %p513 = pneg %p178
      %p514 = pneg %p175
      %p515 = pneg %p199
      %p516 = pneg %p196
      %p517 = pneg %p220
      %p518 = pneg %p217
      %p519 = pneg %p241
      %p520 = pneg %p238
      %p521 = pneg %p262
      %p522 = pneg %p259
      %p523 = pneg %p283
      %p524 = pneg %p280
      %p525 = pneg %p304
      %p526 = pneg %p301
      %p527 = pneg %p325
      %p528 = pneg %p322
      %p529 = pneg %p346
      %p530 = pneg %p343
      %p531 = pneg %p367
      %p532 = pneg %p364
      %p533 = pneg %p393
      %p534 = pneg %p390
      %p535 = scmp.lt.s32.totalorder %s31, 1
      %s536 = scalar_select %p535, %s31, 1
      %s537 = smul.addr %s536, 2
      %s538 = smul.addr %s537, 4
      %s539 = scalar_lea.vmem %s16, %s538
      %p540 = pneg %p419
      %p541 = pneg %p416
      %p542 = scmp.lt.s32.totalorder %s31, 1
      %s543 = scalar_select %p542, %s31, 1
      %s544 = smul.addr %s543, 3
      %s545 = scalar_lea.vmem %s17, %s544
      %p546 = scmp.lt.s32.totalorder %s31, 1
      %s547 = scalar_select %p546, %s31, 1
      %s548 = smul.addr %s547, 3
      %s549 = scalar_lea.vmem %s0, %s548
      %p550 = scmp.lt.s32.totalorder %s31, 1
      %s551 = scalar_select %p550, %s31, 1
      %s552 = smul.addr %s551, 2
      %s553 = smul.addr %s552, 4
      %s554 = scalar_lea.vmem %s16, %s553
      %p555 = scmp.lt.s32.totalorder %s31, 1
      %s556 = scalar_select %p555, %s31, 1
      %s557 = smul.addr %s556, 3
      %s558 = scalar_lea.vmem %s17, %s557
      %v560 = vld [vmem:[%s549] sm:$0x7]
      %v561 = vld [vmem:[%s1] sm:$0xff]
      %v562 = vld [vmem:[%s1 + $0x8] sm:$0xff]
      %v563 = vld [vmem:[%s2] sm:$0xff]
      %v564 = vld [vmem:[%s2 + $0x8] sm:$0xff]
      %566 = vset.pattern.permute.xlu0 0
      %567 = vperm.xlu0 %566, %v561
      %v568 = vpop.permute.xlu0 %567
      %571 = vset.pattern.permute.xlu0 0
      %572 = vperm.xlu0 %571, %v562
      %v573 = vpop.permute.xlu0 %572
      %v576 = vlaneseq
      %v577 = vshrl.u32 %v576, 7
      %v578 = vsub.s32 0, %v577
      %v579 = vrot.slane %v560, %v578
      %v580 = vlaneseq
      %v581 = vshrl.u32 %v580, 7
      %v582 = vsub.s32 1, %v581
      %v583 = vrot.slane %v560, %v582
      %v586 = vmul.f32 %v568, %v579
      %v587 = vmul.f32 %v568, %v583
      %v588 = vmul.f32 %v573, %v579
      %v589 = vmul.f32 %v573, %v583
      %v590 = vadd.f32 %v586, 0.0
      %v591 = vadd.f32 %v587, 0.0
      %v592 = vadd.f32 %v588, 0.0
      %v593 = vadd.f32 %v589, 0.0
      %594 = vset.pattern.permute.xlu0 1
      %595 = vperm.xlu0 %594, %v561
      %v596 = vpop.permute.xlu0 %595
      %598 = vset.pattern.permute.xlu0 1
      %599 = vperm.xlu0 %598, %v562
      %v600 = vpop.permute.xlu0 %599
      %v602 = vmul.f32 %v596, %v579
      %v603 = vmul.f32 %v596, %v583
      %v604 = vmul.f32 %v600, %v579
      %v605 = vmul.f32 %v600, %v583
      %610 = vrot.lane.b32.xlu0 %v602, 127
      %v611 = vpop.permute.xlu0 %610
      %612 = vrot.lane.b32.xlu0 %v603, 127
      %v613 = vpop.permute.xlu0 %612
      %614 = vrot.lane.b32.xlu0 %v604, 127
      %v615 = vpop.permute.xlu0 %614
      %616 = vrot.lane.b32.xlu0 %v605, 127
      %v617 = vpop.permute.xlu0 %616
      %vm618 = vcmask 1039360
      %v619 = vsel %vm618, %v611, %v613
      %v620 = vsel %vm618, %v615, %v617
      %v625 = vadd.f32 %v590, %v619
      %v626 = vadd.f32 %v591, %v613
      %v627 = vadd.f32 %v592, %v620
      %v628 = vadd.f32 %v593, %v617
      %629 = vset.pattern.permute.xlu0 2
      %630 = vperm.xlu0 %629, %v561
      %v631 = vpop.permute.xlu0 %630
      %633 = vset.pattern.permute.xlu0 2
      %634 = vperm.xlu0 %633, %v562
      %v635 = vpop.permute.xlu0 %634
      %v637 = vmul.f32 %v631, %v579
      %v638 = vmul.f32 %v631, %v583
      %v639 = vmul.f32 %v635, %v579
      %v640 = vmul.f32 %v635, %v583
      %645 = vrot.lane.b32.xlu0 %v637, 126
      %v646 = vpop.permute.xlu0 %645
      %647 = vrot.lane.b32.xlu0 %v638, 126
      %v648 = vpop.permute.xlu0 %647
      %649 = vrot.lane.b32.xlu0 %v639, 126
      %v650 = vpop.permute.xlu0 %649
      %651 = vrot.lane.b32.xlu0 %v640, 126
      %v652 = vpop.permute.xlu0 %651
      %vm653 = vcmask 1031168
      %v654 = vsel %vm653, %v646, %v648
      %v655 = vsel %vm653, %v650, %v652
      %v660 = vadd.f32 %v625, %v654
      %v661 = vadd.f32 %v626, %v648
      %v662 = vadd.f32 %v627, %v655
      %v663 = vadd.f32 %v628, %v652
      %664 = vset.pattern.permute.xlu0 3
      %665 = vperm.xlu0 %664, %v561
      %v666 = vpop.permute.xlu0 %665
      %668 = vset.pattern.permute.xlu0 3
      %669 = vperm.xlu0 %668, %v562
      %v670 = vpop.permute.xlu0 %669
      %v672 = vlaneseq
      %v673 = vshrl.u32 %v672, 7
      %v674 = vsub.s32 2, %v673
      %v675 = vrot.slane %v560, %v674
      %v677 = vmul.f32 %v666, %v579
      %v678 = vmul.f32 %v666, %v583
      %v679 = vmul.f32 %v666, %v675
      %v680 = vmul.f32 %v670, %v579
      %v681 = vmul.f32 %v670, %v583
      %v682 = vmul.f32 %v670, %v675
      %689 = vrot.lane.b32.xlu0 %v677, 110
      %v690 = vpop.permute.xlu0 %689
      %691 = vrot.lane.b32.xlu0 %v678, 110
      %v692 = vpop.permute.xlu0 %691
      %693 = vrot.lane.b32.xlu0 %v679, 110
      %v694 = vpop.permute.xlu0 %693
      %695 = vrot.lane.b32.xlu0 %v680, 110
      %v696 = vpop.permute.xlu0 %695
      %697 = vrot.lane.b32.xlu0 %v681, 110
      %v698 = vpop.permute.xlu0 %697
      %699 = vrot.lane.b32.xlu0 %v682, 110
      %v700 = vpop.permute.xlu0 %699
      %vm701 = vcmask 900096
      %v702 = vsel %vm701, %v690, %v692
      %v703 = vsel %vm701, %v692, %v694
      %v704 = vsel %vm701, %v696, %v698
      %v705 = vsel %vm701, %v698, %v700
      %v710 = vadd.f32 %v660, %v702
      %v711 = vadd.f32 %v661, %v703
      %v712 = vadd.f32 %v662, %v704
      %v713 = vadd.f32 %v663, %v705
      %714 = vset.pattern.permute.xlu0 4
      %715 = vperm.xlu0 %714, %v561
      %v716 = vpop.permute.xlu0 %715
      %718 = vset.pattern.permute.xlu0 4
      %719 = vperm.xlu0 %718, %v562
      %v720 = vpop.permute.xlu0 %719
      %v722 = vmul.f32 %v716, %v579
      %v723 = vmul.f32 %v716, %v583
      %v724 = vmul.f32 %v716, %v675
      %v725 = vmul.f32 %v720, %v579
      %v726 = vmul.f32 %v720, %v583
      %v727 = vmul.f32 %v720, %v675
      %734 = vrot.lane.b32.xlu0 %v722, 109
      %v735 = vpop.permute.xlu0 %734
      %736 = vrot.lane.b32.xlu0 %v723, 109
      %v737 = vpop.permute.xlu0 %736
      %738 = vrot.lane.b32.xlu0 %v724, 109
      %v739 = vpop.permute.xlu0 %738
      %740 = vrot.lane.b32.xlu0 %v725, 109
      %v741 = vpop.permute.xlu0 %740
      %742 = vrot.lane.b32.xlu0 %v726, 109
      %v743 = vpop.permute.xlu0 %742
      %744 = vrot.lane.b32.xlu0 %v727, 109
      %v745 = vpop.permute.xlu0 %744
      %vm746 = vcmask 891904
      %v747 = vsel %vm746, %v735, %v737
      %v748 = vsel %vm746, %v737, %v739
      %v749 = vsel %vm746, %v741, %v743
      %v750 = vsel %vm746, %v743, %v745
      %v755 = vadd.f32 %v710, %v747
      %v756 = vadd.f32 %v711, %v748
      %v757 = vadd.f32 %v712, %v749
      %v758 = vadd.f32 %v713, %v750
      %759 = vset.pattern.permute.xlu0 5
      %760 = vperm.xlu0 %759, %v561
      %v761 = vpop.permute.xlu0 %760
      %763 = vset.pattern.permute.xlu0 5
      %764 = vperm.xlu0 %763, %v562
      %v765 = vpop.permute.xlu0 %764
      %v767 = vmul.f32 %v761, %v579
      %v768 = vmul.f32 %v761, %v583
      %v769 = vmul.f32 %v761, %v675
      %v770 = vmul.f32 %v765, %v579
      %v771 = vmul.f32 %v765, %v583
      %v772 = vmul.f32 %v765, %v675
      %779 = vrot.lane.b32.xlu0 %v767, 108
      %v780 = vpop.permute.xlu0 %779
      %781 = vrot.lane.b32.xlu0 %v768, 108
      %v782 = vpop.permute.xlu0 %781
      %783 = vrot.lane.b32.xlu0 %v769, 108
      %v784 = vpop.permute.xlu0 %783
      %785 = vrot.lane.b32.xlu0 %v770, 108
      %v786 = vpop.permute.xlu0 %785
      %787 = vrot.lane.b32.xlu0 %v771, 108
      %v788 = vpop.permute.xlu0 %787
      %789 = vrot.lane.b32.xlu0 %v772, 108
      %v790 = vpop.permute.xlu0 %789
      %vm791 = vcmask 883712
      %v792 = vsel %vm791, %v780, %v782
      %v793 = vsel %vm791, %v782, %v784
      %v794 = vsel %vm791, %v786, %v788
      %v795 = vsel %vm791, %v788, %v790
      %v800 = vadd.f32 %v755, %v792
      %v801 = vadd.f32 %v756, %v793
      %v802 = vadd.f32 %v757, %v794
      %v803 = vadd.f32 %v758, %v795
      %804 = vset.pattern.permute.xlu0 6
      %805 = vperm.xlu0 %804, %v561
      %v806 = vpop.permute.xlu0 %805
      %808 = vset.pattern.permute.xlu0 6
      %809 = vperm.xlu0 %808, %v562
      %v810 = vpop.permute.xlu0 %809
      %v812 = vmul.f32 %v806, %v579
      %v813 = vmul.f32 %v806, %v583
      %v814 = vmul.f32 %v806, %v675
      %v815 = vmul.f32 %v810, %v579
      %v816 = vmul.f32 %v810, %v583
      %v817 = vmul.f32 %v810, %v675
      %824 = vrot.lane.b32.xlu0 %v812, 92
      %v825 = vpop.permute.xlu0 %824
      %826 = vrot.lane.b32.xlu0 %v813, 92
      %v827 = vpop.permute.xlu0 %826
      %828 = vrot.lane.b32.xlu0 %v814, 92
      %v829 = vpop.permute.xlu0 %828
      %830 = vrot.lane.b32.xlu0 %v815, 92
      %v831 = vpop.permute.xlu0 %830
      %832 = vrot.lane.b32.xlu0 %v816, 92
      %v833 = vpop.permute.xlu0 %832
      %834 = vrot.lane.b32.xlu0 %v817, 92
      %v835 = vpop.permute.xlu0 %834
      %vm836 = vcmask 752640
      %v837 = vsel %vm836, %v825, %v827
      %v838 = vsel %vm836, %v827, %v829
      %v839 = vsel %vm836, %v831, %v833
      %v840 = vsel %vm836, %v833, %v835
      %v845 = vadd.f32 %v800, %v837
      %v846 = vadd.f32 %v801, %v838
      %v847 = vadd.f32 %v802, %v839
      %v848 = vadd.f32 %v803, %v840
      %849 = vset.pattern.permute.xlu0 7
      %850 = vperm.xlu0 %849, %v561
      %v851 = vpop.permute.xlu0 %850
      %853 = vset.pattern.permute.xlu0 7
      %854 = vperm.xlu0 %853, %v562
      %v855 = vpop.permute.xlu0 %854
      %v857 = vmul.f32 %v851, %v579
      %v858 = vmul.f32 %v851, %v583
      %v859 = vmul.f32 %v851, %v675
      %v860 = vmul.f32 %v855, %v579
      %v861 = vmul.f32 %v855, %v583
      %v862 = vmul.f32 %v855, %v675
      %869 = vrot.lane.b32.xlu0 %v857, 91
      %v870 = vpop.permute.xlu0 %869
      %871 = vrot.lane.b32.xlu0 %v858, 91
      %v872 = vpop.permute.xlu0 %871
      %873 = vrot.lane.b32.xlu0 %v859, 91
      %v874 = vpop.permute.xlu0 %873
      %875 = vrot.lane.b32.xlu0 %v860, 91
      %v876 = vpop.permute.xlu0 %875
      %877 = vrot.lane.b32.xlu0 %v861, 91
      %v878 = vpop.permute.xlu0 %877
      %879 = vrot.lane.b32.xlu0 %v862, 91
      %v880 = vpop.permute.xlu0 %879
      %vm881 = vcmask 744448
      %v882 = vsel %vm881, %v870, %v872
      %v883 = vsel %vm881, %v872, %v874
      %v884 = vsel %vm881, %v876, %v878
      %v885 = vsel %vm881, %v878, %v880
      %v890 = vadd.f32 %v845, %v882
      %v891 = vadd.f32 %v846, %v883
      %v892 = vadd.f32 %v847, %v884
      %v893 = vadd.f32 %v848, %v885
      %894 = vset.pattern.permute.xlu0 8
      %895 = vperm.xlu0 %894, %v561
      %v896 = vpop.permute.xlu0 %895
      %898 = vset.pattern.permute.xlu0 8
      %899 = vperm.xlu0 %898, %v562
      %v900 = vpop.permute.xlu0 %899
      %v902 = vmul.f32 %v896, %v579
      %v903 = vmul.f32 %v896, %v583
      %v904 = vmul.f32 %v896, %v675
      %v905 = vmul.f32 %v900, %v579
      %v906 = vmul.f32 %v900, %v583
      %v907 = vmul.f32 %v900, %v675
      %914 = vrot.lane.b32.xlu0 %v902, 90
      %v915 = vpop.permute.xlu0 %914
      %916 = vrot.lane.b32.xlu0 %v903, 90
      %v917 = vpop.permute.xlu0 %916
      %918 = vrot.lane.b32.xlu0 %v904, 90
      %v919 = vpop.permute.xlu0 %918
      %920 = vrot.lane.b32.xlu0 %v905, 90
      %v921 = vpop.permute.xlu0 %920
      %922 = vrot.lane.b32.xlu0 %v906, 90
      %v923 = vpop.permute.xlu0 %922
      %924 = vrot.lane.b32.xlu0 %v907, 90
      %v925 = vpop.permute.xlu0 %924
      %vm926 = vcmask 736256
      %v927 = vsel %vm926, %v915, %v917
      %v928 = vsel %vm926, %v917, %v919
      %v929 = vsel %vm926, %v921, %v923
      %v930 = vsel %vm926, %v923, %v925
      %v935 = vadd.f32 %v890, %v927
      %v936 = vadd.f32 %v891, %v928
      %v937 = vadd.f32 %v892, %v929
      %v938 = vadd.f32 %v893, %v930
      %940 = vset.pattern.permute.xlu0 0
      %941 = vperm.xlu0 %940, %v563
      %v942 = vpop.permute.xlu0 %941
      %945 = vset.pattern.permute.xlu0 0
      %946 = vperm.xlu0 %945, %v564
      %v947 = vpop.permute.xlu0 %946
      %v949 = vadd.f32 %v935, %v942
      %v950 = vadd.f32 %v936, %v942
      %v951 = vadd.f32 %v937, %v947
      %v952 = vadd.f32 %v938, %v947
      %v953 = vmax.f32 %v949, 0.0
      %v954 = vmax.f32 %v950, 0.0
      %v955 = vmax.f32 %v951, 0.0
      %v956 = vmax.f32 %v952, 0.0
      %v957 = vld [vmem:[%s3] sm:$0xff]
      %v958 = vld [vmem:[%s3 + $0x8] sm:$0xff]
      %v959 = vld [vmem:[%s3 + $0x10] sm:$0xff]
      %v960 = vld [vmem:[%s3 + $0x18] sm:$0xff]
      %v961 = vld [vmem:[%s4] sm:$0xff]
      %v962 = vld [vmem:[%s4 + $0x8] sm:$0xff]
      %v963 = vld [vmem:[%s4 + $0x10] sm:$0xff]
      %v964 = vld [vmem:[%s4 + $0x18] sm:$0xff]
      %v965 = vpack.c.bf16 %v955, %v953
      %v966 = vpack.c.bf16 %v956, %v954
      %969 = vrot.lane.b32.xlu0 %v965, 127
      %v970 = vpop.permute.xlu0 %969
      %971 = vrot.lane.b32.xlu0 %v966, 127
      %v972 = vpop.permute.xlu0 %971
      %vm973 = vcmask 1039360
      %v974 = vsel %vm973, %v970, %v972
      %977 = vrot.lane.b32.xlu0 %v965, 126
      %v978 = vpop.permute.xlu0 %977
      %979 = vrot.lane.b32.xlu0 %v966, 126
      %v980 = vpop.permute.xlu0 %979
      %vm981 = vcmask 1031168
      %v982 = vsel %vm981, %v978, %v980
      %985 = vrot.lane.b32.xlu0 %v965, 110
      %v986 = vpop.permute.xlu0 %985
      %987 = vrot.lane.b32.xlu0 %v966, 110
      %v988 = vpop.permute.xlu0 %987
      %vm989 = vcmask 900096
      %v990 = vsel %vm989, %v986, %v988
      %993 = vrot.lane.b32.xlu0 %v965, 109
      %v994 = vpop.permute.xlu0 %993
      %995 = vrot.lane.b32.xlu0 %v966, 109
      %v996 = vpop.permute.xlu0 %995
      %vm997 = vcmask 891904
      %v998 = vsel %vm997, %v994, %v996
      %1001 = vrot.lane.b32.xlu0 %v965, 108
      %v1002 = vpop.permute.xlu0 %1001
      %1003 = vrot.lane.b32.xlu0 %v966, 108
      %v1004 = vpop.permute.xlu0 %1003
      %vm1005 = vcmask 883712
      %v1006 = vsel %vm1005, %v1002, %v1004
      %1009 = vrot.lane.b32.xlu0 %v965, 92
      %v1010 = vpop.permute.xlu0 %1009
      %1011 = vrot.lane.b32.xlu0 %v966, 92
      %v1012 = vpop.permute.xlu0 %1011
      %vm1013 = vcmask 752640
      %v1014 = vsel %vm1013, %v1010, %v1012
      %1017 = vrot.lane.b32.xlu0 %v965, 91
      %v1018 = vpop.permute.xlu0 %1017
      %1019 = vrot.lane.b32.xlu0 %v966, 91
      %v1020 = vpop.permute.xlu0 %1019
      %vm1021 = vcmask 744448
      %v1022 = vsel %vm1021, %v1018, %v1020
      %1025 = vrot.lane.b32.xlu0 %v965, 90
      %v1026 = vpop.permute.xlu0 %1025
      %1027 = vrot.lane.b32.xlu0 %v966, 90
      %v1028 = vpop.permute.xlu0 %1027
      %vm1029 = vcmask 736256
      %v1030 = vsel %vm1029, %v1026, %v1028
      %1034 = vset.pattern.permute.xlu0 0
      %1035 = vperm.xlu0 %1034, %v961
      %v1036 = vpop.permute.xlu0 %1035
      %1039 = vset.pattern.permute.xlu0 0
      %1040 = vperm.xlu0 %1039, %v962
      %v1041 = vpop.permute.xlu0 %1040
      %1044 = vset.pattern.permute.xlu0 0
      %1045 = vperm.xlu0 %1044, %v963
      %v1046 = vpop.permute.xlu0 %1045
      %1049 = vset.pattern.permute.xlu0 0
      %1050 = vperm.xlu0 %1049, %v964
      %v1051 = vpop.permute.xlu0 %1050
      %v1057 = vunpack.c.l.b16 %v957
      %v1058 = vunpack.c.h.b16 %v957
      %v1059 = vunpack.c.l.b16 %v958
      %v1060 = vunpack.c.h.b16 %v958
      %v1061 = vunpack.c.l.b16 %v959
      %v1062 = vunpack.c.h.b16 %v959
      %v1063 = vunpack.c.l.b16 %v960
      %v1064 = vunpack.c.h.b16 %v960
      %v1065 = vpack.c.b16 %v1059, %v1057
      %v1066 = vpack.c.b16 %v1060, %v1058
      %v1067 = vpack.c.b16 %v1063, %v1061
      %v1068 = vpack.c.b16 %v1064, %v1062
      %vm1071 = vcmask 130048
      %v1073 = vsel %vm1071, %v1066, 0
      %v1076 = vsel %vm1071, %v1068, 0
      %1078 = vmatprep.subr.bf16.mxu0 %v1020
      %1079 = vmatpush1.bf16.msra.mxu0 %v1022
      %1080 = vmatprep.subr.bf16.mxu0 %v1012
      %1081 = vmatpush1.bf16.msra.mxu0 %v1014
      %1082 = vmatprep.subr.bf16.mxu0 %v1004
      %1083 = vmatpush1.bf16.msra.mxu0 %v1006
      %1084 = vmatprep.subr.bf16.mxu0 %v996
      %1085 = vmatpush1.bf16.msra.mxu0 %v998
      %1086 = vmatprep.subr.bf16.mxu0 %v988
      %1087 = vmatpush1.bf16.msra.mxu0 %v990
      %1088 = vmatprep.subr.bf16.mxu0 %v980
      %1089 = vmatpush1.bf16.msra.mxu0 %v982
      %1090 = vmatprep.subr.bf16.mxu0 %v972
      %1091 = vmatpush1.bf16.msra.mxu0 %v974
      %1092 = vmatprep.subr.bf16.mxu0 %v966
      %1093 = vmatpush1.bf16.msra.mxu0 %v965
      %1094 = vmatprep.subr.bf16.mxu0 0
      %1095 = vmatpush2.bf16.msra.mxu0 0
      %1096 = vmatprep.subr.bf16.mxu0 0
      %1097 = vmatpush2.bf16.msra.mxu0 0
      %1098 = vmatprep.subr.bf16.mxu0 0
      %1099 = vmatpush2.bf16.msra.mxu0 0
      %1100 = vmatprep.subr.bf16.mxu0 0
      %1101 = vmatpush2.bf16.msra.mxu0 0
      %1102 = vmatprep.subr.bf16.mxu0 0
      %1103 = vmatpush2.bf16.msra.mxu0 0
      %1104 = vmatprep.subr.bf16.mxu0 0
      %1105 = vmatpush2.bf16.msra.mxu0 0
      %1106 = vmatprep.subr.bf16.mxu0 0
      %1107 = vmatpush2.bf16.msra.mxu0 0
      %1108 = vmatprep.subr.bf16.mxu0 %v1028
      %1109 = vmatpush2.bf16.msra.mxu0 %v1030
      %1110 = vmatprep.mubr.bf16.mxu0 %v1073
      %1111 = vmatmul.mubr.bf16.gmra.mxu0 %v1065
      %v1112 = vpop.f32.mrf.mxu0
      %v1113 = vadd.f32 %v1036, %v1112
      %v1114 = vpop.f32.mrf.mxu0
      %v1115 = vadd.f32 %v1036, %v1114
      %v1116 = vpop.f32.mrf.mxu0
      %v1117 = vadd.f32 %v1041, %v1116
      %v1118 = vpop.f32.mrf.mxu0
      %v1119 = vadd.f32 %v1041, %v1118
      %1120 = vmatprep.mubr.bf16.mxu0 %v1076
      %1121 = vmatmul.mubr.bf16.gmra.mxu0 %v1067
      %v1122 = vpop.f32.mrf.mxu0
      %v1123 = vadd.f32 %v1046, %v1122
      %v1124 = vpop.f32.mrf.mxu0
      %v1125 = vadd.f32 %v1046, %v1124
      %v1126 = vpop.f32.mrf.mxu0
      %v1127 = vadd.f32 %v1051, %v1126
      %v1128 = vpop.f32.mrf.mxu0
      %v1129 = vadd.f32 %v1051, %v1128
      %1130 = vdwg.mxu0
      %v1131 = vmax.f32 %v1113, 0.0
      %v1132 = vmax.f32 %v1115, 0.0
      %v1133 = vmax.f32 %v1117, 0.0
      %v1134 = vmax.f32 %v1119, 0.0
      %v1135 = vmax.f32 %v1123, 0.0
      %v1136 = vmax.f32 %v1125, 0.0
      %v1137 = vmax.f32 %v1127, 0.0
      %v1138 = vmax.f32 %v1129, 0.0
      %v1139 = vld [vmem:[%s5] sm:$0x3f]
      %v1140 = vld [vmem:[%s6] sm:$0x7]
      %v1141 = vpack.c.bf16 %v1133, %v1131
      %v1142 = vpack.c.bf16 %v1134, %v1132
      %v1143 = vpack.c.bf16 %v1137, %v1135
      %v1144 = vpack.c.bf16 %v1138, %v1136
      %1149 = vrot.lane.b32.xlu0 %v1141, 127
      %v1150 = vpop.permute.xlu0 %1149
      %1151 = vrot.lane.b32.xlu0 %v1142, 127
      %v1152 = vpop.permute.xlu0 %1151
      %1153 = vrot.lane.b32.xlu0 %v1143, 127
      %v1154 = vpop.permute.xlu0 %1153
      %1155 = vrot.lane.b32.xlu0 %v1144, 127
      %v1156 = vpop.permute.xlu0 %1155
      %v1157 = vsel %vm973, %v1150, %v1152
      %v1158 = vsel %vm973, %v1154, %v1156
      %1163 = vrot.lane.b32.xlu0 %v1141, 126
      %v1164 = vpop.permute.xlu0 %1163
      %1165 = vrot.lane.b32.xlu0 %v1142, 126
      %v1166 = vpop.permute.xlu0 %1165
      %1167 = vrot.lane.b32.xlu0 %v1143, 126
      %v1168 = vpop.permute.xlu0 %1167
      %1169 = vrot.lane.b32.xlu0 %v1144, 126
      %v1170 = vpop.permute.xlu0 %1169
      %v1171 = vsel %vm981, %v1164, %v1166
      %v1172 = vsel %vm981, %v1168, %v1170
      %1177 = vrot.lane.b32.xlu0 %v1141, 110
      %v1178 = vpop.permute.xlu0 %1177
      %1179 = vrot.lane.b32.xlu0 %v1142, 110
      %v1180 = vpop.permute.xlu0 %1179
      %1181 = vrot.lane.b32.xlu0 %v1143, 110
      %v1182 = vpop.permute.xlu0 %1181
      %1183 = vrot.lane.b32.xlu0 %v1144, 110
      %v1184 = vpop.permute.xlu0 %1183
      %v1185 = vsel %vm989, %v1178, %v1180
      %v1186 = vsel %vm989, %v1182, %v1184
      %1191 = vrot.lane.b32.xlu0 %v1141, 109
      %v1192 = vpop.permute.xlu0 %1191
      %1193 = vrot.lane.b32.xlu0 %v1142, 109
      %v1194 = vpop.permute.xlu0 %1193
      %1195 = vrot.lane.b32.xlu0 %v1143, 109
      %v1196 = vpop.permute.xlu0 %1195
      %1197 = vrot.lane.b32.xlu0 %v1144, 109
      %v1198 = vpop.permute.xlu0 %1197
      %v1199 = vsel %vm997, %v1192, %v1194
      %v1200 = vsel %vm997, %v1196, %v1198
      %1205 = vrot.lane.b32.xlu0 %v1141, 108
      %v1206 = vpop.permute.xlu0 %1205
      %1207 = vrot.lane.b32.xlu0 %v1142, 108
      %v1208 = vpop.permute.xlu0 %1207
      %1209 = vrot.lane.b32.xlu0 %v1143, 108
      %v1210 = vpop.permute.xlu0 %1209
      %1211 = vrot.lane.b32.xlu0 %v1144, 108
      %v1212 = vpop.permute.xlu0 %1211
      %v1213 = vsel %vm1005, %v1206, %v1208
      %v1214 = vsel %vm1005, %v1210, %v1212
      %1219 = vrot.lane.b32.xlu0 %v1141, 92
      %v1220 = vpop.permute.xlu0 %1219
      %1221 = vrot.lane.b32.xlu0 %v1142, 92
      %v1222 = vpop.permute.xlu0 %1221
      %1223 = vrot.lane.b32.xlu0 %v1143, 92
      %v1224 = vpop.permute.xlu0 %1223
      %1225 = vrot.lane.b32.xlu0 %v1144, 92
      %v1226 = vpop.permute.xlu0 %1225
      %v1227 = vsel %vm1013, %v1220, %v1222
      %v1228 = vsel %vm1013, %v1224, %v1226
      %1233 = vrot.lane.b32.xlu0 %v1141, 91
      %v1234 = vpop.permute.xlu0 %1233
      %1235 = vrot.lane.b32.xlu0 %v1142, 91
      %v1236 = vpop.permute.xlu0 %1235
      %1237 = vrot.lane.b32.xlu0 %v1143, 91
      %v1238 = vpop.permute.xlu0 %1237
      %1239 = vrot.lane.b32.xlu0 %v1144, 91
      %v1240 = vpop.permute.xlu0 %1239
      %v1241 = vsel %vm1021, %v1234, %v1236
      %v1242 = vsel %vm1021, %v1238, %v1240
      %1247 = vrot.lane.b32.xlu0 %v1141, 90
      %v1248 = vpop.permute.xlu0 %1247
      %1249 = vrot.lane.b32.xlu0 %v1142, 90
      %v1250 = vpop.permute.xlu0 %1249
      %1251 = vrot.lane.b32.xlu0 %v1143, 90
      %v1252 = vpop.permute.xlu0 %1251
      %1253 = vrot.lane.b32.xlu0 %v1144, 90
      %v1254 = vpop.permute.xlu0 %1253
      %v1255 = vsel %vm1029, %v1248, %v1250
      %v1256 = vsel %vm1029, %v1252, %v1254
      %1262 = vset.pattern.permute.xlu0 0
      %1263 = vperm.xlu0 %1262, %v1140
      %v1264 = vpop.permute.xlu0 %1263
      %v1267 = vcombine.high %v1139, %v1139
      %v1269 = vunpack.c.l.s4 1983009808
      %v1270 = vunpack.c.0.s8 %v1269
      %v1271 = vlaneseq
      %v1272 = vshrl.u32 %v1271, 7
      %v1273 = vsub.s32 %v1270, %v1272
      %v1274 = vrot.slane %v1139, %v1273
      %v1276 = vunpack.c.l.s4 1983009808
      %v1277 = vunpack.c.0.s8 %v1276
      %v1278 = vlaneseq
      %v1279 = vshrl.u32 %v1278, 7
      %v1280 = vsub.s32 %v1277, %v1279
      %v1281 = vrot.slane %v1267, %v1280
      %v1282 = vcombine.high %v1274, %v1274
      %vm1285 = vcmask 261120
      %v1287 = vsel %vm1285, %v1281, 0
      %1289 = vmatprep.subr.bf16.mxu0 %v1184
      %1290 = vmatpush1.bf16.msra.mxu0 %v1186
      %1291 = vmatprep.subr.bf16.mxu0 %v1180
      %1292 = vmatpush1.bf16.msra.mxu0 %v1185
      %1293 = vmatprep.subr.bf16.mxu0 %v1170
      %1294 = vmatpush1.bf16.msra.mxu0 %v1172
      %1295 = vmatprep.subr.bf16.mxu0 %v1166
      %1296 = vmatpush1.bf16.msra.mxu0 %v1171
      %1297 = vmatprep.subr.bf16.mxu0 %v1156
      %1298 = vmatpush1.bf16.msra.mxu0 %v1158
      %1299 = vmatprep.subr.bf16.mxu0 %v1152
      %1300 = vmatpush1.bf16.msra.mxu0 %v1157
      %1301 = vmatprep.subr.bf16.mxu0 %v1144
      %1302 = vmatpush1.bf16.msra.mxu0 %v1143
      %1303 = vmatprep.subr.bf16.mxu0 %v1142
      %1304 = vmatpush1.bf16.msra.mxu0 %v1141
      %1305 = vmatprep.subr.bf16.mxu0 %v1240
      %1306 = vmatpush2.bf16.msra.mxu0 %v1242
      %1307 = vmatprep.subr.bf16.mxu0 %v1236
      %1308 = vmatpush2.bf16.msra.mxu0 %v1241
      %1309 = vmatprep.subr.bf16.mxu0 %v1226
      %1310 = vmatpush2.bf16.msra.mxu0 %v1228
      %1311 = vmatprep.subr.bf16.mxu0 %v1222
      %1312 = vmatpush2.bf16.msra.mxu0 %v1227
      %1313 = vmatprep.subr.bf16.mxu0 %v1212
      %1314 = vmatpush2.bf16.msra.mxu0 %v1214
      %1315 = vmatprep.subr.bf16.mxu0 %v1208
      %1316 = vmatpush2.bf16.msra.mxu0 %v1213
      %1317 = vmatprep.subr.bf16.mxu0 %v1198
      %1318 = vmatpush2.bf16.msra.mxu0 %v1200
      %1319 = vmatprep.subr.bf16.mxu0 %v1194
      %1320 = vmatpush2.bf16.msra.mxu0 %v1199
      %1321 = vmatprep.mubr.bf16.mxu0 %v1282
      %1322 = vmatmul.mubr.bf16.gmra.mxu0 %v1274
      %v1323 = vpop.f32.mrf.mxu0
      %v1324 = vadd.f32 %v1264, %v1323
      %v1325 = vpop.f32.mrf.mxu0
      %v1326 = vadd.f32 %v1264, %v1325
      %v1327 = vpop.f32.mrf.mxu0
      %v1328 = vpop.f32.mrf.mxu0
      %1329 = vdwg.mxu0
      %1330 = vmatprep.subr.bf16.mxu0 0
      %1331 = vmatpush1.bf16.msra.mxu0 0
      %1332 = vmatprep.subr.bf16.mxu0 0
      %1333 = vmatpush1.bf16.msra.mxu0 0
      %1334 = vmatprep.subr.bf16.mxu0 0
      %1335 = vmatpush1.bf16.msra.mxu0 0
      %1336 = vmatprep.subr.bf16.mxu0 0
      %1337 = vmatpush1.bf16.msra.mxu0 0
      %1338 = vmatprep.subr.bf16.mxu0 0
      %1339 = vmatpush1.bf16.msra.mxu0 0
      %1340 = vmatprep.subr.bf16.mxu0 0
      %1341 = vmatpush1.bf16.msra.mxu0 0
      %1342 = vmatprep.subr.bf16.mxu0 %v1254
      %1343 = vmatpush1.bf16.msra.mxu0 %v1256
      %1344 = vmatprep.subr.bf16.mxu0 %v1250
      %1345 = vmatpush1.bf16.msra.mxu0 %v1255
      %1346 = vmatprep.subr.bf16.mxu0 0
      %1347 = vmatpush2.bf16.msra.mxu0 0
      %1348 = vmatprep.subr.bf16.mxu0 0
      %1349 = vmatpush2.bf16.msra.mxu0 0
      %1350 = vmatprep.subr.bf16.mxu0 0
      %1351 = vmatpush2.bf16.msra.mxu0 0
      %1352 = vmatprep.subr.bf16.mxu0 0
      %1353 = vmatpush2.bf16.msra.mxu0 0
      %1354 = vmatprep.subr.bf16.mxu0 0
      %1355 = vmatpush2.bf16.msra.mxu0 0
      %1356 = vmatprep.subr.bf16.mxu0 0
      %1357 = vmatpush2.bf16.msra.mxu0 0
      %1358 = vmatprep.subr.bf16.mxu0 0
      %1359 = vmatpush2.bf16.msra.mxu0 0
      %1360 = vmatprep.subr.bf16.mxu0 0
      %1361 = vmatpush2.bf16.msra.mxu0 0
      %1362 = vmatprep.mubr.bf16.mxu0 0
      %1363 = vmatmul.mubr.bf16.gmra.mxu0 %v1287
      %v1364 = vpop.f32.mrf.mxu0
      %v1365 = vadd.f32 %v1324, %v1364
      %v1366 = vpop.f32.mrf.mxu0
      %v1367 = vadd.f32 %v1326, %v1366
      %v1368 = vpop.f32.mrf.mxu0
      %v1369 = vpop.f32.mrf.mxu0
      %1370 = vdwg.mxu0
      %v1371 = vmax.f32 %v1365, 0.0
      %v1372 = vmax.f32 %v1367, 0.0
      %v1373 = vld [vmem:[%s13] sm:$0x3]
      %vm1374 = vcmp.gt.f32.partialorder %v1373, 0.5
      %v1375 = vsel %vm1374, 1, 0
      %v1376 = vlaneseq
      %v1377 = vshrl.u32 %v1376, 7
      %v1378 = vsub.s32 0, %v1377
      %v1379 = vrot.slane %v1375, %v1378
      %v1380 = vlaneseq
      %v1381 = vshrl.u32 %v1380, 7
      %v1382 = vsub.s32 1, %v1381
      %v1383 = vrot.slane %v1375, %v1382
      %vm1384 = vcmp.eq.s32.totalorder %v1379, 1
      %vm1385 = vcmp.eq.s32.totalorder %v1383, 1
      %v1386 = vsel %vm1384, %v1371, -1e+30
      %v1387 = vsel %vm1385, %v1372, -1e+30
      %1390 = vrot.lane.b32.xlu0 %v1386, 19
      %v1391 = vpop.permute.xlu0 %1390
      %1392 = vrot.lane.b32.xlu0 %v1387, 19
      %v1393 = vpop.permute.xlu0 %1392
      %vm1394 = vcmask 154624
      %v1395 = vsel %vm1394, %v1391, %v1393
      %v1398 = vsel %vm1394, -1e+30, %v1391
      %vm1399 = vcmask 515072
      %v1400 = vsel %vm1399, %v1395, -1e+30
      %1403 = vrot.lane.b32.xlu0 %v1398, 127
      %v1404 = vpop.permute.xlu0 %1403
      %1405 = vrot.lane.b32.xlu0 %v1400, 127
      %v1406 = vpop.permute.xlu0 %1405
      %v1407 = vsel %vm618, %v1404, %v1406
      %v1410 = vmax.f32 %v1398, %v1407
      %v1411 = vmax.f32 %v1400, %v1406
      %1412 = vrot.lane.b32.xlu0 %v1398, 126
      %v1413 = vpop.permute.xlu0 %1412
      %1414 = vrot.lane.b32.xlu0 %v1400, 126
      %v1415 = vpop.permute.xlu0 %1414
      %v1416 = vsel %vm653, %v1413, %v1415
      %v1419 = vmax.f32 %v1410, %v1416
      %v1420 = vmax.f32 %v1411, %v1415
      %1421 = vrot.lane.b32.xlu0 %v1398, 110
      %v1422 = vpop.permute.xlu0 %1421
      %1423 = vrot.lane.b32.xlu0 %v1400, 110
      %v1424 = vpop.permute.xlu0 %1423
      %v1425 = vsel %vm701, %v1422, %v1424
      %v1428 = vmax.f32 %v1419, %v1425
      %v1429 = vmax.f32 %v1420, %v1424
      %1430 = vrot.lane.b32.xlu0 %v1398, 109
      %v1431 = vpop.permute.xlu0 %1430
      %1432 = vrot.lane.b32.xlu0 %v1400, 109
      %v1433 = vpop.permute.xlu0 %1432
      %v1434 = vsel %vm746, %v1431, %v1433
      %v1437 = vmax.f32 %v1428, %v1434
      %v1438 = vmax.f32 %v1429, %v1433
      %1439 = vrot.lane.b32.xlu0 %v1398, 108
      %v1440 = vpop.permute.xlu0 %1439
      %1441 = vrot.lane.b32.xlu0 %v1400, 108
      %v1442 = vpop.permute.xlu0 %1441
      %v1443 = vsel %vm791, %v1440, %v1442
      %v1446 = vmax.f32 %v1437, %v1443
      %v1447 = vmax.f32 %v1438, %v1442
      %1448 = vrot.lane.b32.xlu0 %v1398, 92
      %v1449 = vpop.permute.xlu0 %1448
      %1450 = vrot.lane.b32.xlu0 %v1400, 92
      %v1451 = vpop.permute.xlu0 %1450
      %v1452 = vsel %vm836, %v1449, %v1451
      %v1455 = vmax.f32 %v1446, %v1452
      %v1456 = vmax.f32 %v1447, %v1451
      %1457 = vrot.lane.b32.xlu0 %v1398, 91
      %v1458 = vpop.permute.xlu0 %1457
      %1459 = vrot.lane.b32.xlu0 %v1400, 91
      %v1460 = vpop.permute.xlu0 %1459
      %v1461 = vsel %vm881, %v1458, %v1460
      %v1464 = vmax.f32 %v1455, %v1461
      %v1465 = vmax.f32 %v1456, %v1460
      %1466 = vrot.lane.b32.xlu0 %v1398, 90
      %v1467 = vpop.permute.xlu0 %1466
      %1468 = vrot.lane.b32.xlu0 %v1400, 90
      %v1469 = vpop.permute.xlu0 %1468
      %v1470 = vsel %vm926, %v1467, %v1469
      %v1473 = vmax.f32 %v1464, %v1470
      %v1474 = vmax.f32 %v1465, %v1469
      %vm1475 = vcmask 359424
      %v1476 = vsel %vm1475, %v1474, 0.0
      %v1479 = vcombine.low %v1473, %v1476
      %1481 = vst [vmem:[%s554] sm:$0x77] %v1479
      %v1482 = vsel %vm1384, %v1473, 0.0
      %v1483 = vsel %vm1385, %v1474, 0.0
      %1486 = vrot.lane.b32.xlu0 %v1482, 38
      %v1487 = vpop.permute.xlu0 %1486
      %1488 = vrot.lane.b32.xlu0 %v1483, 38
      %v1489 = vpop.permute.xlu0 %1488
      %vm1490 = vcmask 310272
      %v1491 = vsel %vm1490, %v1487, %v1489
      %v1494 = vsel %vm1490, 0.0, %v1487
      %vm1495 = vcmask 670720
      %v1496 = vsel %vm1495, %v1491, 0.0
      %v1497 = vld [vmem:[%s7] sm:$0xff]
      %v1498 = vld [vmem:[%s7 + $0x8] sm:$0xff]
      %v1499 = vld [vmem:[%s7 + $0x10] sm:$0xff]
      %v1500 = vld [vmem:[%s7 + $0x18] sm:$0xff]
      %v1501 = vld [vmem:[%s8] sm:$0xff]
      %v1502 = vld [vmem:[%s8 + $0x8] sm:$0xff]
      %v1503 = vld [vmem:[%s8 + $0x10] sm:$0xff]
      %v1504 = vld [vmem:[%s8 + $0x18] sm:$0xff]
      %1506 = vset.pattern.permute.xlu0 0
      %1507 = vperm.xlu0 %1506, %v1497
      %v1508 = vpop.permute.xlu0 %1507
      %1511 = vset.pattern.permute.xlu0 0
      %1512 = vperm.xlu0 %1511, %v1498
      %v1513 = vpop.permute.xlu0 %1512
      %1516 = vset.pattern.permute.xlu0 0
      %1517 = vperm.xlu0 %1516, %v1499
      %v1518 = vpop.permute.xlu0 %1517
      %1521 = vset.pattern.permute.xlu0 0
      %1522 = vperm.xlu0 %1521, %v1500
      %v1523 = vpop.permute.xlu0 %1522
      %v1525 = vlaneseq
      %v1526 = vshrl.u32 %v1525, 7
      %v1527 = vsub.s32 0, %v1526
      %v1528 = vrot.slane %v1494, %v1527
      %v1529 = vlaneseq
      %v1530 = vshrl.u32 %v1529, 7
      %v1531 = vsub.s32 0, %v1530
      %v1532 = vrot.slane %v1496, %v1531
      %v1533 = vmul.f32 %v1508, %v1528
      %v1534 = vmul.f32 %v1508, %v1532
      %v1535 = vmul.f32 %v1513, %v1528
      %v1536 = vmul.f32 %v1513, %v1532
      %v1537 = vmul.f32 %v1518, %v1528
      %v1538 = vmul.f32 %v1518, %v1532
      %v1539 = vmul.f32 %v1523, %v1528
      %v1540 = vmul.f32 %v1523, %v1532
      %v1541 = vadd.f32 %v1533, 0.0
      %v1542 = vadd.f32 %v1534, 0.0
      %v1543 = vadd.f32 %v1535, 0.0
      %v1544 = vadd.f32 %v1536, 0.0
      %v1545 = vadd.f32 %v1537, 0.0
      %v1546 = vadd.f32 %v1538, 0.0
      %v1547 = vadd.f32 %v1539, 0.0
      %v1548 = vadd.f32 %v1540, 0.0
      %1549 = vset.pattern.permute.xlu0 1
      %1550 = vperm.xlu0 %1549, %v1497
      %v1551 = vpop.permute.xlu0 %1550
      %1553 = vset.pattern.permute.xlu0 1
      %1554 = vperm.xlu0 %1553, %v1498
      %v1555 = vpop.permute.xlu0 %1554
      %1557 = vset.pattern.permute.xlu0 1
      %1558 = vperm.xlu0 %1557, %v1499
      %v1559 = vpop.permute.xlu0 %1558
      %1561 = vset.pattern.permute.xlu0 1
      %1562 = vperm.xlu0 %1561, %v1500
      %v1563 = vpop.permute.xlu0 %1562
      %v1565 = vlaneseq
      %v1566 = vshrl.u32 %v1565, 7
      %v1567 = vsub.s32 1, %v1566
      %v1568 = vrot.slane %v1494, %v1567
      %v1569 = vlaneseq
      %v1570 = vshrl.u32 %v1569, 7
      %v1571 = vsub.s32 1, %v1570
      %v1572 = vrot.slane %v1496, %v1571
      %v1573 = vmul.f32 %v1551, %v1568
      %v1574 = vmul.f32 %v1551, %v1572
      %v1575 = vmul.f32 %v1555, %v1568
      %v1576 = vmul.f32 %v1555, %v1572
      %v1577 = vmul.f32 %v1559, %v1568
      %v1578 = vmul.f32 %v1559, %v1572
      %v1579 = vmul.f32 %v1563, %v1568
      %v1580 = vmul.f32 %v1563, %v1572
      %v1581 = vadd.f32 %v1541, %v1573
      %v1582 = vadd.f32 %v1542, %v1574
      %v1583 = vadd.f32 %v1543, %v1575
      %v1584 = vadd.f32 %v1544, %v1576
      %v1585 = vadd.f32 %v1545, %v1577
      %v1586 = vadd.f32 %v1546, %v1578
      %v1587 = vadd.f32 %v1547, %v1579
      %v1588 = vadd.f32 %v1548, %v1580
      %1589 = vset.pattern.permute.xlu0 2
      %1590 = vperm.xlu0 %1589, %v1497
      %v1591 = vpop.permute.xlu0 %1590
      %1593 = vset.pattern.permute.xlu0 2
      %1594 = vperm.xlu0 %1593, %v1498
      %v1595 = vpop.permute.xlu0 %1594
      %1597 = vset.pattern.permute.xlu0 2
      %1598 = vperm.xlu0 %1597, %v1499
      %v1599 = vpop.permute.xlu0 %1598
      %1601 = vset.pattern.permute.xlu0 2
      %1602 = vperm.xlu0 %1601, %v1500
      %v1603 = vpop.permute.xlu0 %1602
      %v1605 = vlaneseq
      %v1606 = vshrl.u32 %v1605, 7
      %v1607 = vsub.s32 2, %v1606
      %v1608 = vrot.slane %v1494, %v1607
      %v1609 = vlaneseq
      %v1610 = vshrl.u32 %v1609, 7
      %v1611 = vsub.s32 2, %v1610
      %v1612 = vrot.slane %v1496, %v1611
      %v1613 = vmul.f32 %v1591, %v1608
      %v1614 = vmul.f32 %v1591, %v1612
      %v1615 = vmul.f32 %v1595, %v1608
      %v1616 = vmul.f32 %v1595, %v1612
      %v1617 = vmul.f32 %v1599, %v1608
      %v1618 = vmul.f32 %v1599, %v1612
      %v1619 = vmul.f32 %v1603, %v1608
      %v1620 = vmul.f32 %v1603, %v1612
      %v1621 = vadd.f32 %v1581, %v1613
      %v1622 = vadd.f32 %v1582, %v1614
      %v1623 = vadd.f32 %v1583, %v1615
      %v1624 = vadd.f32 %v1584, %v1616
      %v1625 = vadd.f32 %v1585, %v1617
      %v1626 = vadd.f32 %v1586, %v1618
      %v1627 = vadd.f32 %v1587, %v1619
      %v1628 = vadd.f32 %v1588, %v1620
      %1629 = vset.pattern.permute.xlu0 3
      %1630 = vperm.xlu0 %1629, %v1497
      %v1631 = vpop.permute.xlu0 %1630
      %1633 = vset.pattern.permute.xlu0 3
      %1634 = vperm.xlu0 %1633, %v1498
      %v1635 = vpop.permute.xlu0 %1634
      %1637 = vset.pattern.permute.xlu0 3
      %1638 = vperm.xlu0 %1637, %v1499
      %v1639 = vpop.permute.xlu0 %1638
      %1641 = vset.pattern.permute.xlu0 3
      %1642 = vperm.xlu0 %1641, %v1500
      %v1643 = vpop.permute.xlu0 %1642
      %v1645 = vmul.f32 %v1631, %v1528
      %v1646 = vmul.f32 %v1631, %v1532
      %v1647 = vmul.f32 %v1635, %v1528
      %v1648 = vmul.f32 %v1635, %v1532
      %v1649 = vmul.f32 %v1639, %v1528
      %v1650 = vmul.f32 %v1639, %v1532
      %v1651 = vmul.f32 %v1643, %v1528
      %v1652 = vmul.f32 %v1643, %v1532
      %1661 = vrot.lane.b32.xlu0 %v1645, 127
      %v1662 = vpop.permute.xlu0 %1661
      %1663 = vrot.lane.b32.xlu0 %v1646, 127
      %v1664 = vpop.permute.xlu0 %1663
      %1665 = vrot.lane.b32.xlu0 %v1647, 127
      %v1666 = vpop.permute.xlu0 %1665
      %1667 = vrot.lane.b32.xlu0 %v1648, 127
      %v1668 = vpop.permute.xlu0 %1667
      %1669 = vrot.lane.b32.xlu0 %v1649, 127
      %v1670 = vpop.permute.xlu0 %1669
      %1671 = vrot.lane.b32.xlu0 %v1650, 127
      %v1672 = vpop.permute.xlu0 %1671
      %1673 = vrot.lane.b32.xlu0 %v1651, 127
      %v1674 = vpop.permute.xlu0 %1673
      %1675 = vrot.lane.b32.xlu0 %v1652, 127
      %v1676 = vpop.permute.xlu0 %1675
      %v1677 = vsel %vm618, %v1662, %v1664
      %v1678 = vsel %vm618, %v1666, %v1668
      %v1679 = vsel %vm618, %v1670, %v1672
      %v1680 = vsel %vm618, %v1674, %v1676
      %v1689 = vadd.f32 %v1621, %v1677
      %v1690 = vadd.f32 %v1622, %v1664
      %v1691 = vadd.f32 %v1623, %v1678
      %v1692 = vadd.f32 %v1624, %v1668
      %v1693 = vadd.f32 %v1625, %v1679
      %v1694 = vadd.f32 %v1626, %v1672
      %v1695 = vadd.f32 %v1627, %v1680
      %v1696 = vadd.f32 %v1628, %v1676
      %1697 = vset.pattern.permute.xlu0 4
      %1698 = vperm.xlu0 %1697, %v1497
      %v1699 = vpop.permute.xlu0 %1698
      %1701 = vset.pattern.permute.xlu0 4
      %1702 = vperm.xlu0 %1701, %v1498
      %v1703 = vpop.permute.xlu0 %1702
      %1705 = vset.pattern.permute.xlu0 4
      %1706 = vperm.xlu0 %1705, %v1499
      %v1707 = vpop.permute.xlu0 %1706
      %1709 = vset.pattern.permute.xlu0 4
      %1710 = vperm.xlu0 %1709, %v1500
      %v1711 = vpop.permute.xlu0 %1710
      %v1713 = vmul.f32 %v1699, %v1568
      %v1714 = vmul.f32 %v1699, %v1572
      %v1715 = vmul.f32 %v1703, %v1568
      %v1716 = vmul.f32 %v1703, %v1572
      %v1717 = vmul.f32 %v1707, %v1568
      %v1718 = vmul.f32 %v1707, %v1572
      %v1719 = vmul.f32 %v1711, %v1568
      %v1720 = vmul.f32 %v1711, %v1572
      %1729 = vrot.lane.b32.xlu0 %v1713, 127
      %v1730 = vpop.permute.xlu0 %1729
      %1731 = vrot.lane.b32.xlu0 %v1714, 127
      %v1732 = vpop.permute.xlu0 %1731
      %1733 = vrot.lane.b32.xlu0 %v1715, 127
      %v1734 = vpop.permute.xlu0 %1733
      %1735 = vrot.lane.b32.xlu0 %v1716, 127
      %v1736 = vpop.permute.xlu0 %1735
      %1737 = vrot.lane.b32.xlu0 %v1717, 127
      %v1738 = vpop.permute.xlu0 %1737
      %1739 = vrot.lane.b32.xlu0 %v1718, 127
      %v1740 = vpop.permute.xlu0 %1739
      %1741 = vrot.lane.b32.xlu0 %v1719, 127
      %v1742 = vpop.permute.xlu0 %1741
      %1743 = vrot.lane.b32.xlu0 %v1720, 127
      %v1744 = vpop.permute.xlu0 %1743
      %v1745 = vsel %vm618, %v1730, %v1732
      %v1746 = vsel %vm618, %v1734, %v1736
      %v1747 = vsel %vm618, %v1738, %v1740
      %v1748 = vsel %vm618, %v1742, %v1744
      %v1757 = vadd.f32 %v1689, %v1745
      %v1758 = vadd.f32 %v1690, %v1732
      %v1759 = vadd.f32 %v1691, %v1746
      %v1760 = vadd.f32 %v1692, %v1736
      %v1761 = vadd.f32 %v1693, %v1747
      %v1762 = vadd.f32 %v1694, %v1740
      %v1763 = vadd.f32 %v1695, %v1748
      %v1764 = vadd.f32 %v1696, %v1744
      %1765 = vset.pattern.permute.xlu0 5
      %1766 = vperm.xlu0 %1765, %v1497
      %v1767 = vpop.permute.xlu0 %1766
      %1769 = vset.pattern.permute.xlu0 5
      %1770 = vperm.xlu0 %1769, %v1498
      %v1771 = vpop.permute.xlu0 %1770
      %1773 = vset.pattern.permute.xlu0 5
      %1774 = vperm.xlu0 %1773, %v1499
      %v1775 = vpop.permute.xlu0 %1774
      %1777 = vset.pattern.permute.xlu0 5
      %1778 = vperm.xlu0 %1777, %v1500
      %v1779 = vpop.permute.xlu0 %1778
      %v1781 = vmul.f32 %v1767, %v1608
      %v1782 = vmul.f32 %v1767, %v1612
      %v1783 = vmul.f32 %v1771, %v1608
      %v1784 = vmul.f32 %v1771, %v1612
      %v1785 = vmul.f32 %v1775, %v1608
      %v1786 = vmul.f32 %v1775, %v1612
      %v1787 = vmul.f32 %v1779, %v1608
      %v1788 = vmul.f32 %v1779, %v1612
      %1797 = vrot.lane.b32.xlu0 %v1781, 127
      %v1798 = vpop.permute.xlu0 %1797
      %1799 = vrot.lane.b32.xlu0 %v1782, 127
      %v1800 = vpop.permute.xlu0 %1799
      %1801 = vrot.lane.b32.xlu0 %v1783, 127
      %v1802 = vpop.permute.xlu0 %1801
      %1803 = vrot.lane.b32.xlu0 %v1784, 127
      %v1804 = vpop.permute.xlu0 %1803
      %1805 = vrot.lane.b32.xlu0 %v1785, 127
      %v1806 = vpop.permute.xlu0 %1805
      %1807 = vrot.lane.b32.xlu0 %v1786, 127
      %v1808 = vpop.permute.xlu0 %1807
      %1809 = vrot.lane.b32.xlu0 %v1787, 127
      %v1810 = vpop.permute.xlu0 %1809
      %1811 = vrot.lane.b32.xlu0 %v1788, 127
      %v1812 = vpop.permute.xlu0 %1811
      %v1813 = vsel %vm618, %v1798, %v1800
      %v1814 = vsel %vm618, %v1802, %v1804
      %v1815 = vsel %vm618, %v1806, %v1808
      %v1816 = vsel %vm618, %v1810, %v1812
      %v1825 = vadd.f32 %v1757, %v1813
      %v1826 = vadd.f32 %v1758, %v1800
      %v1827 = vadd.f32 %v1759, %v1814
      %v1828 = vadd.f32 %v1760, %v1804
      %v1829 = vadd.f32 %v1761, %v1815
      %v1830 = vadd.f32 %v1762, %v1808
      %v1831 = vadd.f32 %v1763, %v1816
      %v1832 = vadd.f32 %v1764, %v1812
      %1833 = vset.pattern.permute.xlu0 6
      %1834 = vperm.xlu0 %1833, %v1497
      %v1835 = vpop.permute.xlu0 %1834
      %1837 = vset.pattern.permute.xlu0 6
      %1838 = vperm.xlu0 %1837, %v1498
      %v1839 = vpop.permute.xlu0 %1838
      %1841 = vset.pattern.permute.xlu0 6
      %1842 = vperm.xlu0 %1841, %v1499
      %v1843 = vpop.permute.xlu0 %1842
      %1845 = vset.pattern.permute.xlu0 6
      %1846 = vperm.xlu0 %1845, %v1500
      %v1847 = vpop.permute.xlu0 %1846
      %v1849 = vmul.f32 %v1835, %v1528
      %v1850 = vmul.f32 %v1835, %v1532
      %v1851 = vmul.f32 %v1839, %v1528
      %v1852 = vmul.f32 %v1839, %v1532
      %v1853 = vmul.f32 %v1843, %v1528
      %v1854 = vmul.f32 %v1843, %v1532
      %v1855 = vmul.f32 %v1847, %v1528
      %v1856 = vmul.f32 %v1847, %v1532
      %1865 = vrot.lane.b32.xlu0 %v1849, 126
      %v1866 = vpop.permute.xlu0 %1865
      %1867 = vrot.lane.b32.xlu0 %v1850, 126
      %v1868 = vpop.permute.xlu0 %1867
      %1869 = vrot.lane.b32.xlu0 %v1851, 126
      %v1870 = vpop.permute.xlu0 %1869
      %1871 = vrot.lane.b32.xlu0 %v1852, 126
      %v1872 = vpop.permute.xlu0 %1871
      %1873 = vrot.lane.b32.xlu0 %v1853, 126
      %v1874 = vpop.permute.xlu0 %1873
      %1875 = vrot.lane.b32.xlu0 %v1854, 126
      %v1876 = vpop.permute.xlu0 %1875
      %1877 = vrot.lane.b32.xlu0 %v1855, 126
      %v1878 = vpop.permute.xlu0 %1877
      %1879 = vrot.lane.b32.xlu0 %v1856, 126
      %v1880 = vpop.permute.xlu0 %1879
      %v1881 = vsel %vm653, %v1866, %v1868
      %v1882 = vsel %vm653, %v1870, %v1872
      %v1883 = vsel %vm653, %v1874, %v1876
      %v1884 = vsel %vm653, %v1878, %v1880
      %v1893 = vadd.f32 %v1825, %v1881
      %v1894 = vadd.f32 %v1826, %v1868
      %v1895 = vadd.f32 %v1827, %v1882
      %v1896 = vadd.f32 %v1828, %v1872
      %v1897 = vadd.f32 %v1829, %v1883
      %v1898 = vadd.f32 %v1830, %v1876
      %v1899 = vadd.f32 %v1831, %v1884
      %v1900 = vadd.f32 %v1832, %v1880
      %1901 = vset.pattern.permute.xlu0 7
      %1902 = vperm.xlu0 %1901, %v1497
      %v1903 = vpop.permute.xlu0 %1902
      %1905 = vset.pattern.permute.xlu0 7
      %1906 = vperm.xlu0 %1905, %v1498
      %v1907 = vpop.permute.xlu0 %1906
      %1909 = vset.pattern.permute.xlu0 7
      %1910 = vperm.xlu0 %1909, %v1499
      %v1911 = vpop.permute.xlu0 %1910
      %1913 = vset.pattern.permute.xlu0 7
      %1914 = vperm.xlu0 %1913, %v1500
      %v1915 = vpop.permute.xlu0 %1914
      %v1917 = vmul.f32 %v1903, %v1568
      %v1918 = vmul.f32 %v1903, %v1572
      %v1919 = vmul.f32 %v1907, %v1568
      %v1920 = vmul.f32 %v1907, %v1572
      %v1921 = vmul.f32 %v1911, %v1568
      %v1922 = vmul.f32 %v1911, %v1572
      %v1923 = vmul.f32 %v1915, %v1568
      %v1924 = vmul.f32 %v1915, %v1572
      %1933 = vrot.lane.b32.xlu0 %v1917, 126
      %v1934 = vpop.permute.xlu0 %1933
      %1935 = vrot.lane.b32.xlu0 %v1918, 126
      %v1936 = vpop.permute.xlu0 %1935
      %1937 = vrot.lane.b32.xlu0 %v1919, 126
      %v1938 = vpop.permute.xlu0 %1937
      %1939 = vrot.lane.b32.xlu0 %v1920, 126
      %v1940 = vpop.permute.xlu0 %1939
      %1941 = vrot.lane.b32.xlu0 %v1921, 126
      %v1942 = vpop.permute.xlu0 %1941
      %1943 = vrot.lane.b32.xlu0 %v1922, 126
      %v1944 = vpop.permute.xlu0 %1943
      %1945 = vrot.lane.b32.xlu0 %v1923, 126
      %v1946 = vpop.permute.xlu0 %1945
      %1947 = vrot.lane.b32.xlu0 %v1924, 126
      %v1948 = vpop.permute.xlu0 %1947
      %v1949 = vsel %vm653, %v1934, %v1936
      %v1950 = vsel %vm653, %v1938, %v1940
      %v1951 = vsel %vm653, %v1942, %v1944
      %v1952 = vsel %vm653, %v1946, %v1948
      %v1961 = vadd.f32 %v1893, %v1949
      %v1962 = vadd.f32 %v1894, %v1936
      %v1963 = vadd.f32 %v1895, %v1950
      %v1964 = vadd.f32 %v1896, %v1940
      %v1965 = vadd.f32 %v1897, %v1951
      %v1966 = vadd.f32 %v1898, %v1944
      %v1967 = vadd.f32 %v1899, %v1952
      %v1968 = vadd.f32 %v1900, %v1948
      %1969 = vset.pattern.permute.xlu0 8
      %1970 = vperm.xlu0 %1969, %v1497
      %v1971 = vpop.permute.xlu0 %1970
      %1973 = vset.pattern.permute.xlu0 8
      %1974 = vperm.xlu0 %1973, %v1498
      %v1975 = vpop.permute.xlu0 %1974
      %1977 = vset.pattern.permute.xlu0 8
      %1978 = vperm.xlu0 %1977, %v1499
      %v1979 = vpop.permute.xlu0 %1978
      %1981 = vset.pattern.permute.xlu0 8
      %1982 = vperm.xlu0 %1981, %v1500
      %v1983 = vpop.permute.xlu0 %1982
      %v1985 = vmul.f32 %v1971, %v1608
      %v1986 = vmul.f32 %v1971, %v1612
      %v1987 = vmul.f32 %v1975, %v1608
      %v1988 = vmul.f32 %v1975, %v1612
      %v1989 = vmul.f32 %v1979, %v1608
      %v1990 = vmul.f32 %v1979, %v1612
      %v1991 = vmul.f32 %v1983, %v1608
      %v1992 = vmul.f32 %v1983, %v1612
      %2001 = vrot.lane.b32.xlu0 %v1985, 126
      %v2002 = vpop.permute.xlu0 %2001
      %2003 = vrot.lane.b32.xlu0 %v1986, 126
      %v2004 = vpop.permute.xlu0 %2003
      %2005 = vrot.lane.b32.xlu0 %v1987, 126
      %v2006 = vpop.permute.xlu0 %2005
      %2007 = vrot.lane.b32.xlu0 %v1988, 126
      %v2008 = vpop.permute.xlu0 %2007
      %2009 = vrot.lane.b32.xlu0 %v1989, 126
      %v2010 = vpop.permute.xlu0 %2009
      %2011 = vrot.lane.b32.xlu0 %v1990, 126
      %v2012 = vpop.permute.xlu0 %2011
      %2013 = vrot.lane.b32.xlu0 %v1991, 126
      %v2014 = vpop.permute.xlu0 %2013
      %2015 = vrot.lane.b32.xlu0 %v1992, 126
      %v2016 = vpop.permute.xlu0 %2015
      %v2017 = vsel %vm653, %v2002, %v2004
      %v2018 = vsel %vm653, %v2006, %v2008
      %v2019 = vsel %vm653, %v2010, %v2012
      %v2020 = vsel %vm653, %v2014, %v2016
      %v2029 = vadd.f32 %v1961, %v2017
      %v2030 = vadd.f32 %v1962, %v2004
      %v2031 = vadd.f32 %v1963, %v2018
      %v2032 = vadd.f32 %v1964, %v2008
      %v2033 = vadd.f32 %v1965, %v2019
      %v2034 = vadd.f32 %v1966, %v2012
      %v2035 = vadd.f32 %v1967, %v2020
      %v2036 = vadd.f32 %v1968, %v2016
      %2037 = vset.pattern.permute.xlu0 9
      %2038 = vperm.xlu0 %2037, %v1497
      %v2039 = vpop.permute.xlu0 %2038
      %2041 = vset.pattern.permute.xlu0 9
      %2042 = vperm.xlu0 %2041, %v1498
      %v2043 = vpop.permute.xlu0 %2042
      %2045 = vset.pattern.permute.xlu0 9
      %2046 = vperm.xlu0 %2045, %v1499
      %v2047 = vpop.permute.xlu0 %2046
      %2049 = vset.pattern.permute.xlu0 9
      %2050 = vperm.xlu0 %2049, %v1500
      %v2051 = vpop.permute.xlu0 %2050
      %v2053 = vmul.f32 %v2039, %v1528
      %v2054 = vmul.f32 %v2039, %v1532
      %v2055 = vmul.f32 %v2043, %v1528
      %v2056 = vmul.f32 %v2043, %v1532
      %v2057 = vmul.f32 %v2047, %v1528
      %v2058 = vmul.f32 %v2047, %v1532
      %v2059 = vmul.f32 %v2051, %v1528
      %v2060 = vmul.f32 %v2051, %v1532
      %2069 = vrot.lane.b32.xlu0 %v2053, 110
      %v2070 = vpop.permute.xlu0 %2069
      %2071 = vrot.lane.b32.xlu0 %v2054, 110
      %v2072 = vpop.permute.xlu0 %2071
      %2073 = vrot.lane.b32.xlu0 %v2055, 110
      %v2074 = vpop.permute.xlu0 %2073
      %2075 = vrot.lane.b32.xlu0 %v2056, 110
      %v2076 = vpop.permute.xlu0 %2075
      %2077 = vrot.lane.b32.xlu0 %v2057, 110
      %v2078 = vpop.permute.xlu0 %2077
      %2079 = vrot.lane.b32.xlu0 %v2058, 110
      %v2080 = vpop.permute.xlu0 %2079
      %2081 = vrot.lane.b32.xlu0 %v2059, 110
      %v2082 = vpop.permute.xlu0 %2081
      %2083 = vrot.lane.b32.xlu0 %v2060, 110
      %v2084 = vpop.permute.xlu0 %2083
      %v2085 = vsel %vm701, %v2070, %v2072
      %v2086 = vsel %vm701, %v2074, %v2076
      %v2087 = vsel %vm701, %v2078, %v2080
      %v2088 = vsel %vm701, %v2082, %v2084
      %v2097 = vadd.f32 %v2029, %v2085
      %v2098 = vadd.f32 %v2030, %v2072
      %v2099 = vadd.f32 %v2031, %v2086
      %v2100 = vadd.f32 %v2032, %v2076
      %v2101 = vadd.f32 %v2033, %v2087
      %v2102 = vadd.f32 %v2034, %v2080
      %v2103 = vadd.f32 %v2035, %v2088
      %v2104 = vadd.f32 %v2036, %v2084
      %2105 = vset.pattern.permute.xlu0 10
      %2106 = vperm.xlu0 %2105, %v1497
      %v2107 = vpop.permute.xlu0 %2106
      %2109 = vset.pattern.permute.xlu0 10
      %2110 = vperm.xlu0 %2109, %v1498
      %v2111 = vpop.permute.xlu0 %2110
      %2113 = vset.pattern.permute.xlu0 10
      %2114 = vperm.xlu0 %2113, %v1499
      %v2115 = vpop.permute.xlu0 %2114
      %2117 = vset.pattern.permute.xlu0 10
      %2118 = vperm.xlu0 %2117, %v1500
      %v2119 = vpop.permute.xlu0 %2118
      %v2121 = vmul.f32 %v2107, %v1568
      %v2122 = vmul.f32 %v2107, %v1572
      %v2123 = vmul.f32 %v2111, %v1568
      %v2124 = vmul.f32 %v2111, %v1572
      %v2125 = vmul.f32 %v2115, %v1568
      %v2126 = vmul.f32 %v2115, %v1572
      %v2127 = vmul.f32 %v2119, %v1568
      %v2128 = vmul.f32 %v2119, %v1572
      %2137 = vrot.lane.b32.xlu0 %v2121, 110
      %v2138 = vpop.permute.xlu0 %2137
      %2139 = vrot.lane.b32.xlu0 %v2122, 110
      %v2140 = vpop.permute.xlu0 %2139
      %2141 = vrot.lane.b32.xlu0 %v2123, 110
      %v2142 = vpop.permute.xlu0 %2141
      %2143 = vrot.lane.b32.xlu0 %v2124, 110
      %v2144 = vpop.permute.xlu0 %2143
      %2145 = vrot.lane.b32.xlu0 %v2125, 110
      %v2146 = vpop.permute.xlu0 %2145
      %2147 = vrot.lane.b32.xlu0 %v2126, 110
      %v2148 = vpop.permute.xlu0 %2147
      %2149 = vrot.lane.b32.xlu0 %v2127, 110
      %v2150 = vpop.permute.xlu0 %2149
      %2151 = vrot.lane.b32.xlu0 %v2128, 110
      %v2152 = vpop.permute.xlu0 %2151
      %v2153 = vsel %vm701, %v2138, %v2140
      %v2154 = vsel %vm701, %v2142, %v2144
      %v2155 = vsel %vm701, %v2146, %v2148
      %v2156 = vsel %vm701, %v2150, %v2152
      %v2165 = vadd.f32 %v2097, %v2153
      %v2166 = vadd.f32 %v2098, %v2140
      %v2167 = vadd.f32 %v2099, %v2154
      %v2168 = vadd.f32 %v2100, %v2144
      %v2169 = vadd.f32 %v2101, %v2155
      %v2170 = vadd.f32 %v2102, %v2148
      %v2171 = vadd.f32 %v2103, %v2156
      %v2172 = vadd.f32 %v2104, %v2152
      %2173 = vset.pattern.permute.xlu0 11
      %2174 = vperm.xlu0 %2173, %v1497
      %v2175 = vpop.permute.xlu0 %2174
      %2177 = vset.pattern.permute.xlu0 11
      %2178 = vperm.xlu0 %2177, %v1498
      %v2179 = vpop.permute.xlu0 %2178
      %2181 = vset.pattern.permute.xlu0 11
      %2182 = vperm.xlu0 %2181, %v1499
      %v2183 = vpop.permute.xlu0 %2182
      %2185 = vset.pattern.permute.xlu0 11
      %2186 = vperm.xlu0 %2185, %v1500
      %v2187 = vpop.permute.xlu0 %2186
      %v2189 = vmul.f32 %v2175, %v1608
      %v2190 = vmul.f32 %v2175, %v1612
      %v2191 = vmul.f32 %v2179, %v1608
      %v2192 = vmul.f32 %v2179, %v1612
      %v2193 = vmul.f32 %v2183, %v1608
      %v2194 = vmul.f32 %v2183, %v1612
      %v2195 = vmul.f32 %v2187, %v1608
      %v2196 = vmul.f32 %v2187, %v1612
      %2205 = vrot.lane.b32.xlu0 %v2189, 110
      %v2206 = vpop.permute.xlu0 %2205
      %2207 = vrot.lane.b32.xlu0 %v2190, 110
      %v2208 = vpop.permute.xlu0 %2207
      %2209 = vrot.lane.b32.xlu0 %v2191, 110
      %v2210 = vpop.permute.xlu0 %2209
      %2211 = vrot.lane.b32.xlu0 %v2192, 110
      %v2212 = vpop.permute.xlu0 %2211
      %2213 = vrot.lane.b32.xlu0 %v2193, 110
      %v2214 = vpop.permute.xlu0 %2213
      %2215 = vrot.lane.b32.xlu0 %v2194, 110
      %v2216 = vpop.permute.xlu0 %2215
      %2217 = vrot.lane.b32.xlu0 %v2195, 110
      %v2218 = vpop.permute.xlu0 %2217
      %2219 = vrot.lane.b32.xlu0 %v2196, 110
      %v2220 = vpop.permute.xlu0 %2219
      %v2221 = vsel %vm701, %v2206, %v2208
      %v2222 = vsel %vm701, %v2210, %v2212
      %v2223 = vsel %vm701, %v2214, %v2216
      %v2224 = vsel %vm701, %v2218, %v2220
      %v2233 = vadd.f32 %v2165, %v2221
      %v2234 = vadd.f32 %v2166, %v2208
      %v2235 = vadd.f32 %v2167, %v2222
      %v2236 = vadd.f32 %v2168, %v2212
      %v2237 = vadd.f32 %v2169, %v2223
      %v2238 = vadd.f32 %v2170, %v2216
      %v2239 = vadd.f32 %v2171, %v2224
      %v2240 = vadd.f32 %v2172, %v2220
      %2241 = vset.pattern.permute.xlu0 12
      %2242 = vperm.xlu0 %2241, %v1497
      %v2243 = vpop.permute.xlu0 %2242
      %2245 = vset.pattern.permute.xlu0 12
      %2246 = vperm.xlu0 %2245, %v1498
      %v2247 = vpop.permute.xlu0 %2246
      %2249 = vset.pattern.permute.xlu0 12
      %2250 = vperm.xlu0 %2249, %v1499
      %v2251 = vpop.permute.xlu0 %2250
      %2253 = vset.pattern.permute.xlu0 12
      %2254 = vperm.xlu0 %2253, %v1500
      %v2255 = vpop.permute.xlu0 %2254
      %v2257 = vmul.f32 %v2243, %v1528
      %v2258 = vmul.f32 %v2243, %v1532
      %v2259 = vmul.f32 %v2247, %v1528
      %v2260 = vmul.f32 %v2247, %v1532
      %v2261 = vmul.f32 %v2251, %v1528
      %v2262 = vmul.f32 %v2251, %v1532
      %v2263 = vmul.f32 %v2255, %v1528
      %v2264 = vmul.f32 %v2255, %v1532
      %2273 = vrot.lane.b32.xlu0 %v2257, 109
      %v2274 = vpop.permute.xlu0 %2273
      %2275 = vrot.lane.b32.xlu0 %v2258, 109
      %v2276 = vpop.permute.xlu0 %2275
      %2277 = vrot.lane.b32.xlu0 %v2259, 109
      %v2278 = vpop.permute.xlu0 %2277
      %2279 = vrot.lane.b32.xlu0 %v2260, 109
      %v2280 = vpop.permute.xlu0 %2279
      %2281 = vrot.lane.b32.xlu0 %v2261, 109
      %v2282 = vpop.permute.xlu0 %2281
      %2283 = vrot.lane.b32.xlu0 %v2262, 109
      %v2284 = vpop.permute.xlu0 %2283
      %2285 = vrot.lane.b32.xlu0 %v2263, 109
      %v2286 = vpop.permute.xlu0 %2285
      %2287 = vrot.lane.b32.xlu0 %v2264, 109
      %v2288 = vpop.permute.xlu0 %2287
      %v2289 = vsel %vm746, %v2274, %v2276
      %v2290 = vsel %vm746, %v2278, %v2280
      %v2291 = vsel %vm746, %v2282, %v2284
      %v2292 = vsel %vm746, %v2286, %v2288
      %v2301 = vadd.f32 %v2233, %v2289
      %v2302 = vadd.f32 %v2234, %v2276
      %v2303 = vadd.f32 %v2235, %v2290
      %v2304 = vadd.f32 %v2236, %v2280
      %v2305 = vadd.f32 %v2237, %v2291
      %v2306 = vadd.f32 %v2238, %v2284
      %v2307 = vadd.f32 %v2239, %v2292
      %v2308 = vadd.f32 %v2240, %v2288
      %2309 = vset.pattern.permute.xlu0 13
      %2310 = vperm.xlu0 %2309, %v1497
      %v2311 = vpop.permute.xlu0 %2310
      %2313 = vset.pattern.permute.xlu0 13
      %2314 = vperm.xlu0 %2313, %v1498
      %v2315 = vpop.permute.xlu0 %2314
      %2317 = vset.pattern.permute.xlu0 13
      %2318 = vperm.xlu0 %2317, %v1499
      %v2319 = vpop.permute.xlu0 %2318
      %2321 = vset.pattern.permute.xlu0 13
      %2322 = vperm.xlu0 %2321, %v1500
      %v2323 = vpop.permute.xlu0 %2322
      %v2325 = vmul.f32 %v2311, %v1568
      %v2326 = vmul.f32 %v2311, %v1572
      %v2327 = vmul.f32 %v2315, %v1568
      %v2328 = vmul.f32 %v2315, %v1572
      %v2329 = vmul.f32 %v2319, %v1568
      %v2330 = vmul.f32 %v2319, %v1572
      %v2331 = vmul.f32 %v2323, %v1568
      %v2332 = vmul.f32 %v2323, %v1572
      %2341 = vrot.lane.b32.xlu0 %v2325, 109
      %v2342 = vpop.permute.xlu0 %2341
      %2343 = vrot.lane.b32.xlu0 %v2326, 109
      %v2344 = vpop.permute.xlu0 %2343
      %2345 = vrot.lane.b32.xlu0 %v2327, 109
      %v2346 = vpop.permute.xlu0 %2345
      %2347 = vrot.lane.b32.xlu0 %v2328, 109
      %v2348 = vpop.permute.xlu0 %2347
      %2349 = vrot.lane.b32.xlu0 %v2329, 109
      %v2350 = vpop.permute.xlu0 %2349
      %2351 = vrot.lane.b32.xlu0 %v2330, 109
      %v2352 = vpop.permute.xlu0 %2351
      %2353 = vrot.lane.b32.xlu0 %v2331, 109
      %v2354 = vpop.permute.xlu0 %2353
      %2355 = vrot.lane.b32.xlu0 %v2332, 109
      %v2356 = vpop.permute.xlu0 %2355
      %v2357 = vsel %vm746, %v2342, %v2344
      %v2358 = vsel %vm746, %v2346, %v2348
      %v2359 = vsel %vm746, %v2350, %v2352
      %v2360 = vsel %vm746, %v2354, %v2356
      %v2369 = vadd.f32 %v2301, %v2357
      %v2370 = vadd.f32 %v2302, %v2344
      %v2371 = vadd.f32 %v2303, %v2358
      %v2372 = vadd.f32 %v2304, %v2348
      %v2373 = vadd.f32 %v2305, %v2359
      %v2374 = vadd.f32 %v2306, %v2352
      %v2375 = vadd.f32 %v2307, %v2360
      %v2376 = vadd.f32 %v2308, %v2356
      %2377 = vset.pattern.permute.xlu0 14
      %2378 = vperm.xlu0 %2377, %v1497
      %v2379 = vpop.permute.xlu0 %2378
      %2381 = vset.pattern.permute.xlu0 14
      %2382 = vperm.xlu0 %2381, %v1498
      %v2383 = vpop.permute.xlu0 %2382
      %2385 = vset.pattern.permute.xlu0 14
      %2386 = vperm.xlu0 %2385, %v1499
      %v2387 = vpop.permute.xlu0 %2386
      %2389 = vset.pattern.permute.xlu0 14
      %2390 = vperm.xlu0 %2389, %v1500
      %v2391 = vpop.permute.xlu0 %2390
      %v2393 = vmul.f32 %v2379, %v1608
      %v2394 = vmul.f32 %v2379, %v1612
      %v2395 = vmul.f32 %v2383, %v1608
      %v2396 = vmul.f32 %v2383, %v1612
      %v2397 = vmul.f32 %v2387, %v1608
      %v2398 = vmul.f32 %v2387, %v1612
      %v2399 = vmul.f32 %v2391, %v1608
      %v2400 = vmul.f32 %v2391, %v1612
      %2409 = vrot.lane.b32.xlu0 %v2393, 109
      %v2410 = vpop.permute.xlu0 %2409
      %2411 = vrot.lane.b32.xlu0 %v2394, 109
      %v2412 = vpop.permute.xlu0 %2411
      %2413 = vrot.lane.b32.xlu0 %v2395, 109
      %v2414 = vpop.permute.xlu0 %2413
      %2415 = vrot.lane.b32.xlu0 %v2396, 109
      %v2416 = vpop.permute.xlu0 %2415
      %2417 = vrot.lane.b32.xlu0 %v2397, 109
      %v2418 = vpop.permute.xlu0 %2417
      %2419 = vrot.lane.b32.xlu0 %v2398, 109
      %v2420 = vpop.permute.xlu0 %2419
      %2421 = vrot.lane.b32.xlu0 %v2399, 109
      %v2422 = vpop.permute.xlu0 %2421
      %2423 = vrot.lane.b32.xlu0 %v2400, 109
      %v2424 = vpop.permute.xlu0 %2423
      %v2425 = vsel %vm746, %v2410, %v2412
      %v2426 = vsel %vm746, %v2414, %v2416
      %v2427 = vsel %vm746, %v2418, %v2420
      %v2428 = vsel %vm746, %v2422, %v2424
      %v2437 = vadd.f32 %v2369, %v2425
      %v2438 = vadd.f32 %v2370, %v2412
      %v2439 = vadd.f32 %v2371, %v2426
      %v2440 = vadd.f32 %v2372, %v2416
      %v2441 = vadd.f32 %v2373, %v2427
      %v2442 = vadd.f32 %v2374, %v2420
      %v2443 = vadd.f32 %v2375, %v2428
      %v2444 = vadd.f32 %v2376, %v2424
      %2445 = vset.pattern.permute.xlu0 15
      %2446 = vperm.xlu0 %2445, %v1497
      %v2447 = vpop.permute.xlu0 %2446
      %2449 = vset.pattern.permute.xlu0 15
      %2450 = vperm.xlu0 %2449, %v1498
      %v2451 = vpop.permute.xlu0 %2450
      %2453 = vset.pattern.permute.xlu0 15
      %2454 = vperm.xlu0 %2453, %v1499
      %v2455 = vpop.permute.xlu0 %2454
      %2457 = vset.pattern.permute.xlu0 15
      %2458 = vperm.xlu0 %2457, %v1500
      %v2459 = vpop.permute.xlu0 %2458
      %v2461 = vmul.f32 %v2447, %v1528
      %v2462 = vmul.f32 %v2447, %v1532
      %v2463 = vmul.f32 %v2451, %v1528
      %v2464 = vmul.f32 %v2451, %v1532
      %v2465 = vmul.f32 %v2455, %v1528
      %v2466 = vmul.f32 %v2455, %v1532
      %v2467 = vmul.f32 %v2459, %v1528
      %v2468 = vmul.f32 %v2459, %v1532
      %2477 = vrot.lane.b32.xlu0 %v2461, 108
      %v2478 = vpop.permute.xlu0 %2477
      %2479 = vrot.lane.b32.xlu0 %v2462, 108
      %v2480 = vpop.permute.xlu0 %2479
      %2481 = vrot.lane.b32.xlu0 %v2463, 108
      %v2482 = vpop.permute.xlu0 %2481
      %2483 = vrot.lane.b32.xlu0 %v2464, 108
      %v2484 = vpop.permute.xlu0 %2483
      %2485 = vrot.lane.b32.xlu0 %v2465, 108
      %v2486 = vpop.permute.xlu0 %2485
      %2487 = vrot.lane.b32.xlu0 %v2466, 108
      %v2488 = vpop.permute.xlu0 %2487
      %2489 = vrot.lane.b32.xlu0 %v2467, 108
      %v2490 = vpop.permute.xlu0 %2489
      %2491 = vrot.lane.b32.xlu0 %v2468, 108
      %v2492 = vpop.permute.xlu0 %2491
      %v2493 = vsel %vm791, %v2478, %v2480
      %v2494 = vsel %vm791, %v2482, %v2484
      %v2495 = vsel %vm791, %v2486, %v2488
      %v2496 = vsel %vm791, %v2490, %v2492
      %v2505 = vadd.f32 %v2437, %v2493
      %v2506 = vadd.f32 %v2438, %v2480
      %v2507 = vadd.f32 %v2439, %v2494
      %v2508 = vadd.f32 %v2440, %v2484
      %v2509 = vadd.f32 %v2441, %v2495
      %v2510 = vadd.f32 %v2442, %v2488
      %v2511 = vadd.f32 %v2443, %v2496
      %v2512 = vadd.f32 %v2444, %v2492
      %2513 = vset.pattern.permute.xlu0 16
      %2514 = vperm.xlu0 %2513, %v1497
      %v2515 = vpop.permute.xlu0 %2514
      %2517 = vset.pattern.permute.xlu0 16
      %2518 = vperm.xlu0 %2517, %v1498
      %v2519 = vpop.permute.xlu0 %2518
      %2521 = vset.pattern.permute.xlu0 16
      %2522 = vperm.xlu0 %2521, %v1499
      %v2523 = vpop.permute.xlu0 %2522
      %2525 = vset.pattern.permute.xlu0 16
      %2526 = vperm.xlu0 %2525, %v1500
      %v2527 = vpop.permute.xlu0 %2526
      %v2529 = vmul.f32 %v2515, %v1568
      %v2530 = vmul.f32 %v2515, %v1572
      %v2531 = vmul.f32 %v2519, %v1568
      %v2532 = vmul.f32 %v2519, %v1572
      %v2533 = vmul.f32 %v2523, %v1568
      %v2534 = vmul.f32 %v2523, %v1572
      %v2535 = vmul.f32 %v2527, %v1568
      %v2536 = vmul.f32 %v2527, %v1572
      %2545 = vrot.lane.b32.xlu0 %v2529, 108
      %v2546 = vpop.permute.xlu0 %2545
      %2547 = vrot.lane.b32.xlu0 %v2530, 108
      %v2548 = vpop.permute.xlu0 %2547
      %2549 = vrot.lane.b32.xlu0 %v2531, 108
      %v2550 = vpop.permute.xlu0 %2549
      %2551 = vrot.lane.b32.xlu0 %v2532, 108
      %v2552 = vpop.permute.xlu0 %2551
      %2553 = vrot.lane.b32.xlu0 %v2533, 108
      %v2554 = vpop.permute.xlu0 %2553
      %2555 = vrot.lane.b32.xlu0 %v2534, 108
      %v2556 = vpop.permute.xlu0 %2555
      %2557 = vrot.lane.b32.xlu0 %v2535, 108
      %v2558 = vpop.permute.xlu0 %2557
      %2559 = vrot.lane.b32.xlu0 %v2536, 108
      %v2560 = vpop.permute.xlu0 %2559
      %v2561 = vsel %vm791, %v2546, %v2548
      %v2562 = vsel %vm791, %v2550, %v2552
      %v2563 = vsel %vm791, %v2554, %v2556
      %v2564 = vsel %vm791, %v2558, %v2560
      %v2573 = vadd.f32 %v2505, %v2561
      %v2574 = vadd.f32 %v2506, %v2548
      %v2575 = vadd.f32 %v2507, %v2562
      %v2576 = vadd.f32 %v2508, %v2552
      %v2577 = vadd.f32 %v2509, %v2563
      %v2578 = vadd.f32 %v2510, %v2556
      %v2579 = vadd.f32 %v2511, %v2564
      %v2580 = vadd.f32 %v2512, %v2560
      %2581 = vset.pattern.permute.xlu0 17
      %2582 = vperm.xlu0 %2581, %v1497
      %v2583 = vpop.permute.xlu0 %2582
      %2585 = vset.pattern.permute.xlu0 17
      %2586 = vperm.xlu0 %2585, %v1498
      %v2587 = vpop.permute.xlu0 %2586
      %2589 = vset.pattern.permute.xlu0 17
      %2590 = vperm.xlu0 %2589, %v1499
      %v2591 = vpop.permute.xlu0 %2590
      %2593 = vset.pattern.permute.xlu0 17
      %2594 = vperm.xlu0 %2593, %v1500
      %v2595 = vpop.permute.xlu0 %2594
      %v2597 = vmul.f32 %v2583, %v1608
      %v2598 = vmul.f32 %v2583, %v1612
      %v2599 = vmul.f32 %v2587, %v1608
      %v2600 = vmul.f32 %v2587, %v1612
      %v2601 = vmul.f32 %v2591, %v1608
      %v2602 = vmul.f32 %v2591, %v1612
      %v2603 = vmul.f32 %v2595, %v1608
      %v2604 = vmul.f32 %v2595, %v1612
      %2613 = vrot.lane.b32.xlu0 %v2597, 108
      %v2614 = vpop.permute.xlu0 %2613
      %2615 = vrot.lane.b32.xlu0 %v2598, 108
      %v2616 = vpop.permute.xlu0 %2615
      %2617 = vrot.lane.b32.xlu0 %v2599, 108
      %v2618 = vpop.permute.xlu0 %2617
      %2619 = vrot.lane.b32.xlu0 %v2600, 108
      %v2620 = vpop.permute.xlu0 %2619
      %2621 = vrot.lane.b32.xlu0 %v2601, 108
      %v2622 = vpop.permute.xlu0 %2621
      %2623 = vrot.lane.b32.xlu0 %v2602, 108
      %v2624 = vpop.permute.xlu0 %2623
      %2625 = vrot.lane.b32.xlu0 %v2603, 108
      %v2626 = vpop.permute.xlu0 %2625
      %2627 = vrot.lane.b32.xlu0 %v2604, 108
      %v2628 = vpop.permute.xlu0 %2627
      %v2629 = vsel %vm791, %v2614, %v2616
      %v2630 = vsel %vm791, %v2618, %v2620
      %v2631 = vsel %vm791, %v2622, %v2624
      %v2632 = vsel %vm791, %v2626, %v2628
      %v2641 = vadd.f32 %v2573, %v2629
      %v2642 = vadd.f32 %v2574, %v2616
      %v2643 = vadd.f32 %v2575, %v2630
      %v2644 = vadd.f32 %v2576, %v2620
      %v2645 = vadd.f32 %v2577, %v2631
      %v2646 = vadd.f32 %v2578, %v2624
      %v2647 = vadd.f32 %v2579, %v2632
      %v2648 = vadd.f32 %v2580, %v2628
      %2649 = vset.pattern.permute.xlu0 18
      %2650 = vperm.xlu0 %2649, %v1497
      %v2651 = vpop.permute.xlu0 %2650
      %2653 = vset.pattern.permute.xlu0 18
      %2654 = vperm.xlu0 %2653, %v1498
      %v2655 = vpop.permute.xlu0 %2654
      %2657 = vset.pattern.permute.xlu0 18
      %2658 = vperm.xlu0 %2657, %v1499
      %v2659 = vpop.permute.xlu0 %2658
      %2661 = vset.pattern.permute.xlu0 18
      %2662 = vperm.xlu0 %2661, %v1500
      %v2663 = vpop.permute.xlu0 %2662
      %v2665 = vmul.f32 %v2651, %v1528
      %v2666 = vmul.f32 %v2651, %v1532
      %v2667 = vmul.f32 %v2655, %v1528
      %v2668 = vmul.f32 %v2655, %v1532
      %v2669 = vmul.f32 %v2659, %v1528
      %v2670 = vmul.f32 %v2659, %v1532
      %v2671 = vmul.f32 %v2663, %v1528
      %v2672 = vmul.f32 %v2663, %v1532
      %2681 = vrot.lane.b32.xlu0 %v2665, 92
      %v2682 = vpop.permute.xlu0 %2681
      %2683 = vrot.lane.b32.xlu0 %v2666, 92
      %v2684 = vpop.permute.xlu0 %2683
      %2685 = vrot.lane.b32.xlu0 %v2667, 92
      %v2686 = vpop.permute.xlu0 %2685
      %2687 = vrot.lane.b32.xlu0 %v2668, 92
      %v2688 = vpop.permute.xlu0 %2687
      %2689 = vrot.lane.b32.xlu0 %v2669, 92
      %v2690 = vpop.permute.xlu0 %2689
      %2691 = vrot.lane.b32.xlu0 %v2670, 92
      %v2692 = vpop.permute.xlu0 %2691
      %2693 = vrot.lane.b32.xlu0 %v2671, 92
      %v2694 = vpop.permute.xlu0 %2693
      %2695 = vrot.lane.b32.xlu0 %v2672, 92
      %v2696 = vpop.permute.xlu0 %2695
      %v2697 = vsel %vm836, %v2682, %v2684
      %v2698 = vsel %vm836, %v2686, %v2688
      %v2699 = vsel %vm836, %v2690, %v2692
      %v2700 = vsel %vm836, %v2694, %v2696
      %v2709 = vadd.f32 %v2641, %v2697
      %v2710 = vadd.f32 %v2642, %v2684
      %v2711 = vadd.f32 %v2643, %v2698
      %v2712 = vadd.f32 %v2644, %v2688
      %v2713 = vadd.f32 %v2645, %v2699
      %v2714 = vadd.f32 %v2646, %v2692
      %v2715 = vadd.f32 %v2647, %v2700
      %v2716 = vadd.f32 %v2648, %v2696
      %2717 = vset.pattern.permute.xlu0 19
      %2718 = vperm.xlu0 %2717, %v1497
      %v2719 = vpop.permute.xlu0 %2718
      %2721 = vset.pattern.permute.xlu0 19
      %2722 = vperm.xlu0 %2721, %v1498
      %v2723 = vpop.permute.xlu0 %2722
      %2725 = vset.pattern.permute.xlu0 19
      %2726 = vperm.xlu0 %2725, %v1499
      %v2727 = vpop.permute.xlu0 %2726
      %2729 = vset.pattern.permute.xlu0 19
      %2730 = vperm.xlu0 %2729, %v1500
      %v2731 = vpop.permute.xlu0 %2730
      %v2733 = vmul.f32 %v2719, %v1568
      %v2734 = vmul.f32 %v2719, %v1572
      %v2735 = vmul.f32 %v2723, %v1568
      %v2736 = vmul.f32 %v2723, %v1572
      %v2737 = vmul.f32 %v2727, %v1568
      %v2738 = vmul.f32 %v2727, %v1572
      %v2739 = vmul.f32 %v2731, %v1568
      %v2740 = vmul.f32 %v2731, %v1572
      %2749 = vrot.lane.b32.xlu0 %v2733, 92
      %v2750 = vpop.permute.xlu0 %2749
      %2751 = vrot.lane.b32.xlu0 %v2734, 92
      %v2752 = vpop.permute.xlu0 %2751
      %2753 = vrot.lane.b32.xlu0 %v2735, 92
      %v2754 = vpop.permute.xlu0 %2753
      %2755 = vrot.lane.b32.xlu0 %v2736, 92
      %v2756 = vpop.permute.xlu0 %2755
      %2757 = vrot.lane.b32.xlu0 %v2737, 92
      %v2758 = vpop.permute.xlu0 %2757
      %2759 = vrot.lane.b32.xlu0 %v2738, 92
      %v2760 = vpop.permute.xlu0 %2759
      %2761 = vrot.lane.b32.xlu0 %v2739, 92
      %v2762 = vpop.permute.xlu0 %2761
      %2763 = vrot.lane.b32.xlu0 %v2740, 92
      %v2764 = vpop.permute.xlu0 %2763
      %v2765 = vsel %vm836, %v2750, %v2752
      %v2766 = vsel %vm836, %v2754, %v2756
      %v2767 = vsel %vm836, %v2758, %v2760
      %v2768 = vsel %vm836, %v2762, %v2764
      %v2777 = vadd.f32 %v2709, %v2765
      %v2778 = vadd.f32 %v2710, %v2752
      %v2779 = vadd.f32 %v2711, %v2766
      %v2780 = vadd.f32 %v2712, %v2756
      %v2781 = vadd.f32 %v2713, %v2767
      %v2782 = vadd.f32 %v2714, %v2760
      %v2783 = vadd.f32 %v2715, %v2768
      %v2784 = vadd.f32 %v2716, %v2764
      %2785 = vset.pattern.permute.xlu0 20
      %2786 = vperm.xlu0 %2785, %v1497
      %v2787 = vpop.permute.xlu0 %2786
      %2789 = vset.pattern.permute.xlu0 20
      %2790 = vperm.xlu0 %2789, %v1498
      %v2791 = vpop.permute.xlu0 %2790
      %2793 = vset.pattern.permute.xlu0 20
      %2794 = vperm.xlu0 %2793, %v1499
      %v2795 = vpop.permute.xlu0 %2794
      %2797 = vset.pattern.permute.xlu0 20
      %2798 = vperm.xlu0 %2797, %v1500
      %v2799 = vpop.permute.xlu0 %2798
      %v2801 = vmul.f32 %v2787, %v1608
      %v2802 = vmul.f32 %v2787, %v1612
      %v2803 = vmul.f32 %v2791, %v1608
      %v2804 = vmul.f32 %v2791, %v1612
      %v2805 = vmul.f32 %v2795, %v1608
      %v2806 = vmul.f32 %v2795, %v1612
      %v2807 = vmul.f32 %v2799, %v1608
      %v2808 = vmul.f32 %v2799, %v1612
      %2817 = vrot.lane.b32.xlu0 %v2801, 92
      %v2818 = vpop.permute.xlu0 %2817
      %2819 = vrot.lane.b32.xlu0 %v2802, 92
      %v2820 = vpop.permute.xlu0 %2819
      %2821 = vrot.lane.b32.xlu0 %v2803, 92
      %v2822 = vpop.permute.xlu0 %2821
      %2823 = vrot.lane.b32.xlu0 %v2804, 92
      %v2824 = vpop.permute.xlu0 %2823
      %2825 = vrot.lane.b32.xlu0 %v2805, 92
      %v2826 = vpop.permute.xlu0 %2825
      %2827 = vrot.lane.b32.xlu0 %v2806, 92
      %v2828 = vpop.permute.xlu0 %2827
      %2829 = vrot.lane.b32.xlu0 %v2807, 92
      %v2830 = vpop.permute.xlu0 %2829
      %2831 = vrot.lane.b32.xlu0 %v2808, 92
      %v2832 = vpop.permute.xlu0 %2831
      %v2833 = vsel %vm836, %v2818, %v2820
      %v2834 = vsel %vm836, %v2822, %v2824
      %v2835 = vsel %vm836, %v2826, %v2828
      %v2836 = vsel %vm836, %v2830, %v2832
      %v2845 = vadd.f32 %v2777, %v2833
      %v2846 = vadd.f32 %v2778, %v2820
      %v2847 = vadd.f32 %v2779, %v2834
      %v2848 = vadd.f32 %v2780, %v2824
      %v2849 = vadd.f32 %v2781, %v2835
      %v2850 = vadd.f32 %v2782, %v2828
      %v2851 = vadd.f32 %v2783, %v2836
      %v2852 = vadd.f32 %v2784, %v2832
      %2853 = vset.pattern.permute.xlu0 21
      %2854 = vperm.xlu0 %2853, %v1497
      %v2855 = vpop.permute.xlu0 %2854
      %2857 = vset.pattern.permute.xlu0 21
      %2858 = vperm.xlu0 %2857, %v1498
      %v2859 = vpop.permute.xlu0 %2858
      %2861 = vset.pattern.permute.xlu0 21
      %2862 = vperm.xlu0 %2861, %v1499
      %v2863 = vpop.permute.xlu0 %2862
      %2865 = vset.pattern.permute.xlu0 21
      %2866 = vperm.xlu0 %2865, %v1500
      %v2867 = vpop.permute.xlu0 %2866
      %v2869 = vmul.f32 %v2855, %v1528
      %v2870 = vmul.f32 %v2855, %v1532
      %v2871 = vmul.f32 %v2859, %v1528
      %v2872 = vmul.f32 %v2859, %v1532
      %v2873 = vmul.f32 %v2863, %v1528
      %v2874 = vmul.f32 %v2863, %v1532
      %v2875 = vmul.f32 %v2867, %v1528
      %v2876 = vmul.f32 %v2867, %v1532
      %2885 = vrot.lane.b32.xlu0 %v2869, 91
      %v2886 = vpop.permute.xlu0 %2885
      %2887 = vrot.lane.b32.xlu0 %v2870, 91
      %v2888 = vpop.permute.xlu0 %2887
      %2889 = vrot.lane.b32.xlu0 %v2871, 91
      %v2890 = vpop.permute.xlu0 %2889
      %2891 = vrot.lane.b32.xlu0 %v2872, 91
      %v2892 = vpop.permute.xlu0 %2891
      %2893 = vrot.lane.b32.xlu0 %v2873, 91
      %v2894 = vpop.permute.xlu0 %2893
      %2895 = vrot.lane.b32.xlu0 %v2874, 91
      %v2896 = vpop.permute.xlu0 %2895
      %2897 = vrot.lane.b32.xlu0 %v2875, 91
      %v2898 = vpop.permute.xlu0 %2897
      %2899 = vrot.lane.b32.xlu0 %v2876, 91
      %v2900 = vpop.permute.xlu0 %2899
      %v2901 = vsel %vm881, %v2886, %v2888
      %v2902 = vsel %vm881, %v2890, %v2892
      %v2903 = vsel %vm881, %v2894, %v2896
      %v2904 = vsel %vm881, %v2898, %v2900
      %v2913 = vadd.f32 %v2845, %v2901
      %v2914 = vadd.f32 %v2846, %v2888
      %v2915 = vadd.f32 %v2847, %v2902
      %v2916 = vadd.f32 %v2848, %v2892
      %v2917 = vadd.f32 %v2849, %v2903
      %v2918 = vadd.f32 %v2850, %v2896
      %v2919 = vadd.f32 %v2851, %v2904
      %v2920 = vadd.f32 %v2852, %v2900
      %2921 = vset.pattern.permute.xlu0 22
      %2922 = vperm.xlu0 %2921, %v1497
      %v2923 = vpop.permute.xlu0 %2922
      %2925 = vset.pattern.permute.xlu0 22
      %2926 = vperm.xlu0 %2925, %v1498
      %v2927 = vpop.permute.xlu0 %2926
      %2929 = vset.pattern.permute.xlu0 22
      %2930 = vperm.xlu0 %2929, %v1499
      %v2931 = vpop.permute.xlu0 %2930
      %2933 = vset.pattern.permute.xlu0 22
      %2934 = vperm.xlu0 %2933, %v1500
      %v2935 = vpop.permute.xlu0 %2934
      %v2937 = vmul.f32 %v2923, %v1568
      %v2938 = vmul.f32 %v2923, %v1572
      %v2939 = vmul.f32 %v2927, %v1568
      %v2940 = vmul.f32 %v2927, %v1572
      %v2941 = vmul.f32 %v2931, %v1568
      %v2942 = vmul.f32 %v2931, %v1572
      %v2943 = vmul.f32 %v2935, %v1568
      %v2944 = vmul.f32 %v2935, %v1572
      %2953 = vrot.lane.b32.xlu0 %v2937, 91
      %v2954 = vpop.permute.xlu0 %2953
      %2955 = vrot.lane.b32.xlu0 %v2938, 91
      %v2956 = vpop.permute.xlu0 %2955
      %2957 = vrot.lane.b32.xlu0 %v2939, 91
      %v2958 = vpop.permute.xlu0 %2957
      %2959 = vrot.lane.b32.xlu0 %v2940, 91
      %v2960 = vpop.permute.xlu0 %2959
      %2961 = vrot.lane.b32.xlu0 %v2941, 91
      %v2962 = vpop.permute.xlu0 %2961
      %2963 = vrot.lane.b32.xlu0 %v2942, 91
      %v2964 = vpop.permute.xlu0 %2963
      %2965 = vrot.lane.b32.xlu0 %v2943, 91
      %v2966 = vpop.permute.xlu0 %2965
      %2967 = vrot.lane.b32.xlu0 %v2944, 91
      %v2968 = vpop.permute.xlu0 %2967
      %v2969 = vsel %vm881, %v2954, %v2956
      %v2970 = vsel %vm881, %v2958, %v2960
      %v2971 = vsel %vm881, %v2962, %v2964
      %v2972 = vsel %vm881, %v2966, %v2968
      %v2981 = vadd.f32 %v2913, %v2969
      %v2982 = vadd.f32 %v2914, %v2956
      %v2983 = vadd.f32 %v2915, %v2970
      %v2984 = vadd.f32 %v2916, %v2960
      %v2985 = vadd.f32 %v2917, %v2971
      %v2986 = vadd.f32 %v2918, %v2964
      %v2987 = vadd.f32 %v2919, %v2972
      %v2988 = vadd.f32 %v2920, %v2968
      %2989 = vset.pattern.permute.xlu0 23
      %2990 = vperm.xlu0 %2989, %v1497
      %v2991 = vpop.permute.xlu0 %2990
      %2993 = vset.pattern.permute.xlu0 23
      %2994 = vperm.xlu0 %2993, %v1498
      %v2995 = vpop.permute.xlu0 %2994
      %2997 = vset.pattern.permute.xlu0 23
      %2998 = vperm.xlu0 %2997, %v1499
      %v2999 = vpop.permute.xlu0 %2998
      %3001 = vset.pattern.permute.xlu0 23
      %3002 = vperm.xlu0 %3001, %v1500
      %v3003 = vpop.permute.xlu0 %3002
      %v3005 = vmul.f32 %v2991, %v1608
      %v3006 = vmul.f32 %v2991, %v1612
      %v3007 = vmul.f32 %v2995, %v1608
      %v3008 = vmul.f32 %v2995, %v1612
      %v3009 = vmul.f32 %v2999, %v1608
      %v3010 = vmul.f32 %v2999, %v1612
      %v3011 = vmul.f32 %v3003, %v1608
      %v3012 = vmul.f32 %v3003, %v1612
      %3021 = vrot.lane.b32.xlu0 %v3005, 91
      %v3022 = vpop.permute.xlu0 %3021
      %3023 = vrot.lane.b32.xlu0 %v3006, 91
      %v3024 = vpop.permute.xlu0 %3023
      %3025 = vrot.lane.b32.xlu0 %v3007, 91
      %v3026 = vpop.permute.xlu0 %3025
      %3027 = vrot.lane.b32.xlu0 %v3008, 91
      %v3028 = vpop.permute.xlu0 %3027
      %3029 = vrot.lane.b32.xlu0 %v3009, 91
      %v3030 = vpop.permute.xlu0 %3029
      %3031 = vrot.lane.b32.xlu0 %v3010, 91
      %v3032 = vpop.permute.xlu0 %3031
      %3033 = vrot.lane.b32.xlu0 %v3011, 91
      %v3034 = vpop.permute.xlu0 %3033
      %3035 = vrot.lane.b32.xlu0 %v3012, 91
      %v3036 = vpop.permute.xlu0 %3035
      %v3037 = vsel %vm881, %v3022, %v3024
      %v3038 = vsel %vm881, %v3026, %v3028
      %v3039 = vsel %vm881, %v3030, %v3032
      %v3040 = vsel %vm881, %v3034, %v3036
      %v3049 = vadd.f32 %v2981, %v3037
      %v3050 = vadd.f32 %v2982, %v3024
      %v3051 = vadd.f32 %v2983, %v3038
      %v3052 = vadd.f32 %v2984, %v3028
      %v3053 = vadd.f32 %v2985, %v3039
      %v3054 = vadd.f32 %v2986, %v3032
      %v3055 = vadd.f32 %v2987, %v3040
      %v3056 = vadd.f32 %v2988, %v3036
      %3057 = vset.pattern.permute.xlu0 24
      %3058 = vperm.xlu0 %3057, %v1497
      %v3059 = vpop.permute.xlu0 %3058
      %3061 = vset.pattern.permute.xlu0 24
      %3062 = vperm.xlu0 %3061, %v1498
      %v3063 = vpop.permute.xlu0 %3062
      %3065 = vset.pattern.permute.xlu0 24
      %3066 = vperm.xlu0 %3065, %v1499
      %v3067 = vpop.permute.xlu0 %3066
      %3069 = vset.pattern.permute.xlu0 24
      %3070 = vperm.xlu0 %3069, %v1500
      %v3071 = vpop.permute.xlu0 %3070
      %v3073 = vmul.f32 %v3059, %v1528
      %v3074 = vmul.f32 %v3059, %v1532
      %v3075 = vmul.f32 %v3063, %v1528
      %v3076 = vmul.f32 %v3063, %v1532
      %v3077 = vmul.f32 %v3067, %v1528
      %v3078 = vmul.f32 %v3067, %v1532
      %v3079 = vmul.f32 %v3071, %v1528
      %v3080 = vmul.f32 %v3071, %v1532
      %3089 = vrot.lane.b32.xlu0 %v3073, 90
      %v3090 = vpop.permute.xlu0 %3089
      %3091 = vrot.lane.b32.xlu0 %v3074, 90
      %v3092 = vpop.permute.xlu0 %3091
      %3093 = vrot.lane.b32.xlu0 %v3075, 90
      %v3094 = vpop.permute.xlu0 %3093
      %3095 = vrot.lane.b32.xlu0 %v3076, 90
      %v3096 = vpop.permute.xlu0 %3095
      %3097 = vrot.lane.b32.xlu0 %v3077, 90
      %v3098 = vpop.permute.xlu0 %3097
      %3099 = vrot.lane.b32.xlu0 %v3078, 90
      %v3100 = vpop.permute.xlu0 %3099
      %3101 = vrot.lane.b32.xlu0 %v3079, 90
      %v3102 = vpop.permute.xlu0 %3101
      %3103 = vrot.lane.b32.xlu0 %v3080, 90
      %v3104 = vpop.permute.xlu0 %3103
      %v3105 = vsel %vm926, %v3090, %v3092
      %v3106 = vsel %vm926, %v3094, %v3096
      %v3107 = vsel %vm926, %v3098, %v3100
      %v3108 = vsel %vm926, %v3102, %v3104
      %v3117 = vadd.f32 %v3049, %v3105
      %v3118 = vadd.f32 %v3050, %v3092
      %v3119 = vadd.f32 %v3051, %v3106
      %v3120 = vadd.f32 %v3052, %v3096
      %v3121 = vadd.f32 %v3053, %v3107
      %v3122 = vadd.f32 %v3054, %v3100
      %v3123 = vadd.f32 %v3055, %v3108
      %v3124 = vadd.f32 %v3056, %v3104
      %3125 = vset.pattern.permute.xlu0 25
      %3126 = vperm.xlu0 %3125, %v1497
      %v3127 = vpop.permute.xlu0 %3126
      %3129 = vset.pattern.permute.xlu0 25
      %3130 = vperm.xlu0 %3129, %v1498
      %v3131 = vpop.permute.xlu0 %3130
      %3133 = vset.pattern.permute.xlu0 25
      %3134 = vperm.xlu0 %3133, %v1499
      %v3135 = vpop.permute.xlu0 %3134
      %3137 = vset.pattern.permute.xlu0 25
      %3138 = vperm.xlu0 %3137, %v1500
      %v3139 = vpop.permute.xlu0 %3138
      %v3141 = vmul.f32 %v3127, %v1568
      %v3142 = vmul.f32 %v3127, %v1572
      %v3143 = vmul.f32 %v3131, %v1568
      %v3144 = vmul.f32 %v3131, %v1572
      %v3145 = vmul.f32 %v3135, %v1568
      %v3146 = vmul.f32 %v3135, %v1572
      %v3147 = vmul.f32 %v3139, %v1568
      %v3148 = vmul.f32 %v3139, %v1572
      %3157 = vrot.lane.b32.xlu0 %v3141, 90
      %v3158 = vpop.permute.xlu0 %3157
      %3159 = vrot.lane.b32.xlu0 %v3142, 90
      %v3160 = vpop.permute.xlu0 %3159
      %3161 = vrot.lane.b32.xlu0 %v3143, 90
      %v3162 = vpop.permute.xlu0 %3161
      %3163 = vrot.lane.b32.xlu0 %v3144, 90
      %v3164 = vpop.permute.xlu0 %3163
      %3165 = vrot.lane.b32.xlu0 %v3145, 90
      %v3166 = vpop.permute.xlu0 %3165
      %3167 = vrot.lane.b32.xlu0 %v3146, 90
      %v3168 = vpop.permute.xlu0 %3167
      %3169 = vrot.lane.b32.xlu0 %v3147, 90
      %v3170 = vpop.permute.xlu0 %3169
      %3171 = vrot.lane.b32.xlu0 %v3148, 90
      %v3172 = vpop.permute.xlu0 %3171
      %v3173 = vsel %vm926, %v3158, %v3160
      %v3174 = vsel %vm926, %v3162, %v3164
      %v3175 = vsel %vm926, %v3166, %v3168
      %v3176 = vsel %vm926, %v3170, %v3172
      %v3185 = vadd.f32 %v3117, %v3173
      %v3186 = vadd.f32 %v3118, %v3160
      %v3187 = vadd.f32 %v3119, %v3174
      %v3188 = vadd.f32 %v3120, %v3164
      %v3189 = vadd.f32 %v3121, %v3175
      %v3190 = vadd.f32 %v3122, %v3168
      %v3191 = vadd.f32 %v3123, %v3176
      %v3192 = vadd.f32 %v3124, %v3172
      %3193 = vset.pattern.permute.xlu0 26
      %3194 = vperm.xlu0 %3193, %v1497
      %v3195 = vpop.permute.xlu0 %3194
      %3197 = vset.pattern.permute.xlu0 26
      %3198 = vperm.xlu0 %3197, %v1498
      %v3199 = vpop.permute.xlu0 %3198
      %3201 = vset.pattern.permute.xlu0 26
      %3202 = vperm.xlu0 %3201, %v1499
      %v3203 = vpop.permute.xlu0 %3202
      %3205 = vset.pattern.permute.xlu0 26
      %3206 = vperm.xlu0 %3205, %v1500
      %v3207 = vpop.permute.xlu0 %3206
      %v3209 = vmul.f32 %v3195, %v1608
      %v3210 = vmul.f32 %v3195, %v1612
      %v3211 = vmul.f32 %v3199, %v1608
      %v3212 = vmul.f32 %v3199, %v1612
      %v3213 = vmul.f32 %v3203, %v1608
      %v3214 = vmul.f32 %v3203, %v1612
      %v3215 = vmul.f32 %v3207, %v1608
      %v3216 = vmul.f32 %v3207, %v1612
      %3225 = vrot.lane.b32.xlu0 %v3209, 90
      %v3226 = vpop.permute.xlu0 %3225
      %3227 = vrot.lane.b32.xlu0 %v3210, 90
      %v3228 = vpop.permute.xlu0 %3227
      %3229 = vrot.lane.b32.xlu0 %v3211, 90
      %v3230 = vpop.permute.xlu0 %3229
      %3231 = vrot.lane.b32.xlu0 %v3212, 90
      %v3232 = vpop.permute.xlu0 %3231
      %3233 = vrot.lane.b32.xlu0 %v3213, 90
      %v3234 = vpop.permute.xlu0 %3233
      %3235 = vrot.lane.b32.xlu0 %v3214, 90
      %v3236 = vpop.permute.xlu0 %3235
      %3237 = vrot.lane.b32.xlu0 %v3215, 90
      %v3238 = vpop.permute.xlu0 %3237
      %3239 = vrot.lane.b32.xlu0 %v3216, 90
      %v3240 = vpop.permute.xlu0 %3239
      %v3241 = vsel %vm926, %v3226, %v3228
      %v3242 = vsel %vm926, %v3230, %v3232
      %v3243 = vsel %vm926, %v3234, %v3236
      %v3244 = vsel %vm926, %v3238, %v3240
      %v3253 = vadd.f32 %v3185, %v3241
      %v3254 = vadd.f32 %v3186, %v3228
      %v3255 = vadd.f32 %v3187, %v3242
      %v3256 = vadd.f32 %v3188, %v3232
      %v3257 = vadd.f32 %v3189, %v3243
      %v3258 = vadd.f32 %v3190, %v3236
      %v3259 = vadd.f32 %v3191, %v3244
      %v3260 = vadd.f32 %v3192, %v3240
      %3262 = vset.pattern.permute.xlu0 0
      %3263 = vperm.xlu0 %3262, %v1501
      %v3264 = vpop.permute.xlu0 %3263
      %3267 = vset.pattern.permute.xlu0 0
      %3268 = vperm.xlu0 %3267, %v1502
      %v3269 = vpop.permute.xlu0 %3268
      %3272 = vset.pattern.permute.xlu0 0
      %3273 = vperm.xlu0 %3272, %v1503
      %v3274 = vpop.permute.xlu0 %3273
      %3277 = vset.pattern.permute.xlu0 0
      %3278 = vperm.xlu0 %3277, %v1504
      %v3279 = vpop.permute.xlu0 %3278
      %v3281 = vadd.f32 %v3253, %v3264
      %v3282 = vadd.f32 %v3254, %v3264
      %v3283 = vadd.f32 %v3255, %v3269
      %v3284 = vadd.f32 %v3256, %v3269
      %v3285 = vadd.f32 %v3257, %v3274
      %v3286 = vadd.f32 %v3258, %v3274
      %v3287 = vadd.f32 %v3259, %v3279
      %v3288 = vadd.f32 %v3260, %v3279
      %v3289 = vmax.f32 %v3281, 0.0
      %v3290 = vmax.f32 %v3282, 0.0
      %v3291 = vmax.f32 %v3283, 0.0
      %v3292 = vmax.f32 %v3284, 0.0
      %v3293 = vmax.f32 %v3285, 0.0
      %v3294 = vmax.f32 %v3286, 0.0
      %v3295 = vmax.f32 %v3287, 0.0
      %v3296 = vmax.f32 %v3288, 0.0
      %v3297 = vld [vmem:[%s14] sm:$0x3]
      %vm3298 = vcmp.gt.f32.partialorder %v3297, 0.5
      %v3299 = vsel %vm3298, 1, 0
      %v3300 = vlaneseq
      %v3301 = vshrl.u32 %v3300, 7
      %v3302 = vsub.s32 0, %v3301
      %v3303 = vrot.slane %v3299, %v3302
      %v3304 = vlaneseq
      %v3305 = vshrl.u32 %v3304, 7
      %v3306 = vsub.s32 1, %v3305
      %v3307 = vrot.slane %v3299, %v3306
      %vm3308 = vcmp.eq.s32.totalorder %v3303, 1
      %vm3309 = vcmp.eq.s32.totalorder %v3307, 1
      %v3310 = vsel %vm3308, %v3289, 0.0
      %v3311 = vsel %vm3309, %v3290, 0.0
      %v3312 = vsel %vm3308, %v3291, 0.0
      %v3313 = vsel %vm3309, %v3292, 0.0
      %v3314 = vsel %vm3308, %v3293, 0.0
      %v3315 = vsel %vm3309, %v3294, 0.0
      %v3316 = vsel %vm3308, %v3295, 0.0
      %v3317 = vsel %vm3309, %v3296, 0.0
      %3326 = vrot.lane.b32.xlu0 %v3310, 38
      %v3327 = vpop.permute.xlu0 %3326
      %3328 = vrot.lane.b32.xlu0 %v3311, 38
      %v3329 = vpop.permute.xlu0 %3328
      %3330 = vrot.lane.b32.xlu0 %v3312, 38
      %v3331 = vpop.permute.xlu0 %3330
      %3332 = vrot.lane.b32.xlu0 %v3313, 38
      %v3333 = vpop.permute.xlu0 %3332
      %3334 = vrot.lane.b32.xlu0 %v3314, 38
      %v3335 = vpop.permute.xlu0 %3334
      %3336 = vrot.lane.b32.xlu0 %v3315, 38
      %v3337 = vpop.permute.xlu0 %3336
      %3338 = vrot.lane.b32.xlu0 %v3316, 38
      %v3339 = vpop.permute.xlu0 %3338
      %3340 = vrot.lane.b32.xlu0 %v3317, 38
      %v3341 = vpop.permute.xlu0 %3340
      %v3342 = vsel %vm1490, %v3327, %v3329
      %v3343 = vsel %vm1490, %v3331, %v3333
      %v3344 = vsel %vm1490, %v3335, %v3337
      %v3345 = vsel %vm1490, %v3339, %v3341
      %v3354 = vsel %vm1490, 0.0, %v3327
      %v3355 = vsel %vm1490, 0.0, %v3331
      %v3356 = vsel %vm1490, 0.0, %v3335
      %v3357 = vsel %vm1490, 0.0, %v3339
      %vm3358 = vcmask 982016
      %v3359 = vsel %vm3358, %v3342, 0.0
      %v3360 = vsel %vm3358, %v3343, 0.0
      %v3361 = vsel %vm3358, %v3344, 0.0
      %v3362 = vsel %vm3358, %v3345, 0.0
      %v3363 = vld [vmem:[%s9] sm:$0xff]
      %v3364 = vld [vmem:[%s9 + $0x8] sm:$0xf]
      %v3365 = vld [vmem:[%s9 + $0xc] sm:$0xff]
      %v3366 = vld [vmem:[%s9 + $0x14] sm:$0xf]
      %v3367 = vld [vmem:[%s10] sm:$0xff]
      %v3368 = vld [vmem:[%s10 + $0x8] sm:$0xff]
      %v3369 = vpack.c.bf16 %v3355, %v3354
      %v3370 = vpack.c.bf16 %v3360, %v3359
      %v3371 = vpack.c.bf16 0.0, 0.0
      %v3372 = vpack.c.bf16 %v3357, %v3356
      %v3373 = vpack.c.bf16 %v3362, %v3361
      %3378 = vrot.lane.b32.xlu0 %v3369, 127
      %v3379 = vpop.permute.xlu0 %3378
      %3380 = vrot.lane.b32.xlu0 %v3370, 127
      %v3381 = vpop.permute.xlu0 %3380
      %3382 = vrot.lane.b32.xlu0 %v3372, 127
      %v3383 = vpop.permute.xlu0 %3382
      %3384 = vrot.lane.b32.xlu0 %v3373, 127
      %v3385 = vpop.permute.xlu0 %3384
      %v3386 = vsel %vm973, %v3379, %v3381
      %v3387 = vsel %vm973, %v3383, %v3385
      %3392 = vrot.lane.b32.xlu0 %v3369, 126
      %v3393 = vpop.permute.xlu0 %3392
      %3394 = vrot.lane.b32.xlu0 %v3370, 126
      %v3395 = vpop.permute.xlu0 %3394
      %3396 = vrot.lane.b32.xlu0 %v3372, 126
      %v3397 = vpop.permute.xlu0 %3396
      %3398 = vrot.lane.b32.xlu0 %v3373, 126
      %v3399 = vpop.permute.xlu0 %3398
      %v3400 = vsel %vm981, %v3393, %v3395
      %v3401 = vsel %vm981, %v3397, %v3399
      %3407 = vrot.lane.b32.xlu0 %v3369, 110
      %v3408 = vpop.permute.xlu0 %3407
      %3409 = vrot.lane.b32.xlu0 %v3370, 110
      %v3410 = vpop.permute.xlu0 %3409
      %3411 = vrot.lane.b32.xlu0 %v3371, 110
      %v3412 = vpop.permute.xlu0 %3411
      %3413 = vrot.lane.b32.xlu0 %v3372, 110
      %v3414 = vpop.permute.xlu0 %3413
      %3415 = vrot.lane.b32.xlu0 %v3373, 110
      %v3416 = vpop.permute.xlu0 %3415
      %v3417 = vsel %vm989, %v3408, %v3410
      %v3418 = vsel %vm989, %v3410, %v3412
      %v3419 = vsel %vm989, %v3414, %v3416
      %v3420 = vsel %vm989, %v3416, %v3412
      %3425 = vrot.lane.b32.xlu0 %v3369, 109
      %v3426 = vpop.permute.xlu0 %3425
      %3427 = vrot.lane.b32.xlu0 %v3370, 109
      %v3428 = vpop.permute.xlu0 %3427
      %3429 = vrot.lane.b32.xlu0 %v3371, 109
      %v3430 = vpop.permute.xlu0 %3429
      %3431 = vrot.lane.b32.xlu0 %v3372, 109
      %v3432 = vpop.permute.xlu0 %3431
      %3433 = vrot.lane.b32.xlu0 %v3373, 109
      %v3434 = vpop.permute.xlu0 %3433
      %v3435 = vsel %vm997, %v3426, %v3428
      %v3436 = vsel %vm997, %v3428, %v3430
      %v3437 = vsel %vm997, %v3432, %v3434
      %v3438 = vsel %vm997, %v3434, %v3430
      %3443 = vrot.lane.b32.xlu0 %v3369, 108
      %v3444 = vpop.permute.xlu0 %3443
      %3445 = vrot.lane.b32.xlu0 %v3370, 108
      %v3446 = vpop.permute.xlu0 %3445
      %3447 = vrot.lane.b32.xlu0 %v3371, 108
      %v3448 = vpop.permute.xlu0 %3447
      %3449 = vrot.lane.b32.xlu0 %v3372, 108
      %v3450 = vpop.permute.xlu0 %3449
      %3451 = vrot.lane.b32.xlu0 %v3373, 108
      %v3452 = vpop.permute.xlu0 %3451
      %v3453 = vsel %vm1005, %v3444, %v3446
      %v3454 = vsel %vm1005, %v3446, %v3448
      %v3455 = vsel %vm1005, %v3450, %v3452
      %v3456 = vsel %vm1005, %v3452, %v3448
      %3461 = vrot.lane.b32.xlu0 %v3369, 92
      %v3462 = vpop.permute.xlu0 %3461
      %3463 = vrot.lane.b32.xlu0 %v3370, 92
      %v3464 = vpop.permute.xlu0 %3463
      %3465 = vrot.lane.b32.xlu0 %v3371, 92
      %v3466 = vpop.permute.xlu0 %3465
      %3467 = vrot.lane.b32.xlu0 %v3372, 92
      %v3468 = vpop.permute.xlu0 %3467
      %3469 = vrot.lane.b32.xlu0 %v3373, 92
      %v3470 = vpop.permute.xlu0 %3469
      %v3471 = vsel %vm1013, %v3462, %v3464
      %v3472 = vsel %vm1013, %v3464, %v3466
      %v3473 = vsel %vm1013, %v3468, %v3470
      %v3474 = vsel %vm1013, %v3470, %v3466
      %3479 = vrot.lane.b32.xlu0 %v3369, 91
      %v3480 = vpop.permute.xlu0 %3479
      %3481 = vrot.lane.b32.xlu0 %v3370, 91
      %v3482 = vpop.permute.xlu0 %3481
      %3483 = vrot.lane.b32.xlu0 %v3371, 91
      %v3484 = vpop.permute.xlu0 %3483
      %3485 = vrot.lane.b32.xlu0 %v3372, 91
      %v3486 = vpop.permute.xlu0 %3485
      %3487 = vrot.lane.b32.xlu0 %v3373, 91
      %v3488 = vpop.permute.xlu0 %3487
      %v3489 = vsel %vm1021, %v3480, %v3482
      %v3490 = vsel %vm1021, %v3482, %v3484
      %v3491 = vsel %vm1021, %v3486, %v3488
      %v3492 = vsel %vm1021, %v3488, %v3484
      %3497 = vrot.lane.b32.xlu0 %v3369, 90
      %v3498 = vpop.permute.xlu0 %3497
      %3499 = vrot.lane.b32.xlu0 %v3370, 90
      %v3500 = vpop.permute.xlu0 %3499
      %3501 = vrot.lane.b32.xlu0 %v3371, 90
      %v3502 = vpop.permute.xlu0 %3501
      %3503 = vrot.lane.b32.xlu0 %v3372, 90
      %v3504 = vpop.permute.xlu0 %3503
      %3505 = vrot.lane.b32.xlu0 %v3373, 90
      %v3506 = vpop.permute.xlu0 %3505
      %v3507 = vsel %vm1029, %v3498, %v3500
      %v3508 = vsel %vm1029, %v3500, %v3502
      %v3509 = vsel %vm1029, %v3504, %v3506
      %v3510 = vsel %vm1029, %v3506, %v3502
      %3516 = vset.pattern.permute.xlu0 0
      %3517 = vperm.xlu0 %3516, %v3367
      %v3518 = vpop.permute.xlu0 %3517
      %3521 = vset.pattern.permute.xlu0 0
      %3522 = vperm.xlu0 %3521, %v3368
      %v3523 = vpop.permute.xlu0 %3522
      %v3529 = vunpack.c.l.b16 %v3363
      %v3530 = vunpack.c.h.b16 %v3363
      %v3531 = vunpack.c.l.b16 %v3364
      %v3532 = vunpack.c.l.b16 %v3365
      %v3533 = vunpack.c.h.b16 %v3365
      %v3534 = vunpack.c.l.b16 %v3366
      %v3535 = vpack.c.b16 %v3532, %v3529
      %v3536 = vpack.c.b16 %v3533, %v3530
      %v3537 = vpack.c.b16 %v3534, %v3531
      %v3541 = vsel %vm1285, %v3537, 0
      %3543 = vmatprep.subr.bf16.mxu0 %v3420
      %3544 = vmatpush1.bf16.msra.mxu0 %v3419
      %3545 = vmatprep.subr.bf16.mxu0 %v3418
      %3546 = vmatpush1.bf16.msra.mxu0 %v3417
      %3547 = vmatprep.subr.bf16.mxu0 %v3399
      %3548 = vmatpush1.bf16.msra.mxu0 %v3401
      %3549 = vmatprep.subr.bf16.mxu0 %v3395
      %3550 = vmatpush1.bf16.msra.mxu0 %v3400
      %3551 = vmatprep.subr.bf16.mxu0 %v3385
      %3552 = vmatpush1.bf16.msra.mxu0 %v3387
      %3553 = vmatprep.subr.bf16.mxu0 %v3381
      %3554 = vmatpush1.bf16.msra.mxu0 %v3386
      %3555 = vmatprep.subr.bf16.mxu0 %v3373
      %3556 = vmatpush1.bf16.msra.mxu0 %v3372
      %3557 = vmatprep.subr.bf16.mxu0 %v3370
      %3558 = vmatpush1.bf16.msra.mxu0 %v3369
      %3559 = vmatprep.subr.bf16.mxu0 %v3492
      %3560 = vmatpush2.bf16.msra.mxu0 %v3491
      %3561 = vmatprep.subr.bf16.mxu0 %v3490
      %3562 = vmatpush2.bf16.msra.mxu0 %v3489
      %3563 = vmatprep.subr.bf16.mxu0 %v3474
      %3564 = vmatpush2.bf16.msra.mxu0 %v3473
      %3565 = vmatprep.subr.bf16.mxu0 %v3472
      %3566 = vmatpush2.bf16.msra.mxu0 %v3471
      %3567 = vmatprep.subr.bf16.mxu0 %v3456
      %3568 = vmatpush2.bf16.msra.mxu0 %v3455
      %3569 = vmatprep.subr.bf16.mxu0 %v3454
      %3570 = vmatpush2.bf16.msra.mxu0 %v3453
      %3571 = vmatprep.subr.bf16.mxu0 %v3438
      %3572 = vmatpush2.bf16.msra.mxu0 %v3437
      %3573 = vmatprep.subr.bf16.mxu0 %v3436
      %3574 = vmatpush2.bf16.msra.mxu0 %v3435
      %3575 = vmatprep.mubr.bf16.mxu0 %v3536
      %3576 = vmatmul.mubr.bf16.gmra.mxu0 %v3535
      %v3577 = vpop.f32.mrf.mxu0
      %v3578 = vadd.f32 %v3518, %v3577
      %v3579 = vpop.f32.mrf.mxu0
      %v3580 = vadd.f32 %v3518, %v3579
      %v3581 = vpop.f32.mrf.mxu0
      %v3582 = vadd.f32 %v3523, %v3581
      %v3583 = vpop.f32.mrf.mxu0
      %v3584 = vadd.f32 %v3523, %v3583
      %3585 = vdwg.mxu0
      %3586 = vmatprep.subr.bf16.mxu0 0
      %3587 = vmatpush1.bf16.msra.mxu0 0
      %3588 = vmatprep.subr.bf16.mxu0 0
      %3589 = vmatpush1.bf16.msra.mxu0 0
      %3590 = vmatprep.subr.bf16.mxu0 0
      %3591 = vmatpush1.bf16.msra.mxu0 0
      %3592 = vmatprep.subr.bf16.mxu0 0
      %3593 = vmatpush1.bf16.msra.mxu0 0
      %3594 = vmatprep.subr.bf16.mxu0 0
      %3595 = vmatpush1.bf16.msra.mxu0 0
      %3596 = vmatprep.subr.bf16.mxu0 0
      %3597 = vmatpush1.bf16.msra.mxu0 0
      %3598 = vmatprep.subr.bf16.mxu0 %v3510
      %3599 = vmatpush1.bf16.msra.mxu0 %v3509
      %3600 = vmatprep.subr.bf16.mxu0 %v3508
      %3601 = vmatpush1.bf16.msra.mxu0 %v3507
      %3602 = vmatprep.subr.bf16.mxu0 0
      %3603 = vmatpush2.bf16.msra.mxu0 0
      %3604 = vmatprep.subr.bf16.mxu0 0
      %3605 = vmatpush2.bf16.msra.mxu0 0
      %3606 = vmatprep.subr.bf16.mxu0 0
      %3607 = vmatpush2.bf16.msra.mxu0 0
      %3608 = vmatprep.subr.bf16.mxu0 0
      %3609 = vmatpush2.bf16.msra.mxu0 0
      %3610 = vmatprep.subr.bf16.mxu0 0
      %3611 = vmatpush2.bf16.msra.mxu0 0
      %3612 = vmatprep.subr.bf16.mxu0 0
      %3613 = vmatpush2.bf16.msra.mxu0 0
      %3614 = vmatprep.subr.bf16.mxu0 0
      %3615 = vmatpush2.bf16.msra.mxu0 0
      %3616 = vmatprep.subr.bf16.mxu0 0
      %3617 = vmatpush2.bf16.msra.mxu0 0
      %3618 = vmatprep.mubr.bf16.mxu0 0
      %3619 = vmatmul.mubr.bf16.gmra.mxu0 %v3541
      %v3620 = vpop.f32.mrf.mxu0
      %v3621 = vadd.f32 %v3578, %v3620
      %v3622 = vpop.f32.mrf.mxu0
      %v3623 = vadd.f32 %v3580, %v3622
      %v3624 = vpop.f32.mrf.mxu0
      %v3625 = vadd.f32 %v3582, %v3624
      %v3626 = vpop.f32.mrf.mxu0
      %v3627 = vadd.f32 %v3584, %v3626
      %3628 = vdwg.mxu0
      %v3629 = vmax.f32 %v3621, 0.0
      %v3630 = vmax.f32 %v3623, 0.0
      %v3631 = vmax.f32 %v3625, 0.0
      %v3632 = vmax.f32 %v3627, 0.0
      %v3633 = vld [vmem:[%s15] sm:$0x3]
      %vm3634 = vcmp.gt.f32.partialorder %v3633, 0.5
      %v3635 = vsel %vm3634, 1, 0
      %v3636 = vlaneseq
      %v3637 = vshrl.u32 %v3636, 7
      %v3638 = vsub.s32 0, %v3637
      %v3639 = vrot.slane %v3635, %v3638
      %v3640 = vlaneseq
      %v3641 = vshrl.u32 %v3640, 7
      %v3642 = vsub.s32 1, %v3641
      %v3643 = vrot.slane %v3635, %v3642
      %vm3644 = vcmp.eq.s32.totalorder %v3639, 1
      %vm3645 = vcmp.eq.s32.totalorder %v3643, 1
      %v3646 = vsel %vm3644, %v3629, 0.0
      %v3647 = vsel %vm3645, %v3630, 0.0
      %v3648 = vsel %vm3644, %v3631, 0.0
      %v3649 = vsel %vm3645, %v3632, 0.0
      %3654 = vrot.lane.b32.xlu0 %v3646, 38
      %v3655 = vpop.permute.xlu0 %3654
      %3656 = vrot.lane.b32.xlu0 %v3647, 38
      %v3657 = vpop.permute.xlu0 %3656
      %3658 = vrot.lane.b32.xlu0 %v3648, 38
      %v3659 = vpop.permute.xlu0 %3658
      %3660 = vrot.lane.b32.xlu0 %v3649, 38
      %v3661 = vpop.permute.xlu0 %3660
      %v3662 = vsel %vm1490, %v3655, %v3657
      %v3663 = vsel %vm1490, %v3659, %v3661
      %v3670 = vsel %vm1490, 0.0, %v3655
      %v3671 = vsel %vm1490, 0.0, %v3659
      %vm3672 = vcmask 244736
      %v3673 = vsel %vm3672, %v3657, 0.0
      %v3674 = vsel %vm3672, %v3661, 0.0
      %v3675 = vld [vmem:[%s11] sm:$0x3]
      %v3676 = vld [vmem:[#allocation2] sm:$0x1]
      %v3677 = vpack.c.bf16 %v3671, %v3670
      %v3678 = vpack.c.bf16 %v3663, %v3662
      %v3679 = vpack.c.bf16 %v3674, %v3673
      %3683 = vrot.lane.b32.xlu0 %v3677, 127
      %v3684 = vpop.permute.xlu0 %3683
      %3685 = vrot.lane.b32.xlu0 %v3678, 127
      %v3686 = vpop.permute.xlu0 %3685
      %3687 = vrot.lane.b32.xlu0 %v3679, 127
      %v3688 = vpop.permute.xlu0 %3687
      %v3689 = vsel %vm973, %v3684, %v3686
      %v3690 = vsel %vm973, %v3686, %v3688
      %3694 = vrot.lane.b32.xlu0 %v3677, 126
      %v3695 = vpop.permute.xlu0 %3694
      %3696 = vrot.lane.b32.xlu0 %v3678, 126
      %v3697 = vpop.permute.xlu0 %3696
      %3698 = vrot.lane.b32.xlu0 %v3679, 126
      %v3699 = vpop.permute.xlu0 %3698
      %v3700 = vsel %vm981, %v3695, %v3697
      %v3701 = vsel %vm981, %v3697, %v3699
      %3705 = vrot.lane.b32.xlu0 %v3677, 110
      %v3706 = vpop.permute.xlu0 %3705
      %3707 = vrot.lane.b32.xlu0 %v3678, 110
      %v3708 = vpop.permute.xlu0 %3707
      %3709 = vrot.lane.b32.xlu0 %v3679, 110
      %v3710 = vpop.permute.xlu0 %3709
      %v3711 = vsel %vm989, %v3706, %v3708
      %v3712 = vsel %vm989, %v3708, %v3710
      %3716 = vrot.lane.b32.xlu0 %v3677, 109
      %v3717 = vpop.permute.xlu0 %3716
      %3718 = vrot.lane.b32.xlu0 %v3678, 109
      %v3719 = vpop.permute.xlu0 %3718
      %3720 = vrot.lane.b32.xlu0 %v3679, 109
      %v3721 = vpop.permute.xlu0 %3720
      %v3722 = vsel %vm997, %v3717, %v3719
      %v3723 = vsel %vm997, %v3719, %v3721
      %3727 = vrot.lane.b32.xlu0 %v3677, 108
      %v3728 = vpop.permute.xlu0 %3727
      %3729 = vrot.lane.b32.xlu0 %v3678, 108
      %v3730 = vpop.permute.xlu0 %3729
      %3731 = vrot.lane.b32.xlu0 %v3679, 108
      %v3732 = vpop.permute.xlu0 %3731
      %v3733 = vsel %vm1005, %v3728, %v3730
      %v3734 = vsel %vm1005, %v3730, %v3732
      %3738 = vrot.lane.b32.xlu0 %v3677, 92
      %v3739 = vpop.permute.xlu0 %3738
      %3740 = vrot.lane.b32.xlu0 %v3678, 92
      %v3741 = vpop.permute.xlu0 %3740
      %3742 = vrot.lane.b32.xlu0 %v3679, 92
      %v3743 = vpop.permute.xlu0 %3742
      %v3744 = vsel %vm1013, %v3739, %v3741
      %v3745 = vsel %vm1013, %v3741, %v3743
      %3749 = vrot.lane.b32.xlu0 %v3677, 91
      %v3750 = vpop.permute.xlu0 %3749
      %3751 = vrot.lane.b32.xlu0 %v3678, 91
      %v3752 = vpop.permute.xlu0 %3751
      %3753 = vrot.lane.b32.xlu0 %v3679, 91
      %v3754 = vpop.permute.xlu0 %3753
      %v3755 = vsel %vm1021, %v3750, %v3752
      %v3756 = vsel %vm1021, %v3752, %v3754
      %3760 = vrot.lane.b32.xlu0 %v3677, 90
      %v3761 = vpop.permute.xlu0 %3760
      %3762 = vrot.lane.b32.xlu0 %v3678, 90
      %v3763 = vpop.permute.xlu0 %3762
      %3764 = vrot.lane.b32.xlu0 %v3679, 90
      %v3765 = vpop.permute.xlu0 %3764
      %v3766 = vsel %vm1029, %v3761, %v3763
      %v3767 = vsel %vm1029, %v3763, %v3765
      %3772 = vset.pattern.permute.xlu0 0
      %3773 = vperm.xlu0 %3772, %v3676
      %v3774 = vpop.permute.xlu0 %3773
      %v3776 = vlaneseq
      %v3777 = vshrl.u32 %v3776, 7
      %v3778 = vsub.s32 0, %v3777
      %v3779 = vrot.slane %v3774, %v3778
      %v3782 = vunpack.c.l.s4 1966171168
      %v3783 = vunpack.c.0.s8 %v3782
      %v3784 = vlaneseq
      %v3785 = vshrl.u32 %v3784, 7
      %v3786 = vsub.s32 %v3783, %v3785
      %v3787 = vrot.slane %v3675, %v3786
      %v3788 = vcombine.high %v3787, %v3787
      %v3790 = vunpack.c.l.s4 1966171168
      %v3791 = vunpack.c.0.s8 %v3790
      %v3792 = vlaneseq
      %v3793 = vshrl.u32 %v3792, 7
      %v3794 = vsub.s32 %v3791, %v3793
      %v3795 = vrot.slane %v3787, %v3794
      %v3797 = vunpack.c.l.s4 1966171168
      %v3798 = vunpack.c.0.s8 %v3797
      %v3799 = vlaneseq
      %v3800 = vshrl.u32 %v3799, 7
      %v3801 = vsub.s32 %v3798, %v3800
      %v3802 = vrot.slane %v3788, %v3801
      %v3805 = vsel %vm1071, %v3802, 0
      %3807 = vmatprep.subr.bf16.mxu0 %v3756
      %3808 = vmatpush1.bf16.msra.mxu0 %v3755
      %3809 = vmatprep.subr.bf16.mxu0 %v3745
      %3810 = vmatpush1.bf16.msra.mxu0 %v3744
      %3811 = vmatprep.subr.bf16.mxu0 %v3734
      %3812 = vmatpush1.bf16.msra.mxu0 %v3733
      %3813 = vmatprep.subr.bf16.mxu0 %v3723
      %3814 = vmatpush1.bf16.msra.mxu0 %v3722
      %3815 = vmatprep.subr.bf16.mxu0 %v3712
      %3816 = vmatpush1.bf16.msra.mxu0 %v3711
      %3817 = vmatprep.subr.bf16.mxu0 %v3701
      %3818 = vmatpush1.bf16.msra.mxu0 %v3700
      %3819 = vmatprep.subr.bf16.mxu0 %v3690
      %3820 = vmatpush1.bf16.msra.mxu0 %v3689
      %3821 = vmatprep.subr.bf16.mxu0 %v3678
      %3822 = vmatpush1.bf16.msra.mxu0 %v3677
      %3823 = vmatprep.subr.bf16.mxu0 0
      %3824 = vmatpush2.bf16.msra.mxu0 0
      %3825 = vmatprep.subr.bf16.mxu0 0
      %3826 = vmatpush2.bf16.msra.mxu0 0
      %3827 = vmatprep.subr.bf16.mxu0 0
      %3828 = vmatpush2.bf16.msra.mxu0 0
      %3829 = vmatprep.subr.bf16.mxu0 0
      %3830 = vmatpush2.bf16.msra.mxu0 0
      %3831 = vmatprep.subr.bf16.mxu0 0
      %3832 = vmatpush2.bf16.msra.mxu0 0
      %3833 = vmatprep.subr.bf16.mxu0 0
      %3834 = vmatpush2.bf16.msra.mxu0 0
      %3835 = vmatprep.subr.bf16.mxu0 0
      %3836 = vmatpush2.bf16.msra.mxu0 0
      %3837 = vmatprep.subr.bf16.mxu0 %v3767
      %3838 = vmatpush2.bf16.msra.mxu0 %v3766
      %3839 = vmatprep.mubr.bf16.mxu0 %v3805
      %3840 = vmatmul.mubr.bf16.gmra.mxu0 %v3795
      %v3841 = vpop.f32.mrf.mxu0
      %v3842 = vadd.f32 %v3779, %v3841
      %v3843 = vpop.f32.mrf.mxu0
      %v3844 = vadd.f32 %v3779, %v3843
      %v3845 = vpop.f32.mrf.mxu0
      %v3846 = vpop.f32.mrf.mxu0
      %3847 = vdwg.mxu0
      %3848 = vmatprep.subr.bf16.mxu0 0
      %3849 = vmatpush1.bf16.msra.mxu0 %v3754
      %3850 = vmatprep.subr.bf16.mxu0 0
      %3851 = vmatpush1.bf16.msra.mxu0 %v3743
      %3852 = vmatprep.subr.bf16.mxu0 0
      %3853 = vmatpush1.bf16.msra.mxu0 %v3732
      %3854 = vmatprep.subr.bf16.mxu0 0
      %3855 = vmatpush1.bf16.msra.mxu0 %v3721
      %3856 = vmatprep.subr.bf16.mxu0 0
      %3857 = vmatpush1.bf16.msra.mxu0 %v3710
      %3858 = vmatprep.subr.bf16.mxu0 0
      %3859 = vmatpush1.bf16.msra.mxu0 %v3699
      %3860 = vmatprep.subr.bf16.mxu0 0
      %3861 = vmatpush1.bf16.msra.mxu0 %v3688
      %3862 = vmatprep.subr.bf16.mxu0 0
      %3863 = vmatpush1.bf16.msra.mxu0 %v3679
      %3864 = vmatprep.subr.bf16.mxu0 0
      %3865 = vmatpush2.bf16.msra.mxu0 0
      %3866 = vmatprep.subr.bf16.mxu0 0
      %3867 = vmatpush2.bf16.msra.mxu0 0
      %3868 = vmatprep.subr.bf16.mxu0 0
      %3869 = vmatpush2.bf16.msra.mxu0 0
      %3870 = vmatprep.subr.bf16.mxu0 0
      %3871 = vmatpush2.bf16.msra.mxu0 0
      %3872 = vmatprep.subr.bf16.mxu0 0
      %3873 = vmatpush2.bf16.msra.mxu0 0
      %3874 = vmatprep.subr.bf16.mxu0 0
      %3875 = vmatpush2.bf16.msra.mxu0 0
      %3876 = vmatprep.subr.bf16.mxu0 0
      %3877 = vmatpush2.bf16.msra.mxu0 0
      %3878 = vmatprep.subr.bf16.mxu0 0
      %3879 = vmatpush2.bf16.msra.mxu0 %v3765
      %3880 = vmatprep.mubr.bf16.mxu0 %v3805
      %3881 = vmatmul.mubr.bf16.gmra.mxu0 %v3795
      %v3882 = vpop.f32.mrf.mxu0
      %v3883 = vadd.f32 %v3779, %v3882
      %v3884 = vpop.f32.mrf.mxu0
      %v3885 = vpop.f32.mrf.mxu0
      %v3886 = vpop.f32.mrf.mxu0
      %3887 = vdwg.mxu0
      %v3888 = vsel %vm3672, %v3883, 0.0
      %v3892 = vcombine.low %v3842, %v3844
      %v3894 = vunpack.c.l.s4 1966171168
      %v3895 = vunpack.c.0.s8 %v3894
      %v3896 = vlaneseq
      %v3897 = vshrl.u32 %v3896, 7
      %v3898 = vsub.s32 %v3895, %v3897
      %v3899 = vrot.slane %v3892, %v3898
      %v3901 = vunpack.c.l.s4 1966171168
      %v3902 = vunpack.c.0.s8 %v3901
      %v3903 = vlaneseq
      %v3904 = vshrl.u32 %v3903, 7
      %v3905 = vsub.s32 %v3902, %v3904
      %v3906 = vrot.slane %v3888, %v3905
      %v3907 = vcombine.low %v3899, %v3906
      %v3909 = vunpack.c.l.s4 1966171168
      %v3910 = vunpack.c.0.s8 %v3909
      %v3911 = vlaneseq
      %v3912 = vshrl.u32 %v3911, 7
      %v3913 = vsub.s32 %v3910, %v3912
      %v3914 = vrot.slane %v3907, %v3913
      %v3916 = vlaneseq
      %vm3917 = vcmp.ge.s32.totalorder %v3916, 0
      %vm3918 = vcmp.lt.s32.totalorder %v3916, 384
      %vm3919 = vmand %vm3917, %vm3918
      %3920 = vst.msk [vmem:[%s558] sm:$0x7] %vm3919, %v3914
      %p3921 = scmp.lt.s32.totalorder %s31, 1
      %s3922 = scalar_select %p3921, %s31, 1
      %s3923 = smul.addr %s3922, 2
      %s3924 = smul.addr %s3923, 4
      %s3925 = scalar_lea.vmem %s16, %s3924
      %p3926 = scmp.lt.s32.totalorder %s31, 1
      %s3927 = scalar_select %p3926, %s31, 1
      %s3928 = smul.addr %s3927, 3
      %s3929 = scalar_lea.vmem %s17, %s3928
      // Predicated region
      $region85: #{autoencoder_forward.1} parent=83 // pred_check
        %p3930 = pneg %p390
      $region86: #{autoencoder_forward.1} parent=83 // pred_check_branch
        %3932 = sbr.rel (%p3930) target = $region88
      $region87: #{autoencoder_forward.1} parent=83 // pred_region
        _
      $region88: #{autoencoder_forward.1} parent=83 // pred_fallthru
        _
      // Predicated region
      $region89: #{autoencoder_forward.1} parent=83 // pred_check
        %p3933 = pneg %p416
      $region90: #{autoencoder_forward.1} parent=83 // pred_check_branch
        %3935 = sbr.rel (%p3933) target = $region92
      $region91: #{autoencoder_forward.1} parent=83 // pred_region
        _
      $region92: #{autoencoder_forward.1} parent=83 // pred_fallthru
        _
    $region84: #{autoencoder_forward.1} parent=5 // pred_fallthru
      _
    %p3936 = scmp.le.s32.totalorder 2, %s26
    // Predicated region
    $region93: #{autoencoder_forward.1} parent=5 // pred_check
      %p3937 = pneg %p3936
    $region94: #{autoencoder_forward.1} parent=5 // pred_check_branch
      %3939 = sbr.rel (%p3937) target = $region96
    $region95: #{autoencoder_forward.1} parent=5 // pred_region
      %s3940 = ssub.s32 %s26, 2
      // Predicated region
      $region97: #{autoencoder_forward.1} parent=95 // pred_check
        %p3941 = pneg %p396
      $region98: #{autoencoder_forward.1} parent=95 // pred_check_branch
        %3943 = sbr.rel (%p3941) target = $region100
      $region99: #{autoencoder_forward.1} parent=95 // pred_region
        %p3944 = scmp.lt.s32.totalorder %s32, 1
        %s3945 = scalar_select %p3944, %s32, 1
        %s3946 = smul.addr %s3945, 2
        %s3947 = smul.addr %s3946, 4
        %s3948 = scalar_lea.vmem %s16, %s3947
      $region100: #{autoencoder_forward.1} parent=95 // pred_fallthru
        _
      // Predicated region
      $region101: #{autoencoder_forward.1} parent=95 // pred_check
        %p3949 = pneg %p422
      $region102: #{autoencoder_forward.1} parent=95 // pred_check_branch
        %3951 = sbr.rel (%p3949) target = $region104
      $region103: #{autoencoder_forward.1} parent=95 // pred_region
        %p3952 = scmp.lt.s32.totalorder %s32, 1
        %s3953 = scalar_select %p3952, %s32, 1
        %s3954 = smul.addr %s3953, 3
        %s3955 = scalar_lea.vmem %s17, %s3954
      $region104: #{autoencoder_forward.1} parent=95 // pred_fallthru
        _
    $region96: #{autoencoder_forward.1} parent=5 // pred_fallthru
      _
  $region6: #{autoencoder_forward.1} parent=0 // loop_footer
    %s30 = sadd.s32 1, %s26
  $region7: #{autoencoder_forward.1} parent=0 // loop_footer_branch
    %25 = sbr.rel target = $region3
  $region8: #{autoencoder_forward.1} parent=0 // loop_exit
    _

</llo_original>
